<compile_context>
chip_gen: v7x
topology: tpu7x:2x2x1
jax: 0.10.0
libtpu: 0.0.40
codegen_flags: <defaults>
</compile_context>

<pallas_src>
import functools

import jax
import jax.numpy as jnp
import numpy as np
from jax.experimental import pallas as pl
from jax.experimental.pallas import tpu as pltpu

EPS = 1e-5
_LANES = 128


def _round_up(x, m):
    return ((x + m - 1) // m) * m


def _pick_copad(co):
    """Lane padding for conv output channels.

    Lane-dense (multiple-of-128) stores only when the zero-lane overhead is
    <= 2x; otherwise keep the natural channel count so HBM traffic of the
    activations is not blown up (16x at Co=8).
    """
    r = _round_up(co, _LANES)
    return r if r <= 2 * co else co


# ----------------------------- Pallas kernels ------------------------------ #

def _conv_stats_kernel(a0_ref, a1_ref, a2_ref, w_ref, b_ref, ml_ref, mr_ref,
                       y_ref, st_ref, xcol_ref, *, ci, wd, hw):
    """One (n, d_out) plane of Conv3d(3, pad=1)+bias, plus partial BN stats.

    a{0,1,2}_ref : (Hp*W, Cs)   depth slices d-1, d, d+1 of the padded input
                                (H padded by 2/side, flattened with W into rows).
    w_ref        : (27*Ci, Cop) resident im2col weights ((kd,kh,kw,ci) row order).
    b_ref        : (1, Cop)     resident conv bias.
    ml/mr_ref    : (HW, 1)      masks that zero the W-boundary wrap-around rows.
    y_ref        : (HW, Cop)    raw conv+bias output tile (pre-BN).
    st_ref       : (2, Cop)     per-tile [sum; sum of squares] over rows.
    xcol_ref     : (HW, 27*Ci)  VMEM scratch holding the im2col tile.
    """
    ml = ml_ref[...]
    mr = mr_ref[...]
    slabs = (a0_ref, a1_ref, a2_ref)
    for kd in range(3):
        slab = slabs[kd]
        for kh in range(3):
            for kw in range(3):
                t = (kd * 3 + kh) * 3 + kw
                # row index in the flattened (Hp*W) view for output row m is
                # m + (kh+1)*W + (kw-1); always a contiguous static slice.
                off = (kh + 1) * wd + (kw - 1)
                a = slab[off:off + hw, 0:ci]          # (HW, Ci)
                if kw == 0:
                    a = a * ml                        # w-1 wrapped rows -> 0
                elif kw == 2:
                    a = a * mr                        # w+1 wrapped rows -> 0
                xcol_ref[:, t * ci:(t + 1) * ci] = a
    y = jnp.dot(xcol_ref[...], w_ref[...], preferred_element_type=jnp.float32)
    y = y + b_ref[...]
    y_ref[...] = y
    st_ref[0:1, :] = jnp.sum(y, axis=0, keepdims=True)
    st_ref[1:2, :] = jnp.sum(y * y, axis=0, keepdims=True)


def _bn_relu_kernel(y_ref, sc_ref, sh_ref, o_ref):
    # y: (HW, Cop); sc/sh: (1, Cop) resident folded BN scale/shift.
    o_ref[...] = jnp.maximum(y_ref[...] * sc_ref[...] + sh_ref[...], 0.0)


def _slab_index_map(n, d, *, kd):
    return (n, d + kd, 0, 0)


def _const_index_map(n, d):
    return (0, 0)


# ------------------------------ JAX wrappers ------------------------------- #

def _conv3d_bias_stats(ap_flat, wmat, bias, mask_l, mask_r,
                       *, n, dd, hh, wd, ci, cs, copad):
    """Gridded conv call. ap_flat: (N, D+2, (H+4)*W, Cs)."""
    hw = hh * wd
    hpw = (hh + 4) * wd
    k = 27 * ci
    kern = functools.partial(_conv_stats_kernel, ci=ci, wd=wd, hw=hw)

    def slab_spec(kd):
        return pl.BlockSpec((None, None, hpw, cs),
                            functools.partial(_slab_index_map, kd=kd))

    in_specs = [slab_spec(0), slab_spec(1), slab_spec(2),
                pl.BlockSpec((k, copad), _const_index_map),
                pl.BlockSpec((1, copad), _const_index_map),
                pl.BlockSpec((hw, 1), _const_index_map),
                pl.BlockSpec((hw, 1), _const_index_map)]
    out_specs = (pl.BlockSpec((None, None, hw, copad), lambda i, j: (i, j, 0, 0)),
                 pl.BlockSpec((None, None, 2, copad), lambda i, j: (i, j, 0, 0)))
    out_shape = (jax.ShapeDtypeStruct((n, dd, hw, copad), jnp.float32),
                 jax.ShapeDtypeStruct((n, dd, 2, copad), jnp.float32))
    return pl.pallas_call(
        kern,
        grid=(n, dd),
        in_specs=in_specs,
        out_specs=out_specs,
        out_shape=out_shape,
        scratch_shapes=[pltpu.VMEM((hw, k), jnp.float32)],
        compiler_params=pltpu.CompilerParams(
            dimension_semantics=("parallel", "parallel")),
    )(ap_flat, ap_flat, ap_flat, wmat, bias, mask_l, mask_r)


def _apply_bn_relu(y, scale, shift, *, n, dd, hw, copad):
    tile = pl.BlockSpec((None, None, hw, copad), lambda i, j: (i, j, 0, 0))
    return pl.pallas_call(
        _bn_relu_kernel,
        grid=(n, dd),
        in_specs=[tile,
                  pl.BlockSpec((1, copad), _const_index_map),
                  pl.BlockSpec((1, copad), _const_index_map)],
        out_specs=tile,
        out_shape=jax.ShapeDtypeStruct((n, dd, hw, copad), jnp.float32),
        compiler_params=pltpu.CompilerParams(
            dimension_semantics=("parallel", "parallel")),
    )(y, scale, shift)


def conv3d_bn_relu_cl(a, w, b, gamma, beta, *, copad):
    """Conv3d(k=3, pad=1) + BatchNorm3d(train) + ReLU on channel-last input.

    a: (N, D, H, W, Cs) with Cs >= Ci = w.shape[1]; real channels are a[..., :Ci].
    Returns channel-last (N, D, H, W, copad); channels >= Co are exactly zero.
    """
    n, dd, hh, wd, cs = a.shape
    co, ci = w.shape[0], w.shape[1]
    hw = hh * wd

    # Zero-pad D by 1 and H by 2 per side (the extra H rows give slack so every
    # one of the 27 taps is a contiguous row-slice of the (Hp*W)-flattened view);
    # W stays unpadded -- its boundary is handled in-kernel by the row masks.
    ap = jnp.pad(a, ((0, 0), (1, 1), (2, 2), (0, 0), (0, 0)))
    ap_flat = ap.reshape(n, dd + 2, (hh + 4) * wd, cs)

    # (Co, Ci, kd, kh, kw) -> (27*Ci, Cop) with (kd, kh, kw, ci) row order.
    wmat = w.transpose(2, 3, 4, 1, 0).reshape(27 * ci, co)
    wmat = jnp.pad(wmat, ((0, 0), (0, copad - co)))
    bias = jnp.pad(b, (0, copad - co)).reshape(1, copad)

    col = jnp.arange(hw, dtype=jnp.int32) % wd
    mask_l = (col != 0).astype(jnp.float32).reshape(hw, 1)
    mask_r = (col != wd - 1).astype(jnp.float32).reshape(hw, 1)

    y, st = _conv3d_bias_stats(ap_flat, wmat, bias, mask_l, mask_r,
                               n=n, dd=dd, hh=hh, wd=wd, ci=ci, cs=cs,
                               copad=copad)

    # Fold training-mode BN into scale/shift (biased variance, eps=1e-5).
    # E[x^2]-E[x]^2 in f32 is fine at these sizes; use a centered second pass
    # for very large M.
    m_total = float(n * dd * hw)
    ssum = jnp.sum(st[:, :, 0, :], axis=(0, 1))
    ssq = jnp.sum(st[:, :, 1, :], axis=(0, 1))
    mean = ssum / m_total
    var = jnp.maximum(ssq / m_total - mean * mean, 0.0)
    gpad = jnp.pad(gamma, (0, copad - co))
    bpad = jnp.pad(beta, (0, copad - co))
    scale = gpad * jax.lax.rsqrt(var + EPS)
    shift = bpad - mean * scale

    act = _apply_bn_relu(y, scale.reshape(1, copad), shift.reshape(1, copad),
                         n=n, dd=dd, hw=hw, copad=copad)
    return act.reshape(n, dd, hh, wd, copad)


def down3d_forward(x, params):
    """Down3d: MaxPool3d(2) -> DoubleConv3d.  x: (N, C, D, H, W) NCDHW."""
    n, cin, d0, h0, w0 = x.shape
    cout = params["w1"].shape[0]
    d2, h2, w2 = d0 // 2, h0 // 2, w0 // 2

    # MaxPool3d(2) as paired maxima in the wrapper (layout-bound glue; XLA runs
    # it at roofline).  TODO(synk): fuse the pool into the conv1 load path.
    xp = x[:, :, :d2 * 2, :h2 * 2, :w2 * 2]
    xp = xp.reshape(n, cin, d2, 2, h2, 2, w2, 2).max(axis=(3, 5, 7))

    # Channel-last for the whole conv stack; transpose back only once at the end.
    a = xp.transpose(0, 2, 3, 4, 1)                       # (N, D2, H2, W2, Cin)

    copad = _pick_copad(cout)                             # adaptive lane padding
    a = conv3d_bn_relu_cl(a, params["w1"], params["b1"],
                          params["g1"], params["beta1"], copad=copad)
    a = conv3d_bn_relu_cl(a, params["w2"], params["b2"],
                          params["g2"], params["beta2"], copad=copad)

    return a[..., :cout].transpose(0, 4, 1, 2, 3)         # (N, Cout, D2, H2, W2)


# ------------------------- pure-JAX reference ------------------------------ #

def _ref_down3d(x, params):
    nb, cb, db, hb, wb = x.shape
    xm = x.reshape(nb, cb, db // 2, 2, hb // 2, 2, wb // 2, 2).max(axis=(3, 5, 7))

    def conv(h, w, b):
        out = jax.lax.conv_general_dilated(
            h, w, window_strides=(1, 1, 1),
            padding=((1, 1), (1, 1), (1, 1)),
            dimension_numbers=("NCDHW", "OIDHW", "NCDHW"))
        return out + b[None, :, None, None, None]

    def bn_relu(h, g, beta):
        mean = h.mean(axis=(0, 2, 3, 4), keepdims=True)
        var = ((h - mean) ** 2).mean(axis=(0, 2, 3, 4), keepdims=True)
        y = (h - mean) / jnp.sqrt(var + EPS)
        y = y * g[None, :, None, None, None] + beta[None, :, None, None, None]
        return jnp.maximum(y, 0.0)

    h1 = bn_relu(conv(xm, params["w1"], params["b1"]), params["g1"], params["beta1"])
    h2 = bn_relu(conv(h1, params["w2"], params["b2"]), params["g2"], params["beta2"])
    return h2


# ---------------------------------- main ----------------------------------- #

if __name__ == "__main__":
    key = jax.random.PRNGKey(0)
    N, Cin, Cout = 2, 4, 8
    D = H = W = 8                      # after MaxPool3d(2): 4x4x4

    k = jax.random.split(key, 8)
    x = jax.random.normal(k[0], (N, Cin, D, H, W), jnp.float32)
    params = {
        "w1": 0.1 * jax.random.normal(k[1], (Cout, Cin, 3, 3, 3), jnp.float32),
        "b1": 0.1 * jax.random.normal(k[2], (Cout,), jnp.float32),
        "g1": 1.0 + 0.1 * jax.random.normal(k[3], (Cout,), jnp.float32),
        "beta1": 0.1 * jax.random.normal(k[4], (Cout,), jnp.float32),
        "w2": 0.1 * jax.random.normal(k[5], (Cout, Cout, 3, 3, 3), jnp.float32),
        "b2": 0.1 * jax.random.normal(k[6], (Cout,), jnp.float32),
        "g2": 1.0 + 0.1 * jax.random.normal(k[7], (Cout,), jnp.float32),
        "beta2": jnp.zeros((Cout,), jnp.float32),
    }

    out = jax.jit(down3d_forward)(x, params)
    out = jax.block_until_ready(out)
    assert out.shape == (N, Cout, D // 2, H // 2, W // 2), out.shape

    ref = _ref_down3d(x, params)
    np.testing.assert_allclose(np.asarray(out), np.asarray(ref), rtol=2e-3, atol=2e-3)
    print("KERNEL_OK")
</pallas_src>

<mosaic_0001>
module attributes {stable_mosaic.version = 11 : i64} {
  func.func @_conv_stats_kernel(%arg0: i32, %arg1: i32, %arg2: memref<1x1x32x4xf32, #tpu.memory_space<vmem>>, %arg3: memref<1x1x32x4xf32, #tpu.memory_space<vmem>>, %arg4: memref<1x1x32x4xf32, #tpu.memory_space<vmem>>, %arg5: memref<108x8xf32, #tpu.memory_space<vmem>>, %arg6: memref<1x8xf32, #tpu.memory_space<vmem>>, %arg7: memref<16x1xf32, #tpu.memory_space<vmem>>, %arg8: memref<16x1xf32, #tpu.memory_space<vmem>>, %arg9: memref<1x1x16x8xf32, #tpu.memory_space<vmem>>, %arg10: memref<1x1x2x8xf32, #tpu.memory_space<vmem>>, %arg11: memref<16x108xf32, #tpu.memory_space<vmem>>) attributes {dimension_semantics = [#tpu.dimension_semantics<parallel>, #tpu.dimension_semantics<parallel>], iteration_bounds = array<i64: 2, 4>, scalar_prefetch = 0 : i64, scratch_operands = 1 : i64, tpu.core_type = #tpu.core_type<tc>, window_params = [{transform_indices = @transform_0, window_bounds = array<i64: 1, 1, 32, 4>}, {transform_indices = @transform_1, window_bounds = array<i64: 1, 1, 32, 4>}, {transform_indices = @transform_2, window_bounds = array<i64: 1, 1, 32, 4>}, {pipeline_mode = #tpu.pipeline_mode<synchronous>, transform_indices = @transform_3, window_bounds = array<i64: 108, 8>}, {pipeline_mode = #tpu.pipeline_mode<synchronous>, transform_indices = @transform_4, window_bounds = array<i64: 1, 8>}, {pipeline_mode = #tpu.pipeline_mode<synchronous>, transform_indices = @transform_5, window_bounds = array<i64: 16, 1>}, {pipeline_mode = #tpu.pipeline_mode<synchronous>, transform_indices = @transform_6, window_bounds = array<i64: 16, 1>}, {transform_indices = @transform_7, window_bounds = array<i64: 1, 1, 16, 8>}, {transform_indices = @transform_8, window_bounds = array<i64: 1, 1, 2, 8>}]} {
    %c0 = arith.constant 0 : index
    %c0_0 = arith.constant 0 : index
    %0 = vector.load %arg7[%c0, %c0_0] : memref<16x1xf32, #tpu.memory_space<vmem>>, vector<16x1xf32>
    %c0_1 = arith.constant 0 : index
    %c0_2 = arith.constant 0 : index
    %1 = vector.load %arg8[%c0_1, %c0_2] : memref<16x1xf32, #tpu.memory_space<vmem>>, vector<16x1xf32>
    %c0_3 = arith.constant 0 : index
    %c0_4 = arith.constant 0 : index
    %c3 = arith.constant 3 : index
    %c0_5 = arith.constant 0 : index
    %2 = vector.load %arg2[%c0_3, %c0_4, %c3, %c0_5] : memref<1x1x32x4xf32, #tpu.memory_space<vmem>>, vector<1x1x16x4xf32>
    %3 = vector.shape_cast %2 : vector<1x1x16x4xf32> to vector<16x4xf32>
    %4 = vector.broadcast %0 : vector<16x1xf32> to vector<16x4xf32>
    %5 = arith.mulf %3, %4 : vector<16x4xf32>
    %c0_6 = arith.constant 0 : index
    %c0_7 = arith.constant 0 : index
    %6 = vector.load %arg11[%c0_6, %c0_7] : memref<16x108xf32, #tpu.memory_space<vmem>>, vector<16x4xf32>
    tpu.vector_store %arg11[%c0_6, %c0_7], %5 {strides = array<i32>} : memref<16x108xf32, #tpu.memory_space<vmem>>, vector<16x4xf32>,
    %c0_8 = arith.constant 0 : index
    %c0_9 = arith.constant 0 : index
    %c4 = arith.constant 4 : index
    %c0_10 = arith.constant 0 : index
    %7 = vector.load %arg2[%c0_8, %c0_9, %c4, %c0_10] : memref<1x1x32x4xf32, #tpu.memory_space<vmem>>, vector<1x1x16x4xf32>
    %8 = vector.shape_cast %7 : vector<1x1x16x4xf32> to vector<16x4xf32>
    %c0_11 = arith.constant 0 : index
    %c4_12 = arith.constant 4 : index
    %9 = vector.load %arg11[%c0_11, %c4_12] : memref<16x108xf32, #tpu.memory_space<vmem>>, vector<16x4xf32>
    tpu.vector_store %arg11[%c0_11, %c4_12], %8 {strides = array<i32>} : memref<16x108xf32, #tpu.memory_space<vmem>>, vector<16x4xf32>,
    %c0_13 = arith.constant 0 : index
    %c0_14 = arith.constant 0 : index
    %c5 = arith.constant 5 : index
    %c0_15 = arith.constant 0 : index
    %10 = vector.load %arg2[%c0_13, %c0_14, %c5, %c0_15] : memref<1x1x32x4xf32, #tpu.memory_space<vmem>>, vector<1x1x16x4xf32>
    %11 = vector.shape_cast %10 : vector<1x1x16x4xf32> to vector<16x4xf32>
    %12 = vector.broadcast %1 : vector<16x1xf32> to vector<16x4xf32>
    %13 = arith.mulf %11, %12 : vector<16x4xf32>
    %c0_16 = arith.constant 0 : index
    %c8 = arith.constant 8 : index
    %14 = vector.load %arg11[%c0_16, %c8] : memref<16x108xf32, #tpu.memory_space<vmem>>, vector<16x4xf32>
    tpu.vector_store %arg11[%c0_16, %c8], %13 {strides = array<i32>} : memref<16x108xf32, #tpu.memory_space<vmem>>, vector<16x4xf32>,
    %c0_17 = arith.constant 0 : index
    %c0_18 = arith.constant 0 : index
    %c7 = arith.constant 7 : index
    %c0_19 = arith.constant 0 : index
    %15 = vector.load %arg2[%c0_17, %c0_18, %c7, %c0_19] : memref<1x1x32x4xf32, #tpu.memory_space<vmem>>, vector<1x1x16x4xf32>
    %16 = vector.shape_cast %15 : vector<1x1x16x4xf32> to vector<16x4xf32>
    %17 = vector.broadcast %0 : vector<16x1xf32> to vector<16x4xf32>
    %18 = arith.mulf %16, %17 : vector<16x4xf32>
    %c0_20 = arith.constant 0 : index
    %c12 = arith.constant 12 : index
    %19 = vector.load %arg11[%c0_20, %c12] : memref<16x108xf32, #tpu.memory_space<vmem>>, vector<16x4xf32>
    tpu.vector_store %arg11[%c0_20, %c12], %18 {strides = array<i32>} : memref<16x108xf32, #tpu.memory_space<vmem>>, vector<16x4xf32>,
    %c0_21 = arith.constant 0 : index
    %c0_22 = arith.constant 0 : index
    %c8_23 = arith.constant 8 : index
    %c0_24 = arith.constant 0 : index
    %20 = vector.load %arg2[%c0_21, %c0_22, %c8_23, %c0_24] : memref<1x1x32x4xf32, #tpu.memory_space<vmem>>, vector<1x1x16x4xf32>
    %21 = vector.shape_cast %20 : vector<1x1x16x4xf32> to vector<16x4xf32>
    %c0_25 = arith.constant 0 : index
    %c16 = arith.constant 16 : index
    %22 = vector.load %arg11[%c0_25, %c16] : memref<16x108xf32, #tpu.memory_space<vmem>>, vector<16x4xf32>
    tpu.vector_store %arg11[%c0_25, %c16], %21 {strides = array<i32>} : memref<16x108xf32, #tpu.memory_space<vmem>>, vector<16x4xf32>,
    %c0_26 = arith.constant 0 : index
    %c0_27 = arith.constant 0 : index
    %c9 = arith.constant 9 : index
    %c0_28 = arith.constant 0 : index
    %23 = vector.load %arg2[%c0_26, %c0_27, %c9, %c0_28] : memref<1x1x32x4xf32, #tpu.memory_space<vmem>>, vector<1x1x16x4xf32>
    %24 = vector.shape_cast %23 : vector<1x1x16x4xf32> to vector<16x4xf32>
    %25 = vector.broadcast %1 : vector<16x1xf32> to vector<16x4xf32>
    %26 = arith.mulf %24, %25 : vector<16x4xf32>
    %c0_29 = arith.constant 0 : index
    %c20 = arith.constant 20 : index
    %27 = vector.load %arg11[%c0_29, %c20] : memref<16x108xf32, #tpu.memory_space<vmem>>, vector<16x4xf32>
    tpu.vector_store %arg11[%c0_29, %c20], %26 {strides = array<i32>} : memref<16x108xf32, #tpu.memory_space<vmem>>, vector<16x4xf32>,
    %c0_30 = arith.constant 0 : index
    %c0_31 = arith.constant 0 : index
    %c11 = arith.constant 11 : index
    %c0_32 = arith.constant 0 : index
    %28 = vector.load %arg2[%c0_30, %c0_31, %c11, %c0_32] : memref<1x1x32x4xf32, #tpu.memory_space<vmem>>, vector<1x1x16x4xf32>
    %29 = vector.shape_cast %28 : vector<1x1x16x4xf32> to vector<16x4xf32>
    %30 = vector.broadcast %0 : vector<16x1xf32> to vector<16x4xf32>
    %31 = arith.mulf %29, %30 : vector<16x4xf32>
    %c0_33 = arith.constant 0 : index
    %c24 = arith.constant 24 : index
    %32 = vector.load %arg11[%c0_33, %c24] : memref<16x108xf32, #tpu.memory_space<vmem>>, vector<16x4xf32>
    tpu.vector_store %arg11[%c0_33, %c24], %31 {strides = array<i32>} : memref<16x108xf32, #tpu.memory_space<vmem>>, vector<16x4xf32>,
    %c0_34 = arith.constant 0 : index
    %c0_35 = arith.constant 0 : index
    %c12_36 = arith.constant 12 : index
    %c0_37 = arith.constant 0 : index
    %33 = vector.load %arg2[%c0_34, %c0_35, %c12_36, %c0_37] : memref<1x1x32x4xf32, #tpu.memory_space<vmem>>, vector<1x1x16x4xf32>
    %34 = vector.shape_cast %33 : vector<1x1x16x4xf32> to vector<16x4xf32>
    %c0_38 = arith.constant 0 : index
    %c28 = arith.constant 28 : index
    %35 = vector.load %arg11[%c0_38, %c28] : memref<16x108xf32, #tpu.memory_space<vmem>>, vector<16x4xf32>
    tpu.vector_store %arg11[%c0_38, %c28], %34 {strides = array<i32>} : memref<16x108xf32, #tpu.memory_space<vmem>>, vector<16x4xf32>,
    %c0_39 = arith.constant 0 : index
    %c0_40 = arith.constant 0 : index
    %c13 = arith.constant 13 : index
    %c0_41 = arith.constant 0 : index
    %36 = vector.load %arg2[%c0_39, %c0_40, %c13, %c0_41] : memref<1x1x32x4xf32, #tpu.memory_space<vmem>>, vector<1x1x16x4xf32>
    %37 = vector.shape_cast %36 : vector<1x1x16x4xf32> to vector<16x4xf32>
    %38 = vector.broadcast %1 : vector<16x1xf32> to vector<16x4xf32>
    %39 = arith.mulf %37, %38 : vector<16x4xf32>
    %c0_42 = arith.constant 0 : index
    %c32 = arith.constant 32 : index
    %40 = vector.load %arg11[%c0_42, %c32] : memref<16x108xf32, #tpu.memory_space<vmem>>, vector<16x4xf32>
    tpu.vector_store %arg11[%c0_42, %c32], %39 {strides = array<i32>} : memref<16x108xf32, #tpu.memory_space<vmem>>, vector<16x4xf32>,
    %c0_43 = arith.constant 0 : index
    %c0_44 = arith.constant 0 : index
    %c3_45 = arith.constant 3 : index
    %c0_46 = arith.constant 0 : index
    %41 = vector.load %arg3[%c0_43, %c0_44, %c3_45, %c0_46] : memref<1x1x32x4xf32, #tpu.memory_space<vmem>>, vector<1x1x16x4xf32>
    %42 = vector.shape_cast %41 : vector<1x1x16x4xf32> to vector<16x4xf32>
    %43 = vector.broadcast %0 : vector<16x1xf32> to vector<16x4xf32>
    %44 = arith.mulf %42, %43 : vector<16x4xf32>
    %c0_47 = arith.constant 0 : index
    %c36 = arith.constant 36 : index
    %45 = vector.load %arg11[%c0_47, %c36] : memref<16x108xf32, #tpu.memory_space<vmem>>, vector<16x4xf32>
    tpu.vector_store %arg11[%c0_47, %c36], %44 {strides = array<i32>} : memref<16x108xf32, #tpu.memory_space<vmem>>, vector<16x4xf32>,
    %c0_48 = arith.constant 0 : index
    %c0_49 = arith.constant 0 : index
    %c4_50 = arith.constant 4 : index
    %c0_51 = arith.constant 0 : index
    %46 = vector.load %arg3[%c0_48, %c0_49, %c4_50, %c0_51] : memref<1x1x32x4xf32, #tpu.memory_space<vmem>>, vector<1x1x16x4xf32>
    %47 = vector.shape_cast %46 : vector<1x1x16x4xf32> to vector<16x4xf32>
    %c0_52 = arith.constant 0 : index
    %c40 = arith.constant 40 : index
    %48 = vector.load %arg11[%c0_52, %c40] : memref<16x108xf32, #tpu.memory_space<vmem>>, vector<16x4xf32>
    tpu.vector_store %arg11[%c0_52, %c40], %47 {strides = array<i32>} : memref<16x108xf32, #tpu.memory_space<vmem>>, vector<16x4xf32>,
    %c0_53 = arith.constant 0 : index
    %c0_54 = arith.constant 0 : index
    %c5_55 = arith.constant 5 : index
    %c0_56 = arith.constant 0 : index
    %49 = vector.load %arg3[%c0_53, %c0_54, %c5_55, %c0_56] : memref<1x1x32x4xf32, #tpu.memory_space<vmem>>, vector<1x1x16x4xf32>
    %50 = vector.shape_cast %49 : vector<1x1x16x4xf32> to vector<16x4xf32>
    %51 = vector.broadcast %1 : vector<16x1xf32> to vector<16x4xf32>
    %52 = arith.mulf %50, %51 : vector<16x4xf32>
    %c0_57 = arith.constant 0 : index
    %c44 = arith.constant 44 : index
    %53 = vector.load %arg11[%c0_57, %c44] : memref<16x108xf32, #tpu.memory_space<vmem>>, vector<16x4xf32>
    tpu.vector_store %arg11[%c0_57, %c44], %52 {strides = array<i32>} : memref<16x108xf32, #tpu.memory_space<vmem>>, vector<16x4xf32>,
    %c0_58 = arith.constant 0 : index
    %c0_59 = arith.constant 0 : index
    %c7_60 = arith.constant 7 : index
    %c0_61 = arith.constant 0 : index
    %54 = vector.load %arg3[%c0_58, %c0_59, %c7_60, %c0_61] : memref<1x1x32x4xf32, #tpu.memory_space<vmem>>, vector<1x1x16x4xf32>
    %55 = vector.shape_cast %54 : vector<1x1x16x4xf32> to vector<16x4xf32>
    %56 = vector.broadcast %0 : vector<16x1xf32> to vector<16x4xf32>
    %57 = arith.mulf %55, %56 : vector<16x4xf32>
    %c0_62 = arith.constant 0 : index
    %c48 = arith.constant 48 : index
    %58 = vector.load %arg11[%c0_62, %c48] : memref<16x108xf32, #tpu.memory_space<vmem>>, vector<16x4xf32>
    tpu.vector_store %arg11[%c0_62, %c48], %57 {strides = array<i32>} : memref<16x108xf32, #tpu.memory_space<vmem>>, vector<16x4xf32>,
    %c0_63 = arith.constant 0 : index
    %c0_64 = arith.constant 0 : index
    %c8_65 = arith.constant 8 : index
    %c0_66 = arith.constant 0 : index
    %59 = vector.load %arg3[%c0_63, %c0_64, %c8_65, %c0_66] : memref<1x1x32x4xf32, #tpu.memory_space<vmem>>, vector<1x1x16x4xf32>
    %60 = vector.shape_cast %59 : vector<1x1x16x4xf32> to vector<16x4xf32>
    %c0_67 = arith.constant 0 : index
    %c52 = arith.constant 52 : index
    %61 = vector.load %arg11[%c0_67, %c52] : memref<16x108xf32, #tpu.memory_space<vmem>>, vector<16x4xf32>
    tpu.vector_store %arg11[%c0_67, %c52], %60 {strides = array<i32>} : memref<16x108xf32, #tpu.memory_space<vmem>>, vector<16x4xf32>,
    %c0_68 = arith.constant 0 : index
    %c0_69 = arith.constant 0 : index
    %c9_70 = arith.constant 9 : index
    %c0_71 = arith.constant 0 : index
    %62 = vector.load %arg3[%c0_68, %c0_69, %c9_70, %c0_71] : memref<1x1x32x4xf32, #tpu.memory_space<vmem>>, vector<1x1x16x4xf32>
    %63 = vector.shape_cast %62 : vector<1x1x16x4xf32> to vector<16x4xf32>
    %64 = vector.broadcast %1 : vector<16x1xf32> to vector<16x4xf32>
    %65 = arith.mulf %63, %64 : vector<16x4xf32>
    %c0_72 = arith.constant 0 : index
    %c56 = arith.constant 56 : index
    %66 = vector.load %arg11[%c0_72, %c56] : memref<16x108xf32, #tpu.memory_space<vmem>>, vector<16x4xf32>
    tpu.vector_store %arg11[%c0_72, %c56], %65 {strides = array<i32>} : memref<16x108xf32, #tpu.memory_space<vmem>>, vector<16x4xf32>,
    %c0_73 = arith.constant 0 : index
    %c0_74 = arith.constant 0 : index
    %c11_75 = arith.constant 11 : index
    %c0_76 = arith.constant 0 : index
    %67 = vector.load %arg3[%c0_73, %c0_74, %c11_75, %c0_76] : memref<1x1x32x4xf32, #tpu.memory_space<vmem>>, vector<1x1x16x4xf32>
    %68 = vector.shape_cast %67 : vector<1x1x16x4xf32> to vector<16x4xf32>
    %69 = vector.broadcast %0 : vector<16x1xf32> to vector<16x4xf32>
    %70 = arith.mulf %68, %69 : vector<16x4xf32>
    %c0_77 = arith.constant 0 : index
    %c60 = arith.constant 60 : index
    %71 = vector.load %arg11[%c0_77, %c60] : memref<16x108xf32, #tpu.memory_space<vmem>>, vector<16x4xf32>
    tpu.vector_store %arg11[%c0_77, %c60], %70 {strides = array<i32>} : memref<16x108xf32, #tpu.memory_space<vmem>>, vector<16x4xf32>,
    %c0_78 = arith.constant 0 : index
    %c0_79 = arith.constant 0 : index
    %c12_80 = arith.constant 12 : index
    %c0_81 = arith.constant 0 : index
    %72 = vector.load %arg3[%c0_78, %c0_79, %c12_80, %c0_81] : memref<1x1x32x4xf32, #tpu.memory_space<vmem>>, vector<1x1x16x4xf32>
    %73 = vector.shape_cast %72 : vector<1x1x16x4xf32> to vector<16x4xf32>
    %c0_82 = arith.constant 0 : index
    %c64 = arith.constant 64 : index
    %74 = vector.load %arg11[%c0_82, %c64] : memref<16x108xf32, #tpu.memory_space<vmem>>, vector<16x4xf32>
    tpu.vector_store %arg11[%c0_82, %c64], %73 {strides = array<i32>} : memref<16x108xf32, #tpu.memory_space<vmem>>, vector<16x4xf32>,
    %c0_83 = arith.constant 0 : index
    %c0_84 = arith.constant 0 : index
    %c13_85 = arith.constant 13 : index
    %c0_86 = arith.constant 0 : index
    %75 = vector.load %arg3[%c0_83, %c0_84, %c13_85, %c0_86] : memref<1x1x32x4xf32, #tpu.memory_space<vmem>>, vector<1x1x16x4xf32>
    %76 = vector.shape_cast %75 : vector<1x1x16x4xf32> to vector<16x4xf32>
    %77 = vector.broadcast %1 : vector<16x1xf32> to vector<16x4xf32>
    %78 = arith.mulf %76, %77 : vector<16x4xf32>
    %c0_87 = arith.constant 0 : index
    %c68 = arith.constant 68 : index
    %79 = vector.load %arg11[%c0_87, %c68] : memref<16x108xf32, #tpu.memory_space<vmem>>, vector<16x4xf32>
    tpu.vector_store %arg11[%c0_87, %c68], %78 {strides = array<i32>} : memref<16x108xf32, #tpu.memory_space<vmem>>, vector<16x4xf32>,
    %c0_88 = arith.constant 0 : index
    %c0_89 = arith.constant 0 : index
    %c3_90 = arith.constant 3 : index
    %c0_91 = arith.constant 0 : index
    %80 = vector.load %arg4[%c0_88, %c0_89, %c3_90, %c0_91] : memref<1x1x32x4xf32, #tpu.memory_space<vmem>>, vector<1x1x16x4xf32>
    %81 = vector.shape_cast %80 : vector<1x1x16x4xf32> to vector<16x4xf32>
    %82 = vector.broadcast %0 : vector<16x1xf32> to vector<16x4xf32>
    %83 = arith.mulf %81, %82 : vector<16x4xf32>
    %c0_92 = arith.constant 0 : index
    %c72 = arith.constant 72 : index
    %84 = vector.load %arg11[%c0_92, %c72] : memref<16x108xf32, #tpu.memory_space<vmem>>, vector<16x4xf32>
    tpu.vector_store %arg11[%c0_92, %c72], %83 {strides = array<i32>} : memref<16x108xf32, #tpu.memory_space<vmem>>, vector<16x4xf32>,
    %c0_93 = arith.constant 0 : index
    %c0_94 = arith.constant 0 : index
    %c4_95 = arith.constant 4 : index
    %c0_96 = arith.constant 0 : index
    %85 = vector.load %arg4[%c0_93, %c0_94, %c4_95, %c0_96] : memref<1x1x32x4xf32, #tpu.memory_space<vmem>>, vector<1x1x16x4xf32>
    %86 = vector.shape_cast %85 : vector<1x1x16x4xf32> to vector<16x4xf32>
    %c0_97 = arith.constant 0 : index
    %c76 = arith.constant 76 : index
    %87 = vector.load %arg11[%c0_97, %c76] : memref<16x108xf32, #tpu.memory_space<vmem>>, vector<16x4xf32>
    tpu.vector_store %arg11[%c0_97, %c76], %86 {strides = array<i32>} : memref<16x108xf32, #tpu.memory_space<vmem>>, vector<16x4xf32>,
    %c0_98 = arith.constant 0 : index
    %c0_99 = arith.constant 0 : index
    %c5_100 = arith.constant 5 : index
    %c0_101 = arith.constant 0 : index
    %88 = vector.load %arg4[%c0_98, %c0_99, %c5_100, %c0_101] : memref<1x1x32x4xf32, #tpu.memory_space<vmem>>, vector<1x1x16x4xf32>
    %89 = vector.shape_cast %88 : vector<1x1x16x4xf32> to vector<16x4xf32>
    %90 = vector.broadcast %1 : vector<16x1xf32> to vector<16x4xf32>
    %91 = arith.mulf %89, %90 : vector<16x4xf32>
    %c0_102 = arith.constant 0 : index
    %c80 = arith.constant 80 : index
    %92 = vector.load %arg11[%c0_102, %c80] : memref<16x108xf32, #tpu.memory_space<vmem>>, vector<16x4xf32>
    tpu.vector_store %arg11[%c0_102, %c80], %91 {strides = array<i32>} : memref<16x108xf32, #tpu.memory_space<vmem>>, vector<16x4xf32>,
    %c0_103 = arith.constant 0 : index
    %c0_104 = arith.constant 0 : index
    %c7_105 = arith.constant 7 : index
    %c0_106 = arith.constant 0 : index
    %93 = vector.load %arg4[%c0_103, %c0_104, %c7_105, %c0_106] : memref<1x1x32x4xf32, #tpu.memory_space<vmem>>, vector<1x1x16x4xf32>
    %94 = vector.shape_cast %93 : vector<1x1x16x4xf32> to vector<16x4xf32>
    %95 = vector.broadcast %0 : vector<16x1xf32> to vector<16x4xf32>
    %96 = arith.mulf %94, %95 : vector<16x4xf32>
    %c0_107 = arith.constant 0 : index
    %c84 = arith.constant 84 : index
    %97 = vector.load %arg11[%c0_107, %c84] : memref<16x108xf32, #tpu.memory_space<vmem>>, vector<16x4xf32>
    tpu.vector_store %arg11[%c0_107, %c84], %96 {strides = array<i32>} : memref<16x108xf32, #tpu.memory_space<vmem>>, vector<16x4xf32>,
    %c0_108 = arith.constant 0 : index
    %c0_109 = arith.constant 0 : index
    %c8_110 = arith.constant 8 : index
    %c0_111 = arith.constant 0 : index
    %98 = vector.load %arg4[%c0_108, %c0_109, %c8_110, %c0_111] : memref<1x1x32x4xf32, #tpu.memory_space<vmem>>, vector<1x1x16x4xf32>
    %99 = vector.shape_cast %98 : vector<1x1x16x4xf32> to vector<16x4xf32>
    %c0_112 = arith.constant 0 : index
    %c88 = arith.constant 88 : index
    %100 = vector.load %arg11[%c0_112, %c88] : memref<16x108xf32, #tpu.memory_space<vmem>>, vector<16x4xf32>
    tpu.vector_store %arg11[%c0_112, %c88], %99 {strides = array<i32>} : memref<16x108xf32, #tpu.memory_space<vmem>>, vector<16x4xf32>,
    %c0_113 = arith.constant 0 : index
    %c0_114 = arith.constant 0 : index
    %c9_115 = arith.constant 9 : index
    %c0_116 = arith.constant 0 : index
    %101 = vector.load %arg4[%c0_113, %c0_114, %c9_115, %c0_116] : memref<1x1x32x4xf32, #tpu.memory_space<vmem>>, vector<1x1x16x4xf32>
    %102 = vector.shape_cast %101 : vector<1x1x16x4xf32> to vector<16x4xf32>
    %103 = vector.broadcast %1 : vector<16x1xf32> to vector<16x4xf32>
    %104 = arith.mulf %102, %103 : vector<16x4xf32>
    %c0_117 = arith.constant 0 : index
    %c92 = arith.constant 92 : index
    %105 = vector.load %arg11[%c0_117, %c92] : memref<16x108xf32, #tpu.memory_space<vmem>>, vector<16x4xf32>
    tpu.vector_store %arg11[%c0_117, %c92], %104 {strides = array<i32>} : memref<16x108xf32, #tpu.memory_space<vmem>>, vector<16x4xf32>,
    %c0_118 = arith.constant 0 : index
    %c0_119 = arith.constant 0 : index
    %c11_120 = arith.constant 11 : index
    %c0_121 = arith.constant 0 : index
    %106 = vector.load %arg4[%c0_118, %c0_119, %c11_120, %c0_121] : memref<1x1x32x4xf32, #tpu.memory_space<vmem>>, vector<1x1x16x4xf32>
    %107 = vector.shape_cast %106 : vector<1x1x16x4xf32> to vector<16x4xf32>
    %108 = vector.broadcast %0 : vector<16x1xf32> to vector<16x4xf32>
    %109 = arith.mulf %107, %108 : vector<16x4xf32>
    %c0_122 = arith.constant 0 : index
    %c96 = arith.constant 96 : index
    %110 = vector.load %arg11[%c0_122, %c96] : memref<16x108xf32, #tpu.memory_space<vmem>>, vector<16x4xf32>
    tpu.vector_store %arg11[%c0_122, %c96], %109 {strides = array<i32>} : memref<16x108xf32, #tpu.memory_space<vmem>>, vector<16x4xf32>,
    %c0_123 = arith.constant 0 : index
    %c0_124 = arith.constant 0 : index
    %c12_125 = arith.constant 12 : index
    %c0_126 = arith.constant 0 : index
    %111 = vector.load %arg4[%c0_123, %c0_124, %c12_125, %c0_126] : memref<1x1x32x4xf32, #tpu.memory_space<vmem>>, vector<1x1x16x4xf32>
    %112 = vector.shape_cast %111 : vector<1x1x16x4xf32> to vector<16x4xf32>
    %c0_127 = arith.constant 0 : index
    %c100 = arith.constant 100 : index
    %113 = vector.load %arg11[%c0_127, %c100] : memref<16x108xf32, #tpu.memory_space<vmem>>, vector<16x4xf32>
    tpu.vector_store %arg11[%c0_127, %c100], %112 {strides = array<i32>} : memref<16x108xf32, #tpu.memory_space<vmem>>, vector<16x4xf32>,
    %c0_128 = arith.constant 0 : index
    %c0_129 = arith.constant 0 : index
    %c13_130 = arith.constant 13 : index
    %c0_131 = arith.constant 0 : index
    %114 = vector.load %arg4[%c0_128, %c0_129, %c13_130, %c0_131] : memref<1x1x32x4xf32, #tpu.memory_space<vmem>>, vector<1x1x16x4xf32>
    %115 = vector.shape_cast %114 : vector<1x1x16x4xf32> to vector<16x4xf32>
    %116 = vector.broadcast %1 : vector<16x1xf32> to vector<16x4xf32>
    %117 = arith.mulf %115, %116 : vector<16x4xf32>
    %c0_132 = arith.constant 0 : index
    %c104 = arith.constant 104 : index
    %118 = vector.load %arg11[%c0_132, %c104] : memref<16x108xf32, #tpu.memory_space<vmem>>, vector<16x4xf32>
    tpu.vector_store %arg11[%c0_132, %c104], %117 {strides = array<i32>} : memref<16x108xf32, #tpu.memory_space<vmem>>, vector<16x4xf32>,
    %c0_133 = arith.constant 0 : index
    %c0_134 = arith.constant 0 : index
    %119 = vector.load %arg11[%c0_133, %c0_134] : memref<16x108xf32, #tpu.memory_space<vmem>>, vector<16x108xf32>
    %c0_135 = arith.constant 0 : index
    %c0_136 = arith.constant 0 : index
    %120 = vector.load %arg5[%c0_135, %c0_136] : memref<108x8xf32, #tpu.memory_space<vmem>>, vector<108x8xf32>
    %cst = arith.constant dense<0.000000e+00> : vector<16x8xf32>
    %121 = tpu.matmul %119, %120, %cst {dimension_numbers = #tpu.dot_dimension_numbers<[1], [0], [0], [1], [0, 0, 1, 1], [], []>} : vector<16x108xf32>, vector<108x8xf32>, vector<16x8xf32> -> vector<16x8xf32>
    %c0_137 = arith.constant 0 : index
    %c0_138 = arith.constant 0 : index
    %122 = vector.load %arg6[%c0_137, %c0_138] : memref<1x8xf32, #tpu.memory_space<vmem>>, vector<1x8xf32>
    %123 = vector.broadcast %122 : vector<1x8xf32> to vector<16x8xf32>
    %124 = arith.addf %121, %123 : vector<16x8xf32>
    %c0_139 = arith.constant 0 : index
    %c0_140 = arith.constant 0 : index
    %c0_141 = arith.constant 0 : index
    %c0_142 = arith.constant 0 : index
    %125 = vector.load %arg9[%c0_139, %c0_140, %c0_141, %c0_142] : memref<1x1x16x8xf32, #tpu.memory_space<vmem>>, vector<1x1x16x8xf32>
    %126 = vector.shape_cast %125 : vector<1x1x16x8xf32> to vector<16x8xf32>
    %127 = vector.shape_cast %124 : vector<16x8xf32> to vector<1x1x16x8xf32>
    tpu.vector_store %arg9[%c0_139, %c0_140, %c0_141, %c0_142], %127 {strides = array<i32>} : memref<1x1x16x8xf32, #tpu.memory_space<vmem>>, vector<1x1x16x8xf32>,
    %cst_143 = arith.constant dense<0.000000e+00> : vector<8xf32>
    %128 = vector.multi_reduction <add>, %124, %cst_143 [0] : vector<16x8xf32> to vector<8xf32>
    %129 = vector.shape_cast %128 : vector<8xf32> to vector<1x8xf32>
    %c0_144 = arith.constant 0 : index
    %c0_145 = arith.constant 0 : index
    %c0_146 = arith.constant 0 : index
    %c0_147 = arith.constant 0 : index
    %130 = vector.load %arg10[%c0_144, %c0_145, %c0_146, %c0_147] : memref<1x1x2x8xf32, #tpu.memory_space<vmem>>, vector<1x1x1x8xf32>
    %131 = vector.shape_cast %130 : vector<1x1x1x8xf32> to vector<1x8xf32>
    %132 = vector.shape_cast %129 : vector<1x8xf32> to vector<1x1x1x8xf32>
    tpu.vector_store %arg10[%c0_144, %c0_145, %c0_146, %c0_147], %132 {strides = array<i32>} : memref<1x1x2x8xf32, #tpu.memory_space<vmem>>, vector<1x1x1x8xf32>,
    %133 = arith.mulf %124, %124 : vector<16x8xf32>
    %cst_148 = arith.constant dense<0.000000e+00> : vector<8xf32>
    %134 = vector.multi_reduction <add>, %133, %cst_148 [0] : vector<16x8xf32> to vector<8xf32>
    %135 = vector.shape_cast %134 : vector<8xf32> to vector<1x8xf32>
    %c0_149 = arith.constant 0 : index
    %c0_150 = arith.constant 0 : index
    %c1 = arith.constant 1 : index
    %c0_151 = arith.constant 0 : index
    %136 = vector.load %arg10[%c0_149, %c0_150, %c1, %c0_151] : memref<1x1x2x8xf32, #tpu.memory_space<vmem>>, vector<1x1x1x8xf32>
    %137 = vector.shape_cast %136 : vector<1x1x1x8xf32> to vector<1x8xf32>
    %138 = vector.shape_cast %135 : vector<1x8xf32> to vector<1x1x1x8xf32>
    tpu.vector_store %arg10[%c0_149, %c0_150, %c1, %c0_151], %138 {strides = array<i32>} : memref<1x1x2x8xf32, #tpu.memory_space<vmem>>, vector<1x1x1x8xf32>,
    return
  }
  func.func @transform_0(%arg0: i32, %arg1: i32) -> (i32, i32, i32, i32) {
    %c0_i32 = arith.constant 0 : i32
    %0 = arith.addi %arg1, %c0_i32 : i32
    %c0_i32_0 = arith.constant 0 : i32
    %c0_i32_1 = arith.constant 0 : i32
    %c0_i32_2 = arith.constant 0 : i32
    return %arg0, %0, %c0_i32_0, %c0_i32_1 : i32, i32, i32, i32
  }
  func.func @transform_1(%arg0: i32, %arg1: i32) -> (i32, i32, i32, i32) {
    %c1_i32 = arith.constant 1 : i32
    %0 = arith.addi %arg1, %c1_i32 : i32
    %c0_i32 = arith.constant 0 : i32
    %c0_i32_0 = arith.constant 0 : i32
    %c0_i32_1 = arith.constant 0 : i32
    return %arg0, %0, %c0_i32, %c0_i32_0 : i32, i32, i32, i32
  }
  func.func @transform_2(%arg0: i32, %arg1: i32) -> (i32, i32, i32, i32) {
    %c2_i32 = arith.constant 2 : i32
    %0 = arith.addi %arg1, %c2_i32 : i32
    %c0_i32 = arith.constant 0 : i32
    %c0_i32_0 = arith.constant 0 : i32
    %c0_i32_1 = arith.constant 0 : i32
    return %arg0, %0, %c0_i32, %c0_i32_0 : i32, i32, i32, i32
  }
  func.func @transform_3(%arg0: i32, %arg1: i32) -> (i32, i32) {
    %c0_i32 = arith.constant 0 : i32
    %c0_i32_0 = arith.constant 0 : i32
    %c0_i32_1 = arith.constant 0 : i32
    return %c0_i32, %c0_i32_0 : i32, i32
  }
  func.func @transform_4(%arg0: i32, %arg1: i32) -> (i32, i32) {
    %c0_i32 = arith.constant 0 : i32
    %c0_i32_0 = arith.constant 0 : i32
    %c0_i32_1 = arith.constant 0 : i32
    return %c0_i32, %c0_i32_0 : i32, i32
  }
  func.func @transform_5(%arg0: i32, %arg1: i32) -> (i32, i32) {
    %c0_i32 = arith.constant 0 : i32
    %c0_i32_0 = arith.constant 0 : i32
    %c0_i32_1 = arith.constant 0 : i32
    return %c0_i32, %c0_i32_0 : i32, i32
  }
  func.func @transform_6(%arg0: i32, %arg1: i32) -> (i32, i32) {
    %c0_i32 = arith.constant 0 : i32
    %c0_i32_0 = arith.constant 0 : i32
    %c0_i32_1 = arith.constant 0 : i32
    return %c0_i32, %c0_i32_0 : i32, i32
  }
  func.func @transform_7(%arg0: i32, %arg1: i32) -> (i32, i32, i32, i32) {
    %c0_i32 = arith.constant 0 : i32
    %c0_i32_0 = arith.constant 0 : i32
    %c0_i32_1 = arith.constant 0 : i32
    return %arg0, %arg1, %c0_i32, %c0_i32_0 : i32, i32, i32, i32
  }
  func.func @transform_8(%arg0: i32, %arg1: i32) -> (i32, i32, i32, i32) {
    %c0_i32 = arith.constant 0 : i32
    %c0_i32_0 = arith.constant 0 : i32
    %c0_i32_1 = arith.constant 0 : i32
    return %arg0, %arg1, %c0_i32, %c0_i32_0 : i32, i32, i32, i32
  }
}

module attributes {stable_mosaic.version = 11 : i64} {
  func.func @_bn_relu_kernel(%arg0: i32, %arg1: i32, %arg2: memref<1x1x16x8xf32, #tpu.memory_space<vmem>>, %arg3: memref<1x8xf32, #tpu.memory_space<vmem>>, %arg4: memref<1x8xf32, #tpu.memory_space<vmem>>, %arg5: memref<1x1x16x8xf32, #tpu.memory_space<vmem>>) attributes {dimension_semantics = [#tpu.dimension_semantics<parallel>, #tpu.dimension_semantics<parallel>], iteration_bounds = array<i64: 2, 4>, scalar_prefetch = 0 : i64, scratch_operands = 0 : i64, tpu.core_type = #tpu.core_type<tc>, window_params = [{transform_indices = @transform_0, window_bounds = array<i64: 1, 1, 16, 8>}, {pipeline_mode = #tpu.pipeline_mode<synchronous>, transform_indices = @transform_1, window_bounds = array<i64: 1, 8>}, {pipeline_mode = #tpu.pipeline_mode<synchronous>, transform_indices = @transform_2, window_bounds = array<i64: 1, 8>}, {transform_indices = @transform_3, window_bounds = array<i64: 1, 1, 16, 8>}]} {
    %c0 = arith.constant 0 : index
    %c0_0 = arith.constant 0 : index
    %c0_1 = arith.constant 0 : index
    %c0_2 = arith.constant 0 : index
    %0 = vector.load %arg2[%c0, %c0_0, %c0_1, %c0_2] : memref<1x1x16x8xf32, #tpu.memory_space<vmem>>, vector<1x1x16x8xf32>
    %1 = vector.shape_cast %0 : vector<1x1x16x8xf32> to vector<16x8xf32>
    %c0_3 = arith.constant 0 : index
    %c0_4 = arith.constant 0 : index
    %2 = vector.load %arg3[%c0_3, %c0_4] : memref<1x8xf32, #tpu.memory_space<vmem>>, vector<1x8xf32>
    %3 = vector.broadcast %2 : vector<1x8xf32> to vector<16x8xf32>
    %4 = arith.mulf %1, %3 : vector<16x8xf32>
    %c0_5 = arith.constant 0 : index
    %c0_6 = arith.constant 0 : index
    %5 = vector.load %arg4[%c0_5, %c0_6] : memref<1x8xf32, #tpu.memory_space<vmem>>, vector<1x8xf32>
    %6 = vector.broadcast %5 : vector<1x8xf32> to vector<16x8xf32>
    %7 = arith.addf %4, %6 : vector<16x8xf32>
    %cst = arith.constant 0.000000e+00 : f32
    %8 = vector.broadcast %cst : f32 to vector<16x8xf32>
    %9 = arith.maximumf %7, %8 : vector<16x8xf32>
    %c0_7 = arith.constant 0 : index
    %c0_8 = arith.constant 0 : index
    %c0_9 = arith.constant 0 : index
    %c0_10 = arith.constant 0 : index
    %10 = vector.load %arg5[%c0_7, %c0_8, %c0_9, %c0_10] : memref<1x1x16x8xf32, #tpu.memory_space<vmem>>, vector<1x1x16x8xf32>
    %11 = vector.shape_cast %10 : vector<1x1x16x8xf32> to vector<16x8xf32>
    %12 = vector.shape_cast %9 : vector<16x8xf32> to vector<1x1x16x8xf32>
    tpu.vector_store %arg5[%c0_7, %c0_8, %c0_9, %c0_10], %12 {strides = array<i32>} : memref<1x1x16x8xf32, #tpu.memory_space<vmem>>, vector<1x1x16x8xf32>,
    return
  }
  func.func @transform_0(%arg0: i32, %arg1: i32) -> (i32, i32, i32, i32) {
    %c0_i32 = arith.constant 0 : i32
    %c0_i32_0 = arith.constant 0 : i32
    %c0_i32_1 = arith.constant 0 : i32
    return %arg0, %arg1, %c0_i32, %c0_i32_0 : i32, i32, i32, i32
  }
  func.func @transform_1(%arg0: i32, %arg1: i32) -> (i32, i32) {
    %c0_i32 = arith.constant 0 : i32
    %c0_i32_0 = arith.constant 0 : i32
    %c0_i32_1 = arith.constant 0 : i32
    return %c0_i32, %c0_i32_0 : i32, i32
  }
  func.func @transform_2(%arg0: i32, %arg1: i32) -> (i32, i32) {
    %c0_i32 = arith.constant 0 : i32
    %c0_i32_0 = arith.constant 0 : i32
    %c0_i32_1 = arith.constant 0 : i32
    return %c0_i32, %c0_i32_0 : i32, i32
  }
  func.func @transform_3(%arg0: i32, %arg1: i32) -> (i32, i32, i32, i32) {
    %c0_i32 = arith.constant 0 : i32
    %c0_i32_0 = arith.constant 0 : i32
    %c0_i32_1 = arith.constant 0 : i32
    return %arg0, %arg1, %c0_i32, %c0_i32_0 : i32, i32, i32, i32
  }
}

module attributes {stable_mosaic.version = 11 : i64} {
  func.func @_bn_relu_kernel(%arg0: i32, %arg1: i32, %arg2: memref<1x1x16x8xf32, #tpu.memory_space<vmem>>, %arg3: memref<1x8xf32, #tpu.memory_space<vmem>>, %arg4: memref<1x8xf32, #tpu.memory_space<vmem>>, %arg5: memref<1x1x16x8xf32, #tpu.memory_space<vmem>>) attributes {dimension_semantics = [#tpu.dimension_semantics<parallel>, #tpu.dimension_semantics<parallel>], iteration_bounds = array<i64: 2, 4>, scalar_prefetch = 0 : i64, scratch_operands = 0 : i64, tpu.core_type = #tpu.core_type<tc>, window_params = [{transform_indices = @transform_0, window_bounds = array<i64: 1, 1, 16, 8>}, {pipeline_mode = #tpu.pipeline_mode<synchronous>, transform_indices = @transform_1, window_bounds = array<i64: 1, 8>}, {pipeline_mode = #tpu.pipeline_mode<synchronous>, transform_indices = @transform_2, window_bounds = array<i64: 1, 8>}, {transform_indices = @transform_3, window_bounds = array<i64: 1, 1, 16, 8>}]} {
    %c0 = arith.constant 0 : index
    %c0_0 = arith.constant 0 : index
    %c0_1 = arith.constant 0 : index
    %c0_2 = arith.constant 0 : index
    %0 = vector.load %arg2[%c0, %c0_0, %c0_1, %c0_2] : memref<1x1x16x8xf32, #tpu.memory_space<vmem>>, vector<1x1x16x8xf32>
    %1 = vector.shape_cast %0 : vector<1x1x16x8xf32> to vector<16x8xf32>
    %c0_3 = arith.constant 0 : index
    %c0_4 = arith.constant 0 : index
    %2 = vector.load %arg3[%c0_3, %c0_4] : memref<1x8xf32, #tpu.memory_space<vmem>>, vector<1x8xf32>
    %3 = vector.broadcast %2 : vector<1x8xf32> to vector<16x8xf32>
    %4 = arith.mulf %1, %3 : vector<16x8xf32>
    %c0_5 = arith.constant 0 : index
    %c0_6 = arith.constant 0 : index
    %5 = vector.load %arg4[%c0_5, %c0_6] : memref<1x8xf32, #tpu.memory_space<vmem>>, vector<1x8xf32>
    %6 = vector.broadcast %5 : vector<1x8xf32> to vector<16x8xf32>
    %7 = arith.addf %4, %6 : vector<16x8xf32>
    %cst = arith.constant 0.000000e+00 : f32
    %8 = vector.broadcast %cst : f32 to vector<16x8xf32>
    %9 = arith.maximumf %7, %8 : vector<16x8xf32>
    %c0_7 = arith.constant 0 : index
    %c0_8 = arith.constant 0 : index
    %c0_9 = arith.constant 0 : index
    %c0_10 = arith.constant 0 : index
    %10 = vector.load %arg5[%c0_7, %c0_8, %c0_9, %c0_10] : memref<1x1x16x8xf32, #tpu.memory_space<vmem>>, vector<1x1x16x8xf32>
    %11 = vector.shape_cast %10 : vector<1x1x16x8xf32> to vector<16x8xf32>
    %12 = vector.shape_cast %9 : vector<16x8xf32> to vector<1x1x16x8xf32>
    tpu.vector_store %arg5[%c0_7, %c0_8, %c0_9, %c0_10], %12 {strides = array<i32>} : memref<1x1x16x8xf32, #tpu.memory_space<vmem>>, vector<1x1x16x8xf32>,
    return
  }
  func.func @transform_0(%arg0: i32, %arg1: i32) -> (i32, i32, i32, i32) {
    %c0_i32 = arith.constant 0 : i32
    %c0_i32_0 = arith.constant 0 : i32
    %c0_i32_1 = arith.constant 0 : i32
    return %arg0, %arg1, %c0_i32, %c0_i32_0 : i32, i32, i32, i32
  }
  func.func @transform_1(%arg0: i32, %arg1: i32) -> (i32, i32) {
    %c0_i32 = arith.constant 0 : i32
    %c0_i32_0 = arith.constant 0 : i32
    %c0_i32_1 = arith.constant 0 : i32
    return %c0_i32, %c0_i32_0 : i32, i32
  }
  func.func @transform_2(%arg0: i32, %arg1: i32) -> (i32, i32) {
    %c0_i32 = arith.constant 0 : i32
    %c0_i32_0 = arith.constant 0 : i32
    %c0_i32_1 = arith.constant 0 : i32
    return %c0_i32, %c0_i32_0 : i32, i32
  }
  func.func @transform_3(%arg0: i32, %arg1: i32) -> (i32, i32, i32, i32) {
    %c0_i32 = arith.constant 0 : i32
    %c0_i32_0 = arith.constant 0 : i32
    %c0_i32_1 = arith.constant 0 : i32
    return %arg0, %arg1, %c0_i32, %c0_i32_0 : i32, i32, i32, i32
  }
}

module attributes {stable_mosaic.version = 11 : i64} {
  func.func @_conv_stats_kernel(%arg0: i32, %arg1: i32, %arg2: memref<1x1x32x8xf32, #tpu.memory_space<vmem>>, %arg3: memref<1x1x32x8xf32, #tpu.memory_space<vmem>>, %arg4: memref<1x1x32x8xf32, #tpu.memory_space<vmem>>, %arg5: memref<216x8xf32, #tpu.memory_space<vmem>>, %arg6: memref<1x8xf32, #tpu.memory_space<vmem>>, %arg7: memref<16x1xf32, #tpu.memory_space<vmem>>, %arg8: memref<16x1xf32, #tpu.memory_space<vmem>>, %arg9: memref<1x1x16x8xf32, #tpu.memory_space<vmem>>, %arg10: memref<1x1x2x8xf32, #tpu.memory_space<vmem>>, %arg11: memref<16x216xf32, #tpu.memory_space<vmem>>) attributes {dimension_semantics = [#tpu.dimension_semantics<parallel>, #tpu.dimension_semantics<parallel>], iteration_bounds = array<i64: 2, 4>, scalar_prefetch = 0 : i64, scratch_operands = 1 : i64, tpu.core_type = #tpu.core_type<tc>, window_params = [{transform_indices = @transform_0, window_bounds = array<i64: 1, 1, 32, 8>}, {transform_indices = @transform_1, window_bounds = array<i64: 1, 1, 32, 8>}, {transform_indices = @transform_2, window_bounds = array<i64: 1, 1, 32, 8>}, {pipeline_mode = #tpu.pipeline_mode<synchronous>, transform_indices = @transform_3, window_bounds = array<i64: 216, 8>}, {pipeline_mode = #tpu.pipeline_mode<synchronous>, transform_indices = @transform_4, window_bounds = array<i64: 1, 8>}, {pipeline_mode = #tpu.pipeline_mode<synchronous>, transform_indices = @transform_5, window_bounds = array<i64: 16, 1>}, {pipeline_mode = #tpu.pipeline_mode<synchronous>, transform_indices = @transform_6, window_bounds = array<i64: 16, 1>}, {transform_indices = @transform_7, window_bounds = array<i64: 1, 1, 16, 8>}, {transform_indices = @transform_8, window_bounds = array<i64: 1, 1, 2, 8>}]} {
    %c0 = arith.constant 0 : index
    %c0_0 = arith.constant 0 : index
    %0 = vector.load %arg7[%c0, %c0_0] : memref<16x1xf32, #tpu.memory_space<vmem>>, vector<16x1xf32>
    %c0_1 = arith.constant 0 : index
    %c0_2 = arith.constant 0 : index
    %1 = vector.load %arg8[%c0_1, %c0_2] : memref<16x1xf32, #tpu.memory_space<vmem>>, vector<16x1xf32>
    %c0_3 = arith.constant 0 : index
    %c0_4 = arith.constant 0 : index
    %c3 = arith.constant 3 : index
    %c0_5 = arith.constant 0 : index
    %2 = vector.load %arg2[%c0_3, %c0_4, %c3, %c0_5] : memref<1x1x32x8xf32, #tpu.memory_space<vmem>>, vector<1x1x16x8xf32>
    %3 = vector.shape_cast %2 : vector<1x1x16x8xf32> to vector<16x8xf32>
    %4 = vector.broadcast %0 : vector<16x1xf32> to vector<16x8xf32>
    %5 = arith.mulf %3, %4 : vector<16x8xf32>
    %c0_6 = arith.constant 0 : index
    %c0_7 = arith.constant 0 : index
    %6 = vector.load %arg11[%c0_6, %c0_7] : memref<16x216xf32, #tpu.memory_space<vmem>>, vector<16x8xf32>
    tpu.vector_store %arg11[%c0_6, %c0_7], %5 {strides = array<i32>} : memref<16x216xf32, #tpu.memory_space<vmem>>, vector<16x8xf32>,
    %c0_8 = arith.constant 0 : index
    %c0_9 = arith.constant 0 : index
    %c4 = arith.constant 4 : index
    %c0_10 = arith.constant 0 : index
    %7 = vector.load %arg2[%c0_8, %c0_9, %c4, %c0_10] : memref<1x1x32x8xf32, #tpu.memory_space<vmem>>, vector<1x1x16x8xf32>
    %8 = vector.shape_cast %7 : vector<1x1x16x8xf32> to vector<16x8xf32>
    %c0_11 = arith.constant 0 : index
    %c8 = arith.constant 8 : index
    %9 = vector.load %arg11[%c0_11, %c8] : memref<16x216xf32, #tpu.memory_space<vmem>>, vector<16x8xf32>
    tpu.vector_store %arg11[%c0_11, %c8], %8 {strides = array<i32>} : memref<16x216xf32, #tpu.memory_space<vmem>>, vector<16x8xf32>,
    %c0_12 = arith.constant 0 : index
    %c0_13 = arith.constant 0 : index
    %c5 = arith.constant 5 : index
    %c0_14 = arith.constant 0 : index
    %10 = vector.load %arg2[%c0_12, %c0_13, %c5, %c0_14] : memref<1x1x32x8xf32, #tpu.memory_space<vmem>>, vector<1x1x16x8xf32>
    %11 = vector.shape_cast %10 : vector<1x1x16x8xf32> to vector<16x8xf32>
    %12 = vector.broadcast %1 : vector<16x1xf32> to vector<16x8xf32>
    %13 = arith.mulf %11, %12 : vector<16x8xf32>
    %c0_15 = arith.constant 0 : index
    %c16 = arith.constant 16 : index
    %14 = vector.load %arg11[%c0_15, %c16] : memref<16x216xf32, #tpu.memory_space<vmem>>, vector<16x8xf32>
    tpu.vector_store %arg11[%c0_15, %c16], %13 {strides = array<i32>} : memref<16x216xf32, #tpu.memory_space<vmem>>, vector<16x8xf32>,
    %c0_16 = arith.constant 0 : index
    %c0_17 = arith.constant 0 : index
    %c7 = arith.constant 7 : index
    %c0_18 = arith.constant 0 : index
    %15 = vector.load %arg2[%c0_16, %c0_17, %c7, %c0_18] : memref<1x1x32x8xf32, #tpu.memory_space<vmem>>, vector<1x1x16x8xf32>
    %16 = vector.shape_cast %15 : vector<1x1x16x8xf32> to vector<16x8xf32>
    %17 = vector.broadcast %0 : vector<16x1xf32> to vector<16x8xf32>
    %18 = arith.mulf %16, %17 : vector<16x8xf32>
    %c0_19 = arith.constant 0 : index
    %c24 = arith.constant 24 : index
    %19 = vector.load %arg11[%c0_19, %c24] : memref<16x216xf32, #tpu.memory_space<vmem>>, vector<16x8xf32>
    tpu.vector_store %arg11[%c0_19, %c24], %18 {strides = array<i32>} : memref<16x216xf32, #tpu.memory_space<vmem>>, vector<16x8xf32>,
    %c0_20 = arith.constant 0 : index
    %c0_21 = arith.constant 0 : index
    %c8_22 = arith.constant 8 : index
    %c0_23 = arith.constant 0 : index
    %20 = vector.load %arg2[%c0_20, %c0_21, %c8_22, %c0_23] : memref<1x1x32x8xf32, #tpu.memory_space<vmem>>, vector<1x1x16x8xf32>
    %21 = vector.shape_cast %20 : vector<1x1x16x8xf32> to vector<16x8xf32>
    %c0_24 = arith.constant 0 : index
    %c32 = arith.constant 32 : index
    %22 = vector.load %arg11[%c0_24, %c32] : memref<16x216xf32, #tpu.memory_space<vmem>>, vector<16x8xf32>
    tpu.vector_store %arg11[%c0_24, %c32], %21 {strides = array<i32>} : memref<16x216xf32, #tpu.memory_space<vmem>>, vector<16x8xf32>,
    %c0_25 = arith.constant 0 : index
    %c0_26 = arith.constant 0 : index
    %c9 = arith.constant 9 : index
    %c0_27 = arith.constant 0 : index
    %23 = vector.load %arg2[%c0_25, %c0_26, %c9, %c0_27] : memref<1x1x32x8xf32, #tpu.memory_space<vmem>>, vector<1x1x16x8xf32>
    %24 = vector.shape_cast %23 : vector<1x1x16x8xf32> to vector<16x8xf32>
    %25 = vector.broadcast %1 : vector<16x1xf32> to vector<16x8xf32>
    %26 = arith.mulf %24, %25 : vector<16x8xf32>
    %c0_28 = arith.constant 0 : index
    %c40 = arith.constant 40 : index
    %27 = vector.load %arg11[%c0_28, %c40] : memref<16x216xf32, #tpu.memory_space<vmem>>, vector<16x8xf32>
    tpu.vector_store %arg11[%c0_28, %c40], %26 {strides = array<i32>} : memref<16x216xf32, #tpu.memory_space<vmem>>, vector<16x8xf32>,
    %c0_29 = arith.constant 0 : index
    %c0_30 = arith.constant 0 : index
    %c11 = arith.constant 11 : index
    %c0_31 = arith.constant 0 : index
    %28 = vector.load %arg2[%c0_29, %c0_30, %c11, %c0_31] : memref<1x1x32x8xf32, #tpu.memory_space<vmem>>, vector<1x1x16x8xf32>
    %29 = vector.shape_cast %28 : vector<1x1x16x8xf32> to vector<16x8xf32>
    %30 = vector.broadcast %0 : vector<16x1xf32> to vector<16x8xf32>
    %31 = arith.mulf %29, %30 : vector<16x8xf32>
    %c0_32 = arith.constant 0 : index
    %c48 = arith.constant 48 : index
    %32 = vector.load %arg11[%c0_32, %c48] : memref<16x216xf32, #tpu.memory_space<vmem>>, vector<16x8xf32>
    tpu.vector_store %arg11[%c0_32, %c48], %31 {strides = array<i32>} : memref<16x216xf32, #tpu.memory_space<vmem>>, vector<16x8xf32>,
    %c0_33 = arith.constant 0 : index
    %c0_34 = arith.constant 0 : index
    %c12 = arith.constant 12 : index
    %c0_35 = arith.constant 0 : index
    %33 = vector.load %arg2[%c0_33, %c0_34, %c12, %c0_35] : memref<1x1x32x8xf32, #tpu.memory_space<vmem>>, vector<1x1x16x8xf32>
    %34 = vector.shape_cast %33 : vector<1x1x16x8xf32> to vector<16x8xf32>
    %c0_36 = arith.constant 0 : index
    %c56 = arith.constant 56 : index
    %35 = vector.load %arg11[%c0_36, %c56] : memref<16x216xf32, #tpu.memory_space<vmem>>, vector<16x8xf32>
    tpu.vector_store %arg11[%c0_36, %c56], %34 {strides = array<i32>} : memref<16x216xf32, #tpu.memory_space<vmem>>, vector<16x8xf32>,
    %c0_37 = arith.constant 0 : index
    %c0_38 = arith.constant 0 : index
    %c13 = arith.constant 13 : index
    %c0_39 = arith.constant 0 : index
    %36 = vector.load %arg2[%c0_37, %c0_38, %c13, %c0_39] : memref<1x1x32x8xf32, #tpu.memory_space<vmem>>, vector<1x1x16x8xf32>
    %37 = vector.shape_cast %36 : vector<1x1x16x8xf32> to vector<16x8xf32>
    %38 = vector.broadcast %1 : vector<16x1xf32> to vector<16x8xf32>
    %39 = arith.mulf %37, %38 : vector<16x8xf32>
    %c0_40 = arith.constant 0 : index
    %c64 = arith.constant 64 : index
    %40 = vector.load %arg11[%c0_40, %c64] : memref<16x216xf32, #tpu.memory_space<vmem>>, vector<16x8xf32>
    tpu.vector_store %arg11[%c0_40, %c64], %39 {strides = array<i32>} : memref<16x216xf32, #tpu.memory_space<vmem>>, vector<16x8xf32>,
    %c0_41 = arith.constant 0 : index
    %c0_42 = arith.constant 0 : index
    %c3_43 = arith.constant 3 : index
    %c0_44 = arith.constant 0 : index
    %41 = vector.load %arg3[%c0_41, %c0_42, %c3_43, %c0_44] : memref<1x1x32x8xf32, #tpu.memory_space<vmem>>, vector<1x1x16x8xf32>
    %42 = vector.shape_cast %41 : vector<1x1x16x8xf32> to vector<16x8xf32>
    %43 = vector.broadcast %0 : vector<16x1xf32> to vector<16x8xf32>
    %44 = arith.mulf %42, %43 : vector<16x8xf32>
    %c0_45 = arith.constant 0 : index
    %c72 = arith.constant 72 : index
    %45 = vector.load %arg11[%c0_45, %c72] : memref<16x216xf32, #tpu.memory_space<vmem>>, vector<16x8xf32>
    tpu.vector_store %arg11[%c0_45, %c72], %44 {strides = array<i32>} : memref<16x216xf32, #tpu.memory_space<vmem>>, vector<16x8xf32>,
    %c0_46 = arith.constant 0 : index
    %c0_47 = arith.constant 0 : index
    %c4_48 = arith.constant 4 : index
    %c0_49 = arith.constant 0 : index
    %46 = vector.load %arg3[%c0_46, %c0_47, %c4_48, %c0_49] : memref<1x1x32x8xf32, #tpu.memory_space<vmem>>, vector<1x1x16x8xf32>
    %47 = vector.shape_cast %46 : vector<1x1x16x8xf32> to vector<16x8xf32>
    %c0_50 = arith.constant 0 : index
    %c80 = arith.constant 80 : index
    %48 = vector.load %arg11[%c0_50, %c80] : memref<16x216xf32, #tpu.memory_space<vmem>>, vector<16x8xf32>
    tpu.vector_store %arg11[%c0_50, %c80], %47 {strides = array<i32>} : memref<16x216xf32, #tpu.memory_space<vmem>>, vector<16x8xf32>,
    %c0_51 = arith.constant 0 : index
    %c0_52 = arith.constant 0 : index
    %c5_53 = arith.constant 5 : index
    %c0_54 = arith.constant 0 : index
    %49 = vector.load %arg3[%c0_51, %c0_52, %c5_53, %c0_54] : memref<1x1x32x8xf32, #tpu.memory_space<vmem>>, vector<1x1x16x8xf32>
    %50 = vector.shape_cast %49 : vector<1x1x16x8xf32> to vector<16x8xf32>
    %51 = vector.broadcast %1 : vector<16x1xf32> to vector<16x8xf32>
    %52 = arith.mulf %50, %51 : vector<16x8xf32>
    %c0_55 = arith.constant 0 : index
    %c88 = arith.constant 88 : index
    %53 = vector.load %arg11[%c0_55, %c88] : memref<16x216xf32, #tpu.memory_space<vmem>>, vector<16x8xf32>
    tpu.vector_store %arg11[%c0_55, %c88], %52 {strides = array<i32>} : memref<16x216xf32, #tpu.memory_space<vmem>>, vector<16x8xf32>,
    %c0_56 = arith.constant 0 : index
    %c0_57 = arith.constant 0 : index
    %c7_58 = arith.constant 7 : index
    %c0_59 = arith.constant 0 : index
    %54 = vector.load %arg3[%c0_56, %c0_57, %c7_58, %c0_59] : memref<1x1x32x8xf32, #tpu.memory_space<vmem>>, vector<1x1x16x8xf32>
    %55 = vector.shape_cast %54 : vector<1x1x16x8xf32> to vector<16x8xf32>
    %56 = vector.broadcast %0 : vector<16x1xf32> to vector<16x8xf32>
    %57 = arith.mulf %55, %56 : vector<16x8xf32>
    %c0_60 = arith.constant 0 : index
    %c96 = arith.constant 96 : index
    %58 = vector.load %arg11[%c0_60, %c96] : memref<16x216xf32, #tpu.memory_space<vmem>>, vector<16x8xf32>
    tpu.vector_store %arg11[%c0_60, %c96], %57 {strides = array<i32>} : memref<16x216xf32, #tpu.memory_space<vmem>>, vector<16x8xf32>,
    %c0_61 = arith.constant 0 : index
    %c0_62 = arith.constant 0 : index
    %c8_63 = arith.constant 8 : index
    %c0_64 = arith.constant 0 : index
    %59 = vector.load %arg3[%c0_61, %c0_62, %c8_63, %c0_64] : memref<1x1x32x8xf32, #tpu.memory_space<vmem>>, vector<1x1x16x8xf32>
    %60 = vector.shape_cast %59 : vector<1x1x16x8xf32> to vector<16x8xf32>
    %c0_65 = arith.constant 0 : index
    %c104 = arith.constant 104 : index
    %61 = vector.load %arg11[%c0_65, %c104] : memref<16x216xf32, #tpu.memory_space<vmem>>, vector<16x8xf32>
    tpu.vector_store %arg11[%c0_65, %c104], %60 {strides = array<i32>} : memref<16x216xf32, #tpu.memory_space<vmem>>, vector<16x8xf32>,
    %c0_66 = arith.constant 0 : index
    %c0_67 = arith.constant 0 : index
    %c9_68 = arith.constant 9 : index
    %c0_69 = arith.constant 0 : index
    %62 = vector.load %arg3[%c0_66, %c0_67, %c9_68, %c0_69] : memref<1x1x32x8xf32, #tpu.memory_space<vmem>>, vector<1x1x16x8xf32>
    %63 = vector.shape_cast %62 : vector<1x1x16x8xf32> to vector<16x8xf32>
    %64 = vector.broadcast %1 : vector<16x1xf32> to vector<16x8xf32>
    %65 = arith.mulf %63, %64 : vector<16x8xf32>
    %c0_70 = arith.constant 0 : index
    %c112 = arith.constant 112 : index
    %66 = vector.load %arg11[%c0_70, %c112] : memref<16x216xf32, #tpu.memory_space<vmem>>, vector<16x8xf32>
    tpu.vector_store %arg11[%c0_70, %c112], %65 {strides = array<i32>} : memref<16x216xf32, #tpu.memory_space<vmem>>, vector<16x8xf32>,
    %c0_71 = arith.constant 0 : index
    %c0_72 = arith.constant 0 : index
    %c11_73 = arith.constant 11 : index
    %c0_74 = arith.constant 0 : index
    %67 = vector.load %arg3[%c0_71, %c0_72, %c11_73, %c0_74] : memref<1x1x32x8xf32, #tpu.memory_space<vmem>>, vector<1x1x16x8xf32>
    %68 = vector.shape_cast %67 : vector<1x1x16x8xf32> to vector<16x8xf32>
    %69 = vector.broadcast %0 : vector<16x1xf32> to vector<16x8xf32>
    %70 = arith.mulf %68, %69 : vector<16x8xf32>
    %c0_75 = arith.constant 0 : index
    %c120 = arith.constant 120 : index
    %71 = vector.load %arg11[%c0_75, %c120] : memref<16x216xf32, #tpu.memory_space<vmem>>, vector<16x8xf32>
    tpu.vector_store %arg11[%c0_75, %c120], %70 {strides = array<i32>} : memref<16x216xf32, #tpu.memory_space<vmem>>, vector<16x8xf32>,
    %c0_76 = arith.constant 0 : index
    %c0_77 = arith.constant 0 : index
    %c12_78 = arith.constant 12 : index
    %c0_79 = arith.constant 0 : index
    %72 = vector.load %arg3[%c0_76, %c0_77, %c12_78, %c0_79] : memref<1x1x32x8xf32, #tpu.memory_space<vmem>>, vector<1x1x16x8xf32>
    %73 = vector.shape_cast %72 : vector<1x1x16x8xf32> to vector<16x8xf32>
    %c0_80 = arith.constant 0 : index
    %c128 = arith.constant 128 : index
    %74 = vector.load %arg11[%c0_80, %c128] : memref<16x216xf32, #tpu.memory_space<vmem>>, vector<16x8xf32>
    tpu.vector_store %arg11[%c0_80, %c128], %73 {strides = array<i32>} : memref<16x216xf32, #tpu.memory_space<vmem>>, vector<16x8xf32>,
    %c0_81 = arith.constant 0 : index
    %c0_82 = arith.constant 0 : index
    %c13_83 = arith.constant 13 : index
    %c0_84 = arith.constant 0 : index
    %75 = vector.load %arg3[%c0_81, %c0_82, %c13_83, %c0_84] : memref<1x1x32x8xf32, #tpu.memory_space<vmem>>, vector<1x1x16x8xf32>
    %76 = vector.shape_cast %75 : vector<1x1x16x8xf32> to vector<16x8xf32>
    %77 = vector.broadcast %1 : vector<16x1xf32> to vector<16x8xf32>
    %78 = arith.mulf %76, %77 : vector<16x8xf32>
    %c0_85 = arith.constant 0 : index
    %c136 = arith.constant 136 : index
    %79 = vector.load %arg11[%c0_85, %c136] : memref<16x216xf32, #tpu.memory_space<vmem>>, vector<16x8xf32>
    tpu.vector_store %arg11[%c0_85, %c136], %78 {strides = array<i32>} : memref<16x216xf32, #tpu.memory_space<vmem>>, vector<16x8xf32>,
    %c0_86 = arith.constant 0 : index
    %c0_87 = arith.constant 0 : index
    %c3_88 = arith.constant 3 : index
    %c0_89 = arith.constant 0 : index
    %80 = vector.load %arg4[%c0_86, %c0_87, %c3_88, %c0_89] : memref<1x1x32x8xf32, #tpu.memory_space<vmem>>, vector<1x1x16x8xf32>
    %81 = vector.shape_cast %80 : vector<1x1x16x8xf32> to vector<16x8xf32>
    %82 = vector.broadcast %0 : vector<16x1xf32> to vector<16x8xf32>
    %83 = arith.mulf %81, %82 : vector<16x8xf32>
    %c0_90 = arith.constant 0 : index
    %c144 = arith.constant 144 : index
    %84 = vector.load %arg11[%c0_90, %c144] : memref<16x216xf32, #tpu.memory_space<vmem>>, vector<16x8xf32>
    tpu.vector_store %arg11[%c0_90, %c144], %83 {strides = array<i32>} : memref<16x216xf32, #tpu.memory_space<vmem>>, vector<16x8xf32>,
    %c0_91 = arith.constant 0 : index
    %c0_92 = arith.constant 0 : index
    %c4_93 = arith.constant 4 : index
    %c0_94 = arith.constant 0 : index
    %85 = vector.load %arg4[%c0_91, %c0_92, %c4_93, %c0_94] : memref<1x1x32x8xf32, #tpu.memory_space<vmem>>, vector<1x1x16x8xf32>
    %86 = vector.shape_cast %85 : vector<1x1x16x8xf32> to vector<16x8xf32>
    %c0_95 = arith.constant 0 : index
    %c152 = arith.constant 152 : index
    %87 = vector.load %arg11[%c0_95, %c152] : memref<16x216xf32, #tpu.memory_space<vmem>>, vector<16x8xf32>
    tpu.vector_store %arg11[%c0_95, %c152], %86 {strides = array<i32>} : memref<16x216xf32, #tpu.memory_space<vmem>>, vector<16x8xf32>,
    %c0_96 = arith.constant 0 : index
    %c0_97 = arith.constant 0 : index
    %c5_98 = arith.constant 5 : index
    %c0_99 = arith.constant 0 : index
    %88 = vector.load %arg4[%c0_96, %c0_97, %c5_98, %c0_99] : memref<1x1x32x8xf32, #tpu.memory_space<vmem>>, vector<1x1x16x8xf32>
    %89 = vector.shape_cast %88 : vector<1x1x16x8xf32> to vector<16x8xf32>
    %90 = vector.broadcast %1 : vector<16x1xf32> to vector<16x8xf32>
    %91 = arith.mulf %89, %90 : vector<16x8xf32>
    %c0_100 = arith.constant 0 : index
    %c160 = arith.constant 160 : index
    %92 = vector.load %arg11[%c0_100, %c160] : memref<16x216xf32, #tpu.memory_space<vmem>>, vector<16x8xf32>
    tpu.vector_store %arg11[%c0_100, %c160], %91 {strides = array<i32>} : memref<16x216xf32, #tpu.memory_space<vmem>>, vector<16x8xf32>,
    %c0_101 = arith.constant 0 : index
    %c0_102 = arith.constant 0 : index
    %c7_103 = arith.constant 7 : index
    %c0_104 = arith.constant 0 : index
    %93 = vector.load %arg4[%c0_101, %c0_102, %c7_103, %c0_104] : memref<1x1x32x8xf32, #tpu.memory_space<vmem>>, vector<1x1x16x8xf32>
    %94 = vector.shape_cast %93 : vector<1x1x16x8xf32> to vector<16x8xf32>
    %95 = vector.broadcast %0 : vector<16x1xf32> to vector<16x8xf32>
    %96 = arith.mulf %94, %95 : vector<16x8xf32>
    %c0_105 = arith.constant 0 : index
    %c168 = arith.constant 168 : index
    %97 = vector.load %arg11[%c0_105, %c168] : memref<16x216xf32, #tpu.memory_space<vmem>>, vector<16x8xf32>
    tpu.vector_store %arg11[%c0_105, %c168], %96 {strides = array<i32>} : memref<16x216xf32, #tpu.memory_space<vmem>>, vector<16x8xf32>,
    %c0_106 = arith.constant 0 : index
    %c0_107 = arith.constant 0 : index
    %c8_108 = arith.constant 8 : index
    %c0_109 = arith.constant 0 : index
    %98 = vector.load %arg4[%c0_106, %c0_107, %c8_108, %c0_109] : memref<1x1x32x8xf32, #tpu.memory_space<vmem>>, vector<1x1x16x8xf32>
    %99 = vector.shape_cast %98 : vector<1x1x16x8xf32> to vector<16x8xf32>
    %c0_110 = arith.constant 0 : index
    %c176 = arith.constant 176 : index
    %100 = vector.load %arg11[%c0_110, %c176] : memref<16x216xf32, #tpu.memory_space<vmem>>, vector<16x8xf32>
    tpu.vector_store %arg11[%c0_110, %c176], %99 {strides = array<i32>} : memref<16x216xf32, #tpu.memory_space<vmem>>, vector<16x8xf32>,
    %c0_111 = arith.constant 0 : index
    %c0_112 = arith.constant 0 : index
    %c9_113 = arith.constant 9 : index
    %c0_114 = arith.constant 0 : index
    %101 = vector.load %arg4[%c0_111, %c0_112, %c9_113, %c0_114] : memref<1x1x32x8xf32, #tpu.memory_space<vmem>>, vector<1x1x16x8xf32>
    %102 = vector.shape_cast %101 : vector<1x1x16x8xf32> to vector<16x8xf32>
    %103 = vector.broadcast %1 : vector<16x1xf32> to vector<16x8xf32>
    %104 = arith.mulf %102, %103 : vector<16x8xf32>
    %c0_115 = arith.constant 0 : index
    %c184 = arith.constant 184 : index
    %105 = vector.load %arg11[%c0_115, %c184] : memref<16x216xf32, #tpu.memory_space<vmem>>, vector<16x8xf32>
    tpu.vector_store %arg11[%c0_115, %c184], %104 {strides = array<i32>} : memref<16x216xf32, #tpu.memory_space<vmem>>, vector<16x8xf32>,
    %c0_116 = arith.constant 0 : index
    %c0_117 = arith.constant 0 : index
    %c11_118 = arith.constant 11 : index
    %c0_119 = arith.constant 0 : index
    %106 = vector.load %arg4[%c0_116, %c0_117, %c11_118, %c0_119] : memref<1x1x32x8xf32, #tpu.memory_space<vmem>>, vector<1x1x16x8xf32>
    %107 = vector.shape_cast %106 : vector<1x1x16x8xf32> to vector<16x8xf32>
    %108 = vector.broadcast %0 : vector<16x1xf32> to vector<16x8xf32>
    %109 = arith.mulf %107, %108 : vector<16x8xf32>
    %c0_120 = arith.constant 0 : index
    %c192 = arith.constant 192 : index
    %110 = vector.load %arg11[%c0_120, %c192] : memref<16x216xf32, #tpu.memory_space<vmem>>, vector<16x8xf32>
    tpu.vector_store %arg11[%c0_120, %c192], %109 {strides = array<i32>} : memref<16x216xf32, #tpu.memory_space<vmem>>, vector<16x8xf32>,
    %c0_121 = arith.constant 0 : index
    %c0_122 = arith.constant 0 : index
    %c12_123 = arith.constant 12 : index
    %c0_124 = arith.constant 0 : index
    %111 = vector.load %arg4[%c0_121, %c0_122, %c12_123, %c0_124] : memref<1x1x32x8xf32, #tpu.memory_space<vmem>>, vector<1x1x16x8xf32>
    %112 = vector.shape_cast %111 : vector<1x1x16x8xf32> to vector<16x8xf32>
    %c0_125 = arith.constant 0 : index
    %c200 = arith.constant 200 : index
    %113 = vector.load %arg11[%c0_125, %c200] : memref<16x216xf32, #tpu.memory_space<vmem>>, vector<16x8xf32>
    tpu.vector_store %arg11[%c0_125, %c200], %112 {strides = array<i32>} : memref<16x216xf32, #tpu.memory_space<vmem>>, vector<16x8xf32>,
    %c0_126 = arith.constant 0 : index
    %c0_127 = arith.constant 0 : index
    %c13_128 = arith.constant 13 : index
    %c0_129 = arith.constant 0 : index
    %114 = vector.load %arg4[%c0_126, %c0_127, %c13_128, %c0_129] : memref<1x1x32x8xf32, #tpu.memory_space<vmem>>, vector<1x1x16x8xf32>
    %115 = vector.shape_cast %114 : vector<1x1x16x8xf32> to vector<16x8xf32>
    %116 = vector.broadcast %1 : vector<16x1xf32> to vector<16x8xf32>
    %117 = arith.mulf %115, %116 : vector<16x8xf32>
    %c0_130 = arith.constant 0 : index
    %c208 = arith.constant 208 : index
    %118 = vector.load %arg11[%c0_130, %c208] : memref<16x216xf32, #tpu.memory_space<vmem>>, vector<16x8xf32>
    tpu.vector_store %arg11[%c0_130, %c208], %117 {strides = array<i32>} : memref<16x216xf32, #tpu.memory_space<vmem>>, vector<16x8xf32>,
    %c0_131 = arith.constant 0 : index
    %c0_132 = arith.constant 0 : index
    %119 = vector.load %arg11[%c0_131, %c0_132] : memref<16x216xf32, #tpu.memory_space<vmem>>, vector<16x216xf32>
    %c0_133 = arith.constant 0 : index
    %c0_134 = arith.constant 0 : index
    %120 = vector.load %arg5[%c0_133, %c0_134] : memref<216x8xf32, #tpu.memory_space<vmem>>, vector<216x8xf32>
    %cst = arith.constant dense<0.000000e+00> : vector<16x8xf32>
    %121 = tpu.matmul %119, %120, %cst {dimension_numbers = #tpu.dot_dimension_numbers<[1], [0], [0], [1], [0, 0, 1, 1], [], []>} : vector<16x216xf32>, vector<216x8xf32>, vector<16x8xf32> -> vector<16x8xf32>
    %c0_135 = arith.constant 0 : index
    %c0_136 = arith.constant 0 : index
    %122 = vector.load %arg6[%c0_135, %c0_136] : memref<1x8xf32, #tpu.memory_space<vmem>>, vector<1x8xf32>
    %123 = vector.broadcast %122 : vector<1x8xf32> to vector<16x8xf32>
    %124 = arith.addf %121, %123 : vector<16x8xf32>
    %c0_137 = arith.constant 0 : index
    %c0_138 = arith.constant 0 : index
    %c0_139 = arith.constant 0 : index
    %c0_140 = arith.constant 0 : index
    %125 = vector.load %arg9[%c0_137, %c0_138, %c0_139, %c0_140] : memref<1x1x16x8xf32, #tpu.memory_space<vmem>>, vector<1x1x16x8xf32>
    %126 = vector.shape_cast %125 : vector<1x1x16x8xf32> to vector<16x8xf32>
    %127 = vector.shape_cast %124 : vector<16x8xf32> to vector<1x1x16x8xf32>
    tpu.vector_store %arg9[%c0_137, %c0_138, %c0_139, %c0_140], %127 {strides = array<i32>} : memref<1x1x16x8xf32, #tpu.memory_space<vmem>>, vector<1x1x16x8xf32>,
    %cst_141 = arith.constant dense<0.000000e+00> : vector<8xf32>
    %128 = vector.multi_reduction <add>, %124, %cst_141 [0] : vector<16x8xf32> to vector<8xf32>
    %129 = vector.shape_cast %128 : vector<8xf32> to vector<1x8xf32>
    %c0_142 = arith.constant 0 : index
    %c0_143 = arith.constant 0 : index
    %c0_144 = arith.constant 0 : index
    %c0_145 = arith.constant 0 : index
    %130 = vector.load %arg10[%c0_142, %c0_143, %c0_144, %c0_145] : memref<1x1x2x8xf32, #tpu.memory_space<vmem>>, vector<1x1x1x8xf32>
    %131 = vector.shape_cast %130 : vector<1x1x1x8xf32> to vector<1x8xf32>
    %132 = vector.shape_cast %129 : vector<1x8xf32> to vector<1x1x1x8xf32>
    tpu.vector_store %arg10[%c0_142, %c0_143, %c0_144, %c0_145], %132 {strides = array<i32>} : memref<1x1x2x8xf32, #tpu.memory_space<vmem>>, vector<1x1x1x8xf32>,
    %133 = arith.mulf %124, %124 : vector<16x8xf32>
    %cst_146 = arith.constant dense<0.000000e+00> : vector<8xf32>
    %134 = vector.multi_reduction <add>, %133, %cst_146 [0] : vector<16x8xf32> to vector<8xf32>
    %135 = vector.shape_cast %134 : vector<8xf32> to vector<1x8xf32>
    %c0_147 = arith.constant 0 : index
    %c0_148 = arith.constant 0 : index
    %c1 = arith.constant 1 : index
    %c0_149 = arith.constant 0 : index
    %136 = vector.load %arg10[%c0_147, %c0_148, %c1, %c0_149] : memref<1x1x2x8xf32, #tpu.memory_space<vmem>>, vector<1x1x1x8xf32>
    %137 = vector.shape_cast %136 : vector<1x1x1x8xf32> to vector<1x8xf32>
    %138 = vector.shape_cast %135 : vector<1x8xf32> to vector<1x1x1x8xf32>
    tpu.vector_store %arg10[%c0_147, %c0_148, %c1, %c0_149], %138 {strides = array<i32>} : memref<1x1x2x8xf32, #tpu.memory_space<vmem>>, vector<1x1x1x8xf32>,
    return
  }
  func.func @transform_0(%arg0: i32, %arg1: i32) -> (i32, i32, i32, i32) {
    %c0_i32 = arith.constant 0 : i32
    %0 = arith.addi %arg1, %c0_i32 : i32
    %c0_i32_0 = arith.constant 0 : i32
    %c0_i32_1 = arith.constant 0 : i32
    %c0_i32_2 = arith.constant 0 : i32
    return %arg0, %0, %c0_i32_0, %c0_i32_1 : i32, i32, i32, i32
  }
  func.func @transform_1(%arg0: i32, %arg1: i32) -> (i32, i32, i32, i32) {
    %c1_i32 = arith.constant 1 : i32
    %0 = arith.addi %arg1, %c1_i32 : i32
    %c0_i32 = arith.constant 0 : i32
    %c0_i32_0 = arith.constant 0 : i32
    %c0_i32_1 = arith.constant 0 : i32
    return %arg0, %0, %c0_i32, %c0_i32_0 : i32, i32, i32, i32
  }
  func.func @transform_2(%arg0: i32, %arg1: i32) -> (i32, i32, i32, i32) {
    %c2_i32 = arith.constant 2 : i32
    %0 = arith.addi %arg1, %c2_i32 : i32
    %c0_i32 = arith.constant 0 : i32
    %c0_i32_0 = arith.constant 0 : i32
    %c0_i32_1 = arith.constant 0 : i32
    return %arg0, %0, %c0_i32, %c0_i32_0 : i32, i32, i32, i32
  }
  func.func @transform_3(%arg0: i32, %arg1: i32) -> (i32, i32) {
    %c0_i32 = arith.constant 0 : i32
    %c0_i32_0 = arith.constant 0 : i32
    %c0_i32_1 = arith.constant 0 : i32
    return %c0_i32, %c0_i32_0 : i32, i32
  }
  func.func @transform_4(%arg0: i32, %arg1: i32) -> (i32, i32) {
    %c0_i32 = arith.constant 0 : i32
    %c0_i32_0 = arith.constant 0 : i32
    %c0_i32_1 = arith.constant 0 : i32
    return %c0_i32, %c0_i32_0 : i32, i32
  }
  func.func @transform_5(%arg0: i32, %arg1: i32) -> (i32, i32) {
    %c0_i32 = arith.constant 0 : i32
    %c0_i32_0 = arith.constant 0 : i32
    %c0_i32_1 = arith.constant 0 : i32
    return %c0_i32, %c0_i32_0 : i32, i32
  }
  func.func @transform_6(%arg0: i32, %arg1: i32) -> (i32, i32) {
    %c0_i32 = arith.constant 0 : i32
    %c0_i32_0 = arith.constant 0 : i32
    %c0_i32_1 = arith.constant 0 : i32
    return %c0_i32, %c0_i32_0 : i32, i32
  }
  func.func @transform_7(%arg0: i32, %arg1: i32) -> (i32, i32, i32, i32) {
    %c0_i32 = arith.constant 0 : i32
    %c0_i32_0 = arith.constant 0 : i32
    %c0_i32_1 = arith.constant 0 : i32
    return %arg0, %arg1, %c0_i32, %c0_i32_0 : i32, i32, i32, i32
  }
  func.func @transform_8(%arg0: i32, %arg1: i32) -> (i32, i32, i32, i32) {
    %c0_i32 = arith.constant 0 : i32
    %c0_i32_0 = arith.constant 0 : i32
    %c0_i32_1 = arith.constant 0 : i32
    return %arg0, %arg1, %c0_i32, %c0_i32_0 : i32, i32, i32, i32
  }
}

</mosaic_0001>

<llo_original>
// kernel: down3d_forward.5
$region0: #{down3d_forward.5}
  #allocation0 [shape = 'u32[]', space=smem, size = 0x4, offset = 0x4, fixed_abs, tag = 'smem constant byte address 0x4 - core index']
  #allocation1 [shape = 'u32[144,128]{1,0:T(1,128)}', space=vmem, size = 0x12000, scoped, tag = 'internal scratch']
  %s0 = inlined_call_operand.vmem [shape: f32[2,4,16,8], index: 0, kind: input, shape index: {}]
  %s1 = inlined_call_operand.vmem [shape: f32[1,8], index: 1, kind: input, shape index: {}]
  %s2 = inlined_call_operand.vmem [shape: f32[1,8], index: 2, kind: input, shape index: {}]
  %s3 = inlined_call_operand.vmem [shape: f32[2,4,16,8], index: 3, kind: output, shape index: {}]
  %s4 = sld [smem:[#allocation0]]
  $region45: #{down3d_forward.5} parent=0
    _
  %s6 = ssub.s32 1, %s4
  %s7 = scalar_select 0, %s6, %s4
  loop: start=0, step=1, limit=10
  $region2: #{down3d_forward.5} parent=0 // loop_pre_header
    _
  $region3: #{down3d_forward.5} parent=0 // loop_header
    %s9 = sphi 0, %s13
    %p10 = scmp.ge.s32.totalorder %s9, 10
    %s16 = sphi 0, %s28
    %s17 = sphi 0, %s24
    %s18 = sphi 0, %s16
    %s19 = sphi 0, %s17
    %s20 = sphi 0, %s18
    %s21 = sphi 0, %s19
    %s33 = sphi 0, %s35
    %s36 = sphi 0, %s33
    %s37 = sphi 0, %s36
    %s53 = sphi 0, %s37
    %s57 = sphi 0, %s57
    %s59 = sphi 0, %s57
    %s60 = sphi 0, %s59
    %s74 = sphi 0, %s60
    %s78 = sphi 0, %s78
    %s80 = sphi 0, %s78
    %s81 = sphi 0, %s80
    %s95 = sphi 0, %s81
    %s103 = sphi 0, %s105
    %s106 = sphi 0, %s103
    %s107 = sphi 0, %s106
    %s123 = sphi 0, %s107
  $region4: #{down3d_forward.5} parent=0 // loop_header_branch
    %12 = sbr.rel (%p10) target = $region8
  $region5: #{down3d_forward.5} parent=0 // loop_body
    %s14 = ssub.s32 %s9, 1
    %s15 = ssub.s32 %s9, 2
    %s22 = sadd.s32 1, %s17
    %p23 = scmp.ge.s32.totalorder %s22, 4
    %s24 = scalar_select %p23, 0, %s22
    %s25 = sadd.s32 1, %s16
    %s26 = scalar_select %p23, %s25, %s16
    %p27 = scmp.ge.s32.totalorder %s26, 2
    %s28 = scalar_select %p27, 0, %s26
    %s29 = ssub.s32 %s16, %s28
    %s30 = ssub.s32 %s17, %s24
    %s31 = sor.u32 %s29, %s30
    %p32 = scmp.eq.s32.totalorder %s31, 0
    %s34 = sadd.s32 %s33, 1
    %s35 = scalar_select %p32, %s33, %s34
    %p38 = pneg %p32
    %p39 = scmp.eq.s32.totalorder %s9, 7
    %p40 = por %p38, %p39
    %p41 = scmp.ne.s32.totalorder %s33, %s36
    %p42 = scmp.eq.s32.totalorder %s9, 0
    %p43 = por %p41, %p42
    %p44 = scmp.ne.s32.totalorder %s33, %s36
    %p45 = scmp.eq.s32.totalorder %s14, 7
    %p46 = por %p44, %p45
    %p47 = scmp.ne.s32.totalorder %s36, %s37
    %p48 = scmp.eq.s32.totalorder %s14, 0
    %p49 = por %p47, %p48
    %p50 = scmp.ne.s32.totalorder %s36, %s37
    %p51 = scmp.eq.s32.totalorder %s15, 7
    %p52 = por %p50, %p51
    %p54 = scmp.ne.s32.totalorder %s37, %s53
    %p55 = scmp.eq.s32.totalorder %s15, 0
    %p56 = por %p54, %p55
    %s58 = sadd.s32 %s57, 1
    %p61 = scmp.eq.s32.totalorder %s9, 7
    %p62 = scmp.ne.s32.totalorder %s57, %s59
    %p63 = scmp.eq.s32.totalorder %s9, 0
    %p64 = por %p62, %p63
    %p65 = scmp.ne.s32.totalorder %s57, %s59
    %p66 = scmp.eq.s32.totalorder %s14, 7
    %p67 = por %p65, %p66
    %p68 = scmp.ne.s32.totalorder %s59, %s60
    %p69 = scmp.eq.s32.totalorder %s14, 0
    %p70 = por %p68, %p69
    %p71 = scmp.ne.s32.totalorder %s59, %s60
    %p72 = scmp.eq.s32.totalorder %s15, 7
    %p73 = por %p71, %p72
    %p75 = scmp.ne.s32.totalorder %s60, %s74
    %p76 = scmp.eq.s32.totalorder %s15, 0
    %p77 = por %p75, %p76
    %s79 = sadd.s32 %s78, 1
    %p82 = scmp.eq.s32.totalorder %s9, 7
    %p83 = scmp.ne.s32.totalorder %s78, %s80
    %p84 = scmp.eq.s32.totalorder %s9, 0
    %p85 = por %p83, %p84
    %p86 = scmp.ne.s32.totalorder %s78, %s80
    %p87 = scmp.eq.s32.totalorder %s14, 7
    %p88 = por %p86, %p87
    %p89 = scmp.ne.s32.totalorder %s80, %s81
    %p90 = scmp.eq.s32.totalorder %s14, 0
    %p91 = por %p89, %p90
    %p92 = scmp.ne.s32.totalorder %s80, %s81
    %p93 = scmp.eq.s32.totalorder %s15, 7
    %p94 = por %p92, %p93
    %p96 = scmp.ne.s32.totalorder %s81, %s95
    %p97 = scmp.eq.s32.totalorder %s15, 0
    %p98 = por %p96, %p97
    %s99 = ssub.s32 %s16, %s28
    %s100 = ssub.s32 %s17, %s24
    %s101 = sor.u32 %s99, %s100
    %p102 = scmp.eq.s32.totalorder %s101, 0
    %s104 = sadd.s32 %s103, 1
    %s105 = scalar_select %p102, %s103, %s104
    %p108 = pneg %p102
    %p109 = scmp.eq.s32.totalorder %s9, 7
    %p110 = por %p108, %p109
    %p111 = scmp.ne.s32.totalorder %s103, %s106
    %p112 = scmp.eq.s32.totalorder %s9, 0
    %p113 = por %p111, %p112
    %p114 = scmp.ne.s32.totalorder %s103, %s106
    %p115 = scmp.eq.s32.totalorder %s14, 7
    %p116 = por %p114, %p115
    %p117 = scmp.ne.s32.totalorder %s106, %s107
    %p118 = scmp.eq.s32.totalorder %s14, 0
    %p119 = por %p117, %p118
    %p120 = scmp.ne.s32.totalorder %s106, %s107
    %p121 = scmp.eq.s32.totalorder %s15, 7
    %p122 = por %p120, %p121
    %p124 = scmp.ne.s32.totalorder %s107, %s123
    %p125 = scmp.eq.s32.totalorder %s15, 0
    %p126 = por %p124, %p125
    %p127 = scmp.le.s32.totalorder 1, %s9
    %p128 = scmp.lt.s32.totalorder %s9, 9
    %p129 = pnand %p127, %p128
    %p130 = pneg %p129
    // Predicated region
    $region9: #{down3d_forward.5} parent=5 // pred_check
      _
    $region10: #{down3d_forward.5} parent=5 // pred_check_branch
      %132 = sbr.rel (%p129) target = $region12
    $region11: #{down3d_forward.5} parent=5 // pred_region
      %s133 = ssub.s32 %s9, 1
      // Predicated region
      $region13: #{down3d_forward.5} parent=11 // pred_check
        %p134 = pneg %p70
      $region14: #{down3d_forward.5} parent=11 // pred_check_branch
        %136 = sbr.rel (%p134) target = $region16
      $region15: #{down3d_forward.5} parent=11 // pred_region
        _
      $region16: #{down3d_forward.5} parent=11 // pred_fallthru
        _
      // Predicated region
      $region17: #{down3d_forward.5} parent=11 // pred_check
        %p137 = pneg %p91
      $region18: #{down3d_forward.5} parent=11 // pred_check_branch
        %139 = sbr.rel (%p137) target = $region20
      $region19: #{down3d_forward.5} parent=11 // pred_region
        _
      $region20: #{down3d_forward.5} parent=11 // pred_fallthru
        _
    $region12: #{down3d_forward.5} parent=5 // pred_fallthru
      _
    %p140 = scmp.lt.s32.totalorder %s9, 8
    // Predicated region
    $region21: #{down3d_forward.5} parent=5 // pred_check
      %p141 = pneg %p140
    $region22: #{down3d_forward.5} parent=5 // pred_check_branch
      %143 = sbr.rel (%p141) target = $region24
    $region23: #{down3d_forward.5} parent=5 // pred_region
      // Predicated region
      $region25: #{down3d_forward.5} parent=23 // pred_check
        %p144 = pneg %p43
      $region26: #{down3d_forward.5} parent=23 // pred_check_branch
        %146 = sbr.rel (%p144) target = $region28
      $region27: #{down3d_forward.5} parent=23 // pred_region
        %p147 = scmp.lt.s32.totalorder %s16, 1
        %s148 = scalar_select %p147, %s16, 1
        %p149 = scmp.lt.s32.totalorder %s17, 3
        %s150 = scalar_select %p149, %s17, 3
        %s151 = smul.addr %s150, 2
        %s152 = smul.addr %s148, 8
        %s153 = sadd.s32 %s151, %s152
        %s154 = smul.addr %s153, 8
        %s155 = scalar_lea.vmem %s0, %s154
      $region28: #{down3d_forward.5} parent=23 // pred_fallthru
        _
    $region24: #{down3d_forward.5} parent=5 // pred_fallthru
      _
    %p156 = scmp.le.s32.totalorder 1, %s9
    %p157 = scmp.lt.s32.totalorder %s9, 9
    %p158 = pnand %p156, %p157
    %p159 = pneg %p158
    // Predicated region
    $region29: #{down3d_forward.5} parent=5 // pred_check
      _
    $region30: #{down3d_forward.5} parent=5 // pred_check_branch
      %161 = sbr.rel (%p158) target = $region32
    $region31: #{down3d_forward.5} parent=5 // pred_region
      %s162 = ssub.s32 %s9, 1
      %p163 = scmp.lt.s32.totalorder %s18, 1
      %s164 = scalar_select %p163, %s18, 1
      %p165 = scmp.lt.s32.totalorder %s19, 3
      %s166 = scalar_select %p165, %s19, 3
      %s167 = smul.addr %s166, 2
      %s168 = smul.addr %s164, 8
      %s169 = sadd.s32 %s167, %s168
      %s170 = smul.addr %s169, 8
      %s171 = scalar_lea.vmem %s0, %s170
      %p172 = pneg %p49
      %p173 = pneg %p46
      %p174 = pneg %p70
      %p175 = pneg %p67
      %p176 = pneg %p91
      %p177 = pneg %p88
      %p178 = pneg %p119
      %p179 = pneg %p116
      %p180 = scmp.lt.s32.totalorder %s18, 1
      %s181 = scalar_select %p180, %s18, 1
      %p182 = scmp.lt.s32.totalorder %s19, 3
      %s183 = scalar_select %p182, %s19, 3
      %s184 = smul.addr %s183, 2
      %s185 = smul.addr %s181, 8
      %s186 = sadd.s32 %s184, %s185
      %s187 = smul.addr %s186, 8
      %s188 = scalar_lea.vmem %s3, %s187
      %p189 = scmp.lt.s32.totalorder %s18, 1
      %s190 = scalar_select %p189, %s18, 1
      %p191 = scmp.lt.s32.totalorder %s19, 3
      %s192 = scalar_select %p191, %s19, 3
      %s193 = smul.addr %s192, 2
      %s194 = smul.addr %s190, 8
      %s195 = sadd.s32 %s193, %s194
      %s196 = smul.addr %s195, 8
      %s197 = scalar_lea.vmem %s0, %s196
      %p198 = scmp.lt.s32.totalorder %s18, 1
      %s199 = scalar_select %p198, %s18, 1
      %p200 = scmp.lt.s32.totalorder %s19, 3
      %s201 = scalar_select %p200, %s19, 3
      %s202 = smul.addr %s201, 2
      %s203 = smul.addr %s199, 8
      %s204 = sadd.s32 %s202, %s203
      %s205 = smul.addr %s204, 8
      %s206 = scalar_lea.vmem %s3, %s205
      %v207 = vld [vmem:[%s197] sm:$0xff]
      %v208 = vld [vmem:[%s197 + $0x8] sm:$0xff]
      %v209 = vld [vmem:[%s1] sm:$0x1]
      %v211 = vlaneseq
      %v212 = vshrl.u32 %v211, 7
      %v213 = vsub.s32 0, %v212
      %v214 = vrot.slane %v209, %v213
      %v216 = vmul.f32 %v207, %v214
      %v217 = vmul.f32 %v208, %v214
      %v218 = vld [vmem:[%s2] sm:$0x1]
      %v220 = vlaneseq
      %v221 = vshrl.u32 %v220, 7
      %v222 = vsub.s32 0, %v221
      %v223 = vrot.slane %v218, %v222
      %v225 = vadd.f32 %v216, %v223
      %v226 = vadd.f32 %v217, %v223
      %v227 = vmax.f32 %v225, 0.0
      %v228 = vmax.f32 %v226, 0.0
      %vm229 = vcmask 64512
      %230 = vst.msk [vmem:[%s206] sm:$0xff] %vm229, %v227
      %231 = vst.msk [vmem:[%s206 + $0x8] sm:$0xff] %vm229, %v228
      %p232 = scmp.lt.s32.totalorder %s18, 1
      %s233 = scalar_select %p232, %s18, 1
      %p234 = scmp.lt.s32.totalorder %s19, 3
      %s235 = scalar_select %p234, %s19, 3
      %s236 = smul.addr %s235, 2
      %s237 = smul.addr %s233, 8
      %s238 = sadd.s32 %s236, %s237
      %s239 = smul.addr %s238, 8
      %s240 = scalar_lea.vmem %s3, %s239
      // Predicated region
      $region33: #{down3d_forward.5} parent=31 // pred_check
        %p241 = pneg %p116
      $region34: #{down3d_forward.5} parent=31 // pred_check_branch
        %243 = sbr.rel (%p241) target = $region36
      $region35: #{down3d_forward.5} parent=31 // pred_region
        _
      $region36: #{down3d_forward.5} parent=31 // pred_fallthru
        _
    $region32: #{down3d_forward.5} parent=5 // pred_fallthru
      _
    %p244 = scmp.le.s32.totalorder 2, %s9
    // Predicated region
    $region37: #{down3d_forward.5} parent=5 // pred_check
      %p245 = pneg %p244
    $region38: #{down3d_forward.5} parent=5 // pred_check_branch
      %247 = sbr.rel (%p245) target = $region40
    $region39: #{down3d_forward.5} parent=5 // pred_region
      %s248 = ssub.s32 %s9, 2
      // Predicated region
      $region41: #{down3d_forward.5} parent=39 // pred_check
        %p249 = pneg %p122
      $region42: #{down3d_forward.5} parent=39 // pred_check_branch
        %251 = sbr.rel (%p249) target = $region44
      $region43: #{down3d_forward.5} parent=39 // pred_region
        %p252 = scmp.lt.s32.totalorder %s20, 1
        %s253 = scalar_select %p252, %s20, 1
        %p254 = scmp.lt.s32.totalorder %s21, 3
        %s255 = scalar_select %p254, %s21, 3
        %s256 = smul.addr %s255, 2
        %s257 = smul.addr %s253, 8
        %s258 = sadd.s32 %s256, %s257
        %s259 = smul.addr %s258, 8
        %s260 = scalar_lea.vmem %s3, %s259
      $region44: #{down3d_forward.5} parent=39 // pred_fallthru
        _
    $region40: #{down3d_forward.5} parent=5 // pred_fallthru
      _
  $region6: #{down3d_forward.5} parent=0 // loop_footer
    %s13 = sadd.s32 1, %s9
  $region7: #{down3d_forward.5} parent=0 // loop_footer_branch
    %8 = sbr.rel target = $region3
  $region8: #{down3d_forward.5} parent=0 // loop_exit
    _

// kernel: down3d_forward.4
$region0: #{down3d_forward.4}
  #allocation0 [shape = 'u32[]', space=smem, size = 0x4, offset = 0x4, fixed_abs, tag = 'smem constant byte address 0x4 - core index']
  #allocation1 [shape = 'u32[144,128]{1,0:T(1,128)}', space=vmem, size = 0x12000, scoped, tag = 'internal scratch']
  #allocation2 [shape = 'f32[16,108]{1,0:T(8,128)}', space=vmem, size = 0x2000, scoped, tag = 'scratch operand']
  %s0 = inlined_call_operand.vmem [shape: f32[2,6,32,4], index: 0, kind: input, shape index: {}, may-alias: {0,1,2}]
  %s1 = inlined_call_operand.vmem [shape: f32[2,6,32,4], index: 1, kind: input, shape index: {}, may-alias: {0,1,2}]
  %s2 = inlined_call_operand.vmem [shape: f32[2,6,32,4], index: 2, kind: input, shape index: {}, may-alias: {0,1,2}]
  %s3 = inlined_call_operand.vmem [shape: f32[108,8], index: 3, kind: input, shape index: {}]
  %s4 = inlined_call_operand.vmem [shape: f32[1,8], index: 4, kind: input, shape index: {}]
  %s5 = inlined_call_operand.vmem [shape: f32[16,1], index: 5, kind: input, shape index: {}]
  %s6 = inlined_call_operand.vmem [shape: f32[16,1], index: 6, kind: input, shape index: {}]
  %s7 = inlined_call_operand.vmem [shape: f32[2,4,16,8], index: 7, kind: output, shape index: {0}]
  %s8 = inlined_call_operand.vmem [shape: f32[2,4,2,8], index: 8, kind: output, shape index: {1}]
  %9 = xla_tuple %s7, %s8
  %s10 = sld [smem:[#allocation0]]
  $region69: #{down3d_forward.4} parent=0
    _
  %s12 = ssub.s32 1, %s10
  %s13 = scalar_select 0, %s12, %s10
  loop: start=0, step=1, limit=10
  $region2: #{down3d_forward.4} parent=0 // loop_pre_header
    _
  $region3: #{down3d_forward.4} parent=0 // loop_header
    %s15 = sphi 0, %s19
    %p16 = scmp.ge.s32.totalorder %s15, 10
    %s22 = sphi 0, %s34
    %s23 = sphi 0, %s30
    %s24 = sphi 0, %s22
    %s25 = sphi 0, %s23
    %s26 = sphi 0, %s24
    %s27 = sphi 0, %s25
    %s39 = sphi 0, %s41
    %s42 = sphi 0, %s39
    %s43 = sphi 0, %s42
    %s59 = sphi 0, %s43
    %s69 = sphi 0, %s71
    %s72 = sphi 0, %s69
    %s73 = sphi 0, %s72
    %s89 = sphi 0, %s73
    %s99 = sphi 0, %s101
    %s102 = sphi 0, %s99
    %s103 = sphi 0, %s102
    %s119 = sphi 0, %s103
    %s123 = sphi 0, %s123
    %s125 = sphi 0, %s123
    %s126 = sphi 0, %s125
    %s140 = sphi 0, %s126
    %s144 = sphi 0, %s144
    %s146 = sphi 0, %s144
    %s147 = sphi 0, %s146
    %s161 = sphi 0, %s147
    %s165 = sphi 0, %s165
    %s167 = sphi 0, %s165
    %s168 = sphi 0, %s167
    %s182 = sphi 0, %s168
    %s186 = sphi 0, %s186
    %s188 = sphi 0, %s186
    %s189 = sphi 0, %s188
    %s203 = sphi 0, %s189
    %s211 = sphi 0, %s213
    %s214 = sphi 0, %s211
    %s215 = sphi 0, %s214
    %s231 = sphi 0, %s215
    %s239 = sphi 0, %s241
    %s242 = sphi 0, %s239
    %s243 = sphi 0, %s242
    %s259 = sphi 0, %s243
  $region4: #{down3d_forward.4} parent=0 // loop_header_branch
    %18 = sbr.rel (%p16) target = $region8
  $region5: #{down3d_forward.4} parent=0 // loop_body
    %s20 = ssub.s32 %s15, 1
    %s21 = ssub.s32 %s15, 2
    %s28 = sadd.s32 1, %s23
    %p29 = scmp.ge.s32.totalorder %s28, 4
    %s30 = scalar_select %p29, 0, %s28
    %s31 = sadd.s32 1, %s22
    %s32 = scalar_select %p29, %s31, %s22
    %p33 = scmp.ge.s32.totalorder %s32, 2
    %s34 = scalar_select %p33, 0, %s32
    %s35 = ssub.s32 %s22, %s34
    %s36 = ssub.s32 %s23, %s30
    %s37 = sor.u32 %s35, %s36
    %p38 = scmp.eq.s32.totalorder %s37, 0
    %s40 = sadd.s32 %s39, 1
    %s41 = scalar_select %p38, %s39, %s40
    %p44 = pneg %p38
    %p45 = scmp.eq.s32.totalorder %s15, 7
    %p46 = por %p44, %p45
    %p47 = scmp.ne.s32.totalorder %s39, %s42
    %p48 = scmp.eq.s32.totalorder %s15, 0
    %p49 = por %p47, %p48
    %p50 = scmp.ne.s32.totalorder %s39, %s42
    %p51 = scmp.eq.s32.totalorder %s20, 7
    %p52 = por %p50, %p51
    %p53 = scmp.ne.s32.totalorder %s42, %s43
    %p54 = scmp.eq.s32.totalorder %s20, 0
    %p55 = por %p53, %p54
    %p56 = scmp.ne.s32.totalorder %s42, %s43
    %p57 = scmp.eq.s32.totalorder %s21, 7
    %p58 = por %p56, %p57
    %p60 = scmp.ne.s32.totalorder %s43, %s59
    %p61 = scmp.eq.s32.totalorder %s21, 0
    %p62 = por %p60, %p61
    %s63 = sadd.s32 %s23, 1
    %s64 = sadd.s32 %s30, 1
    %s65 = ssub.s32 %s22, %s34
    %s66 = ssub.s32 %s63, %s64
    %s67 = sor.u32 %s65, %s66
    %p68 = scmp.eq.s32.totalorder %s67, 0
    %s70 = sadd.s32 %s69, 1
    %s71 = scalar_select %p68, %s69, %s70
    %p74 = pneg %p68
    %p75 = scmp.eq.s32.totalorder %s15, 7
    %p76 = por %p74, %p75
    %p77 = scmp.ne.s32.totalorder %s69, %s72
    %p78 = scmp.eq.s32.totalorder %s15, 0
    %p79 = por %p77, %p78
    %p80 = scmp.ne.s32.totalorder %s69, %s72
    %p81 = scmp.eq.s32.totalorder %s20, 7
    %p82 = por %p80, %p81
    %p83 = scmp.ne.s32.totalorder %s72, %s73
    %p84 = scmp.eq.s32.totalorder %s20, 0
    %p85 = por %p83, %p84
    %p86 = scmp.ne.s32.totalorder %s72, %s73
    %p87 = scmp.eq.s32.totalorder %s21, 7
    %p88 = por %p86, %p87
    %p90 = scmp.ne.s32.totalorder %s73, %s89
    %p91 = scmp.eq.s32.totalorder %s21, 0
    %p92 = por %p90, %p91
    %s93 = sadd.s32 %s23, 2
    %s94 = sadd.s32 %s30, 2
    %s95 = ssub.s32 %s22, %s34
    %s96 = ssub.s32 %s93, %s94
    %s97 = sor.u32 %s95, %s96
    %p98 = scmp.eq.s32.totalorder %s97, 0
    %s100 = sadd.s32 %s99, 1
    %s101 = scalar_select %p98, %s99, %s100
    %p104 = pneg %p98
    %p105 = scmp.eq.s32.totalorder %s15, 7
    %p106 = por %p104, %p105
    %p107 = scmp.ne.s32.totalorder %s99, %s102
    %p108 = scmp.eq.s32.totalorder %s15, 0
    %p109 = por %p107, %p108
    %p110 = scmp.ne.s32.totalorder %s99, %s102
    %p111 = scmp.eq.s32.totalorder %s20, 7
    %p112 = por %p110, %p111
    %p113 = scmp.ne.s32.totalorder %s102, %s103
    %p114 = scmp.eq.s32.totalorder %s20, 0
    %p115 = por %p113, %p114
    %p116 = scmp.ne.s32.totalorder %s102, %s103
    %p117 = scmp.eq.s32.totalorder %s21, 7
    %p118 = por %p116, %p117
    %p120 = scmp.ne.s32.totalorder %s103, %s119
    %p121 = scmp.eq.s32.totalorder %s21, 0
    %p122 = por %p120, %p121
    %s124 = sadd.s32 %s123, 1
    %p127 = scmp.eq.s32.totalorder %s15, 7
    %p128 = scmp.ne.s32.totalorder %s123, %s125
    %p129 = scmp.eq.s32.totalorder %s15, 0
    %p130 = por %p128, %p129
    %p131 = scmp.ne.s32.totalorder %s123, %s125
    %p132 = scmp.eq.s32.totalorder %s20, 7
    %p133 = por %p131, %p132
    %p134 = scmp.ne.s32.totalorder %s125, %s126
    %p135 = scmp.eq.s32.totalorder %s20, 0
    %p136 = por %p134, %p135
    %p137 = scmp.ne.s32.totalorder %s125, %s126
    %p138 = scmp.eq.s32.totalorder %s21, 7
    %p139 = por %p137, %p138
    %p141 = scmp.ne.s32.totalorder %s126, %s140
    %p142 = scmp.eq.s32.totalorder %s21, 0
    %p143 = por %p141, %p142
    %s145 = sadd.s32 %s144, 1
    %p148 = scmp.eq.s32.totalorder %s15, 7
    %p149 = scmp.ne.s32.totalorder %s144, %s146
    %p150 = scmp.eq.s32.totalorder %s15, 0
    %p151 = por %p149, %p150
    %p152 = scmp.ne.s32.totalorder %s144, %s146
    %p153 = scmp.eq.s32.totalorder %s20, 7
    %p154 = por %p152, %p153
    %p155 = scmp.ne.s32.totalorder %s146, %s147
    %p156 = scmp.eq.s32.totalorder %s20, 0
    %p157 = por %p155, %p156
    %p158 = scmp.ne.s32.totalorder %s146, %s147
    %p159 = scmp.eq.s32.totalorder %s21, 7
    %p160 = por %p158, %p159
    %p162 = scmp.ne.s32.totalorder %s147, %s161
    %p163 = scmp.eq.s32.totalorder %s21, 0
    %p164 = por %p162, %p163
    %s166 = sadd.s32 %s165, 1
    %p169 = scmp.eq.s32.totalorder %s15, 7
    %p170 = scmp.ne.s32.totalorder %s165, %s167
    %p171 = scmp.eq.s32.totalorder %s15, 0
    %p172 = por %p170, %p171
    %p173 = scmp.ne.s32.totalorder %s165, %s167
    %p174 = scmp.eq.s32.totalorder %s20, 7
    %p175 = por %p173, %p174
    %p176 = scmp.ne.s32.totalorder %s167, %s168
    %p177 = scmp.eq.s32.totalorder %s20, 0
    %p178 = por %p176, %p177
    %p179 = scmp.ne.s32.totalorder %s167, %s168
    %p180 = scmp.eq.s32.totalorder %s21, 7
    %p181 = por %p179, %p180
    %p183 = scmp.ne.s32.totalorder %s168, %s182
    %p184 = scmp.eq.s32.totalorder %s21, 0
    %p185 = por %p183, %p184
    %s187 = sadd.s32 %s186, 1
    %p190 = scmp.eq.s32.totalorder %s15, 7
    %p191 = scmp.ne.s32.totalorder %s186, %s188
    %p192 = scmp.eq.s32.totalorder %s15, 0
    %p193 = por %p191, %p192
    %p194 = scmp.ne.s32.totalorder %s186, %s188
    %p195 = scmp.eq.s32.totalorder %s20, 7
    %p196 = por %p194, %p195
    %p197 = scmp.ne.s32.totalorder %s188, %s189
    %p198 = scmp.eq.s32.totalorder %s20, 0
    %p199 = por %p197, %p198
    %p200 = scmp.ne.s32.totalorder %s188, %s189
    %p201 = scmp.eq.s32.totalorder %s21, 7
    %p202 = por %p200, %p201
    %p204 = scmp.ne.s32.totalorder %s189, %s203
    %p205 = scmp.eq.s32.totalorder %s21, 0
    %p206 = por %p204, %p205
    %s207 = ssub.s32 %s22, %s34
    %s208 = ssub.s32 %s23, %s30
    %s209 = sor.u32 %s207, %s208
    %p210 = scmp.eq.s32.totalorder %s209, 0
    %s212 = sadd.s32 %s211, 1
    %s213 = scalar_select %p210, %s211, %s212
    %p216 = pneg %p210
    %p217 = scmp.eq.s32.totalorder %s15, 7
    %p218 = por %p216, %p217
    %p219 = scmp.ne.s32.totalorder %s211, %s214
    %p220 = scmp.eq.s32.totalorder %s15, 0
    %p221 = por %p219, %p220
    %p222 = scmp.ne.s32.totalorder %s211, %s214
    %p223 = scmp.eq.s32.totalorder %s20, 7
    %p224 = por %p222, %p223
    %p225 = scmp.ne.s32.totalorder %s214, %s215
    %p226 = scmp.eq.s32.totalorder %s20, 0
    %p227 = por %p225, %p226
    %p228 = scmp.ne.s32.totalorder %s214, %s215
    %p229 = scmp.eq.s32.totalorder %s21, 7
    %p230 = por %p228, %p229
    %p232 = scmp.ne.s32.totalorder %s215, %s231
    %p233 = scmp.eq.s32.totalorder %s21, 0
    %p234 = por %p232, %p233
    %s235 = ssub.s32 %s22, %s34
    %s236 = ssub.s32 %s23, %s30
    %s237 = sor.u32 %s235, %s236
    %p238 = scmp.eq.s32.totalorder %s237, 0
    %s240 = sadd.s32 %s239, 1
    %s241 = scalar_select %p238, %s239, %s240
    %p244 = pneg %p238
    %p245 = scmp.eq.s32.totalorder %s15, 7
    %p246 = por %p244, %p245
    %p247 = scmp.ne.s32.totalorder %s239, %s242
    %p248 = scmp.eq.s32.totalorder %s15, 0
    %p249 = por %p247, %p248
    %p250 = scmp.ne.s32.totalorder %s239, %s242
    %p251 = scmp.eq.s32.totalorder %s20, 7
    %p252 = por %p250, %p251
    %p253 = scmp.ne.s32.totalorder %s242, %s243
    %p254 = scmp.eq.s32.totalorder %s20, 0
    %p255 = por %p253, %p254
    %p256 = scmp.ne.s32.totalorder %s242, %s243
    %p257 = scmp.eq.s32.totalorder %s21, 7
    %p258 = por %p256, %p257
    %p260 = scmp.ne.s32.totalorder %s243, %s259
    %p261 = scmp.eq.s32.totalorder %s21, 0
    %p262 = por %p260, %p261
    %p263 = scmp.le.s32.totalorder 1, %s15
    %p264 = scmp.lt.s32.totalorder %s15, 9
    %p265 = pnand %p263, %p264
    %p266 = pneg %p265
    // Predicated region
    $region9: #{down3d_forward.4} parent=5 // pred_check
      _
    $region10: #{down3d_forward.4} parent=5 // pred_check_branch
      %268 = sbr.rel (%p265) target = $region12
    $region11: #{down3d_forward.4} parent=5 // pred_region
      %s269 = ssub.s32 %s15, 1
      // Predicated region
      $region13: #{down3d_forward.4} parent=11 // pred_check
        %p270 = pneg %p136
      $region14: #{down3d_forward.4} parent=11 // pred_check_branch
        %272 = sbr.rel (%p270) target = $region16
      $region15: #{down3d_forward.4} parent=11 // pred_region
        _
      $region16: #{down3d_forward.4} parent=11 // pred_fallthru
        _
      // Predicated region
      $region17: #{down3d_forward.4} parent=11 // pred_check
        %p273 = pneg %p157
      $region18: #{down3d_forward.4} parent=11 // pred_check_branch
        %275 = sbr.rel (%p273) target = $region20
      $region19: #{down3d_forward.4} parent=11 // pred_region
        _
      $region20: #{down3d_forward.4} parent=11 // pred_fallthru
        _
      // Predicated region
      $region21: #{down3d_forward.4} parent=11 // pred_check
        %p276 = pneg %p178
      $region22: #{down3d_forward.4} parent=11 // pred_check_branch
        %278 = sbr.rel (%p276) target = $region24
      $region23: #{down3d_forward.4} parent=11 // pred_region
        _
      $region24: #{down3d_forward.4} parent=11 // pred_fallthru
        _
      // Predicated region
      $region25: #{down3d_forward.4} parent=11 // pred_check
        %p279 = pneg %p199
      $region26: #{down3d_forward.4} parent=11 // pred_check_branch
        %281 = sbr.rel (%p279) target = $region28
      $region27: #{down3d_forward.4} parent=11 // pred_region
        _
      $region28: #{down3d_forward.4} parent=11 // pred_fallthru
        _
    $region12: #{down3d_forward.4} parent=5 // pred_fallthru
      _
    %p282 = scmp.lt.s32.totalorder %s15, 8
    // Predicated region
    $region29: #{down3d_forward.4} parent=5 // pred_check
      %p283 = pneg %p282
    $region30: #{down3d_forward.4} parent=5 // pred_check_branch
      %285 = sbr.rel (%p283) target = $region32
    $region31: #{down3d_forward.4} parent=5 // pred_region
      // Predicated region
      $region33: #{down3d_forward.4} parent=31 // pred_check
        %p286 = pneg %p49
      $region34: #{down3d_forward.4} parent=31 // pred_check_branch
        %288 = sbr.rel (%p286) target = $region36
      $region35: #{down3d_forward.4} parent=31 // pred_region
        %p289 = scmp.lt.s32.totalorder %s22, 1
        %s290 = scalar_select %p289, %s22, 1
        %p291 = scmp.lt.s32.totalorder %s23, 5
        %s292 = scalar_select %p291, %s23, 5
        %s293 = smul.addr %s292, 4
        %s294 = smul.addr %s290, 24
        %s295 = sadd.s32 %s293, %s294
        %s296 = smul.addr %s295, 8
        %s297 = scalar_lea.vmem %s0, %s296
      $region36: #{down3d_forward.4} parent=31 // pred_fallthru
        _
      // Predicated region
      $region37: #{down3d_forward.4} parent=31 // pred_check
        %p298 = pneg %p79
      $region38: #{down3d_forward.4} parent=31 // pred_check_branch
        %300 = sbr.rel (%p298) target = $region40
      $region39: #{down3d_forward.4} parent=31 // pred_region
        %s301 = sadd.s32 %s23, 1
        %p302 = scmp.lt.s32.totalorder %s22, 1
        %s303 = scalar_select %p302, %s22, 1
        %p304 = scmp.lt.s32.totalorder %s301, 5
        %s305 = scalar_select %p304, %s301, 5
        %s306 = smul.addr %s305, 4
        %s307 = smul.addr %s303, 24
        %s308 = sadd.s32 %s306, %s307
        %s309 = smul.addr %s308, 8
        %s310 = scalar_lea.vmem %s1, %s309
        %s311 = sadd.s32 %s23, 1
      $region40: #{down3d_forward.4} parent=31 // pred_fallthru
        _
      // Predicated region
      $region41: #{down3d_forward.4} parent=31 // pred_check
        %p312 = pneg %p109
      $region42: #{down3d_forward.4} parent=31 // pred_check_branch
        %314 = sbr.rel (%p312) target = $region44
      $region43: #{down3d_forward.4} parent=31 // pred_region
        %s315 = sadd.s32 %s23, 2
        %p316 = scmp.lt.s32.totalorder %s22, 1
        %s317 = scalar_select %p316, %s22, 1
        %p318 = scmp.lt.s32.totalorder %s315, 5
        %s319 = scalar_select %p318, %s315, 5
        %s320 = smul.addr %s319, 4
        %s321 = smul.addr %s317, 24
        %s322 = sadd.s32 %s320, %s321
        %s323 = smul.addr %s322, 8
        %s324 = scalar_lea.vmem %s2, %s323
        %s325 = sadd.s32 %s23, 2
      $region44: #{down3d_forward.4} parent=31 // pred_fallthru
        _
    $region32: #{down3d_forward.4} parent=5 // pred_fallthru
      _
    %p326 = scmp.le.s32.totalorder 1, %s15
    %p327 = scmp.lt.s32.totalorder %s15, 9
    %p328 = pnand %p326, %p327
    %p329 = pneg %p328
    // Predicated region
    $region45: #{down3d_forward.4} parent=5 // pred_check
      _
    $region46: #{down3d_forward.4} parent=5 // pred_check_branch
      %331 = sbr.rel (%p328) target = $region48
    $region47: #{down3d_forward.4} parent=5 // pred_region
      %s332 = ssub.s32 %s15, 1
      %p333 = scmp.lt.s32.totalorder %s24, 1
      %s334 = scalar_select %p333, %s24, 1
      %p335 = scmp.lt.s32.totalorder %s25, 5
      %s336 = scalar_select %p335, %s25, 5
      %s337 = smul.addr %s336, 4
      %s338 = smul.addr %s334, 24
      %s339 = sadd.s32 %s337, %s338
      %s340 = smul.addr %s339, 8
      %s341 = scalar_lea.vmem %s0, %s340
      %p342 = pneg %p55
      %p343 = pneg %p52
      %s344 = sadd.s32 %s25, 1
      %p345 = scmp.lt.s32.totalorder %s24, 1
      %s346 = scalar_select %p345, %s24, 1
      %p347 = scmp.lt.s32.totalorder %s344, 5
      %s348 = scalar_select %p347, %s344, 5
      %s349 = smul.addr %s348, 4
      %s350 = smul.addr %s346, 24
      %s351 = sadd.s32 %s349, %s350
      %s352 = smul.addr %s351, 8
      %s353 = scalar_lea.vmem %s1, %s352
      %p354 = pneg %p85
      %p355 = pneg %p82
      %s356 = sadd.s32 %s25, 2
      %p357 = scmp.lt.s32.totalorder %s24, 1
      %s358 = scalar_select %p357, %s24, 1
      %p359 = scmp.lt.s32.totalorder %s356, 5
      %s360 = scalar_select %p359, %s356, 5
      %s361 = smul.addr %s360, 4
      %s362 = smul.addr %s358, 24
      %s363 = sadd.s32 %s361, %s362
      %s364 = smul.addr %s363, 8
      %s365 = scalar_lea.vmem %s2, %s364
      %p366 = pneg %p115
      %p367 = pneg %p112
      %p368 = pneg %p136
      %p369 = pneg %p133
      %p370 = pneg %p157
      %p371 = pneg %p154
      %p372 = pneg %p178
      %p373 = pneg %p175
      %p374 = pneg %p199
      %p375 = pneg %p196
      %p376 = pneg %p227
      %p377 = pneg %p224
      %p378 = scmp.lt.s32.totalorder %s24, 1
      %s379 = scalar_select %p378, %s24, 1
      %p380 = scmp.lt.s32.totalorder %s25, 3
      %s381 = scalar_select %p380, %s25, 3
      %s382 = smul.addr %s381, 2
      %s383 = smul.addr %s379, 8
      %s384 = sadd.s32 %s382, %s383
      %s385 = smul.addr %s384, 8
      %s386 = scalar_lea.vmem %s7, %s385
      %p387 = pneg %p255
      %p388 = pneg %p252
      %p389 = scmp.lt.s32.totalorder %s24, 1
      %s390 = scalar_select %p389, %s24, 1
      %p391 = scmp.lt.s32.totalorder %s25, 3
      %s392 = scalar_select %p391, %s25, 3
      %s393 = smul.addr %s390, 4
      %s394 = sadd.s32 %s392, %s393
      %s395 = smul.addr %s394, 2
      %s396 = scalar_lea.vmem %s8, %s395
      %p397 = scmp.lt.s32.totalorder %s24, 1
      %s398 = scalar_select %p397, %s24, 1
      %p399 = scmp.lt.s32.totalorder %s25, 5
      %s400 = scalar_select %p399, %s25, 5
      %s401 = smul.addr %s400, 4
      %s402 = smul.addr %s398, 24
      %s403 = sadd.s32 %s401, %s402
      %s404 = smul.addr %s403, 8
      %s405 = scalar_lea.vmem %s0, %s404
      %s406 = sadd.s32 %s25, 1
      %p407 = scmp.lt.s32.totalorder %s24, 1
      %s408 = scalar_select %p407, %s24, 1
      %p409 = scmp.lt.s32.totalorder %s406, 5
      %s410 = scalar_select %p409, %s406, 5
      %s411 = smul.addr %s410, 4
      %s412 = smul.addr %s408, 24
      %s413 = sadd.s32 %s411, %s412
      %s414 = smul.addr %s413, 8
      %s415 = scalar_lea.vmem %s1, %s414
      %s416 = sadd.s32 %s25, 1
      %s417 = sadd.s32 %s25, 2
      %p418 = scmp.lt.s32.totalorder %s24, 1
      %s419 = scalar_select %p418, %s24, 1
      %p420 = scmp.lt.s32.totalorder %s417, 5
      %s421 = scalar_select %p420, %s417, 5
      %s422 = smul.addr %s421, 4
      %s423 = smul.addr %s419, 24
      %s424 = sadd.s32 %s422, %s423
      %s425 = smul.addr %s424, 8
      %s426 = scalar_lea.vmem %s2, %s425
      %s427 = sadd.s32 %s25, 2
      %p428 = scmp.lt.s32.totalorder %s24, 1
      %s429 = scalar_select %p428, %s24, 1
      %p430 = scmp.lt.s32.totalorder %s25, 3
      %s431 = scalar_select %p430, %s25, 3
      %s432 = smul.addr %s431, 2
      %s433 = smul.addr %s429, 8
      %s434 = sadd.s32 %s432, %s433
      %s435 = smul.addr %s434, 8
      %s436 = scalar_lea.vmem %s7, %s435
      %p437 = scmp.lt.s32.totalorder %s24, 1
      %s438 = scalar_select %p437, %s24, 1
      %p439 = scmp.lt.s32.totalorder %s25, 3
      %s440 = scalar_select %p439, %s25, 3
      %s441 = smul.addr %s438, 4
      %s442 = sadd.s32 %s440, %s441
      %s443 = smul.addr %s442, 2
      %s444 = scalar_lea.vmem %s8, %s443
      %v445 = vld [vmem:[%s5] sm:$0xff]
      %v446 = vld [vmem:[%s5 + $0x8] sm:$0xff]
      %v447 = vld [vmem:[%s6] sm:$0xff]
      %v448 = vld [vmem:[%s6 + $0x8] sm:$0xff]
      %v449 = vld [vmem:[%s405 + $0x3] sm:$0xff]
      %v450 = vld [vmem:[%s405 + $0xb] sm:$0xff]
      %452 = vset.pattern.permute.xlu0 0
      %453 = vperm.xlu0 %452, %v445
      %v454 = vpop.permute.xlu0 %453
      %457 = vset.pattern.permute.xlu0 0
      %458 = vperm.xlu0 %457, %v446
      %v459 = vpop.permute.xlu0 %458
      %v461 = vmul.f32 %v449, %v454
      %v462 = vmul.f32 %v450, %v459
      %vm463 = vcmask 31744
      %464 = vst.msk [vmem:[#allocation2] sm:$0xff] %vm463, %v461
      %465 = vst.msk [vmem:[#allocation2 + $0x8] sm:$0xff] %vm463, %v462
      %v466 = vld [vmem:[%s405 + $0x4] sm:$0xff]
      %v467 = vld [vmem:[%s405 + $0xc] sm:$0xff]
      %470 = vrot.lane.b32.xlu0 %v466, 4
      %v471 = vpop.permute.xlu0 %470
      %472 = vrot.lane.b32.xlu0 %v467, 4
      %v473 = vpop.permute.xlu0 %472
      %vm476 = vcmask 64544
      %477 = vst.msk [vmem:[#allocation2] sm:$0xff] %vm476, %v471
      %478 = vst.msk [vmem:[#allocation2 + $0x8] sm:$0xff] %vm476, %v473
      %v479 = vld [vmem:[%s405 + $0x5] sm:$0xff]
      %v480 = vld [vmem:[%s405 + $0xd] sm:$0xff]
      %482 = vset.pattern.permute.xlu0 0
      %483 = vperm.xlu0 %482, %v447
      %v484 = vpop.permute.xlu0 %483
      %487 = vset.pattern.permute.xlu0 0
      %488 = vperm.xlu0 %487, %v448
      %v489 = vpop.permute.xlu0 %488
      %v491 = vmul.f32 %v479, %v484
      %v492 = vmul.f32 %v480, %v489
      %495 = vrot.lane.b32.xlu0 %v491, 8
      %v496 = vpop.permute.xlu0 %495
      %497 = vrot.lane.b32.xlu0 %v492, 8
      %v498 = vpop.permute.xlu0 %497
      %vm501 = vcmask 97344
      %502 = vst.msk [vmem:[#allocation2] sm:$0xff] %vm501, %v496
      %503 = vst.msk [vmem:[#allocation2 + $0x8] sm:$0xff] %vm501, %v498
      %v504 = vld [vmem:[%s405 + $0x7] sm:$0xff]
      %v505 = vld [vmem:[%s405 + $0xf] sm:$0xff]
      %v506 = vmul.f32 %v504, %v454
      %v507 = vmul.f32 %v505, %v459
      %510 = vrot.lane.b32.xlu0 %v506, 12
      %v511 = vpop.permute.xlu0 %510
      %512 = vrot.lane.b32.xlu0 %v507, 12
      %v513 = vpop.permute.xlu0 %512
      %vm516 = vcmask 130144
      %517 = vst.msk [vmem:[#allocation2] sm:$0xff] %vm516, %v511
      %518 = vst.msk [vmem:[#allocation2 + $0x8] sm:$0xff] %vm516, %v513
      %v519 = vld [vmem:[%s405 + $0x8] sm:$0xff]
      %v520 = vld [vmem:[%s405 + $0x10] sm:$0xff]
      %523 = vrot.lane.b32.xlu0 %v519, 16
      %v524 = vpop.permute.xlu0 %523
      %525 = vrot.lane.b32.xlu0 %v520, 16
      %v526 = vpop.permute.xlu0 %525
      %vm529 = vcmask 162944
      %530 = vst.msk [vmem:[#allocation2] sm:$0xff] %vm529, %v524
      %531 = vst.msk [vmem:[#allocation2 + $0x8] sm:$0xff] %vm529, %v526
      %v532 = vld [vmem:[%s405 + $0x9] sm:$0xff]
      %v533 = vld [vmem:[%s405 + $0x11] sm:$0xff]
      %v534 = vmul.f32 %v532, %v484
      %v535 = vmul.f32 %v533, %v489
      %538 = vrot.lane.b32.xlu0 %v534, 20
      %v539 = vpop.permute.xlu0 %538
      %540 = vrot.lane.b32.xlu0 %v535, 20
      %v541 = vpop.permute.xlu0 %540
      %vm544 = vcmask 195744
      %545 = vst.msk [vmem:[#allocation2] sm:$0xff] %vm544, %v539
      %546 = vst.msk [vmem:[#allocation2 + $0x8] sm:$0xff] %vm544, %v541
      %v547 = vld [vmem:[%s405 + $0xb] sm:$0xff]
      %v548 = vld [vmem:[%s405 + $0x13] sm:$0xff]
      %v549 = vmul.f32 %v547, %v454
      %v550 = vmul.f32 %v548, %v459
      %553 = vrot.lane.b32.xlu0 %v549, 24
      %v554 = vpop.permute.xlu0 %553
      %555 = vrot.lane.b32.xlu0 %v550, 24
      %v556 = vpop.permute.xlu0 %555
      %vm559 = vcmask 228544
      %560 = vst.msk [vmem:[#allocation2] sm:$0xff] %vm559, %v554
      %561 = vst.msk [vmem:[#allocation2 + $0x8] sm:$0xff] %vm559, %v556
      %v562 = vld [vmem:[%s405 + $0xc] sm:$0xff]
      %v563 = vld [vmem:[%s405 + $0x14] sm:$0xff]
      %566 = vrot.lane.b32.xlu0 %v562, 28
      %v567 = vpop.permute.xlu0 %566
      %568 = vrot.lane.b32.xlu0 %v563, 28
      %v569 = vpop.permute.xlu0 %568
      %vm572 = vcmask 261344
      %573 = vst.msk [vmem:[#allocation2] sm:$0xff] %vm572, %v567
      %574 = vst.msk [vmem:[#allocation2 + $0x8] sm:$0xff] %vm572, %v569
      %v575 = vld [vmem:[%s405 + $0xd] sm:$0xff]
      %v576 = vld [vmem:[%s405 + $0x15] sm:$0xff]
      %v577 = vmul.f32 %v575, %v484
      %v578 = vmul.f32 %v576, %v489
      %581 = vrot.lane.b32.xlu0 %v577, 32
      %v582 = vpop.permute.xlu0 %581
      %583 = vrot.lane.b32.xlu0 %v578, 32
      %v584 = vpop.permute.xlu0 %583
      %vm587 = vcmask 294144
      %588 = vst.msk [vmem:[#allocation2] sm:$0xff] %vm587, %v582
      %589 = vst.msk [vmem:[#allocation2 + $0x8] sm:$0xff] %vm587, %v584
      %v590 = vld [vmem:[%s415 + $0x3] sm:$0xff]
      %v591 = vld [vmem:[%s415 + $0xb] sm:$0xff]
      %v592 = vmul.f32 %v590, %v454
      %v593 = vmul.f32 %v591, %v459
      %596 = vrot.lane.b32.xlu0 %v592, 36
      %v597 = vpop.permute.xlu0 %596
      %598 = vrot.lane.b32.xlu0 %v593, 36
      %v599 = vpop.permute.xlu0 %598
      %vm602 = vcmask 326944
      %603 = vst.msk [vmem:[#allocation2] sm:$0xff] %vm602, %v597
      %604 = vst.msk [vmem:[#allocation2 + $0x8] sm:$0xff] %vm602, %v599
      %v605 = vld [vmem:[%s415 + $0x4] sm:$0xff]
      %v606 = vld [vmem:[%s415 + $0xc] sm:$0xff]
      %609 = vrot.lane.b32.xlu0 %v605, 40
      %v610 = vpop.permute.xlu0 %609
      %611 = vrot.lane.b32.xlu0 %v606, 40
      %v612 = vpop.permute.xlu0 %611
      %vm615 = vcmask 359744
      %616 = vst.msk [vmem:[#allocation2] sm:$0xff] %vm615, %v610
      %617 = vst.msk [vmem:[#allocation2 + $0x8] sm:$0xff] %vm615, %v612
      %v618 = vld [vmem:[%s415 + $0x5] sm:$0xff]
      %v619 = vld [vmem:[%s415 + $0xd] sm:$0xff]
      %v620 = vmul.f32 %v618, %v484
      %v621 = vmul.f32 %v619, %v489
      %624 = vrot.lane.b32.xlu0 %v620, 44
      %v625 = vpop.permute.xlu0 %624
      %626 = vrot.lane.b32.xlu0 %v621, 44
      %v627 = vpop.permute.xlu0 %626
      %vm630 = vcmask 392544
      %631 = vst.msk [vmem:[#allocation2] sm:$0xff] %vm630, %v625
      %632 = vst.msk [vmem:[#allocation2 + $0x8] sm:$0xff] %vm630, %v627
      %v633 = vld [vmem:[%s415 + $0x7] sm:$0xff]
      %v634 = vld [vmem:[%s415 + $0xf] sm:$0xff]
      %v635 = vmul.f32 %v633, %v454
      %v636 = vmul.f32 %v634, %v459
      %639 = vrot.lane.b32.xlu0 %v635, 48
      %v640 = vpop.permute.xlu0 %639
      %641 = vrot.lane.b32.xlu0 %v636, 48
      %v642 = vpop.permute.xlu0 %641
      %vm645 = vcmask 425344
      %646 = vst.msk [vmem:[#allocation2] sm:$0xff] %vm645, %v640
      %647 = vst.msk [vmem:[#allocation2 + $0x8] sm:$0xff] %vm645, %v642
      %v648 = vld [vmem:[%s415 + $0x8] sm:$0xff]
      %v649 = vld [vmem:[%s415 + $0x10] sm:$0xff]
      %652 = vrot.lane.b32.xlu0 %v648, 52
      %v653 = vpop.permute.xlu0 %652
      %654 = vrot.lane.b32.xlu0 %v649, 52
      %v655 = vpop.permute.xlu0 %654
      %vm658 = vcmask 458144
      %659 = vst.msk [vmem:[#allocation2] sm:$0xff] %vm658, %v653
      %660 = vst.msk [vmem:[#allocation2 + $0x8] sm:$0xff] %vm658, %v655
      %v661 = vld [vmem:[%s415 + $0x9] sm:$0xff]
      %v662 = vld [vmem:[%s415 + $0x11] sm:$0xff]
      %v663 = vmul.f32 %v661, %v484
      %v664 = vmul.f32 %v662, %v489
      %667 = vrot.lane.b32.xlu0 %v663, 56
      %v668 = vpop.permute.xlu0 %667
      %669 = vrot.lane.b32.xlu0 %v664, 56
      %v670 = vpop.permute.xlu0 %669
      %vm673 = vcmask 490944
      %674 = vst.msk [vmem:[#allocation2] sm:$0xff] %vm673, %v668
      %675 = vst.msk [vmem:[#allocation2 + $0x8] sm:$0xff] %vm673, %v670
      %v676 = vld [vmem:[%s415 + $0xb] sm:$0xff]
      %v677 = vld [vmem:[%s415 + $0x13] sm:$0xff]
      %v678 = vmul.f32 %v676, %v454
      %v679 = vmul.f32 %v677, %v459
      %682 = vrot.lane.b32.xlu0 %v678, 60
      %v683 = vpop.permute.xlu0 %682
      %684 = vrot.lane.b32.xlu0 %v679, 60
      %v685 = vpop.permute.xlu0 %684
      %vm688 = vcmask 523744
      %689 = vst.msk [vmem:[#allocation2] sm:$0xff] %vm688, %v683
      %690 = vst.msk [vmem:[#allocation2 + $0x8] sm:$0xff] %vm688, %v685
      %v691 = vld [vmem:[%s415 + $0xc] sm:$0xff]
      %v692 = vld [vmem:[%s415 + $0x14] sm:$0xff]
      %695 = vrot.lane.b32.xlu0 %v691, 64
      %v696 = vpop.permute.xlu0 %695
      %697 = vrot.lane.b32.xlu0 %v692, 64
      %v698 = vpop.permute.xlu0 %697
      %vm701 = vcmask 556544
      %702 = vst.msk [vmem:[#allocation2] sm:$0xff] %vm701, %v696
      %703 = vst.msk [vmem:[#allocation2 + $0x8] sm:$0xff] %vm701, %v698
      %v704 = vld [vmem:[%s415 + $0xd] sm:$0xff]
      %v705 = vld [vmem:[%s415 + $0x15] sm:$0xff]
      %v706 = vmul.f32 %v704, %v484
      %v707 = vmul.f32 %v705, %v489
      %710 = vrot.lane.b32.xlu0 %v706, 68
      %v711 = vpop.permute.xlu0 %710
      %712 = vrot.lane.b32.xlu0 %v707, 68
      %v713 = vpop.permute.xlu0 %712
      %vm716 = vcmask 589344
      %717 = vst.msk [vmem:[#allocation2] sm:$0xff] %vm716, %v711
      %718 = vst.msk [vmem:[#allocation2 + $0x8] sm:$0xff] %vm716, %v713
      %v719 = vld [vmem:[%s426 + $0x3] sm:$0xff]
      %v720 = vld [vmem:[%s426 + $0xb] sm:$0xff]
      %v721 = vmul.f32 %v719, %v454
      %v722 = vmul.f32 %v720, %v459
      %725 = vrot.lane.b32.xlu0 %v721, 72
      %v726 = vpop.permute.xlu0 %725
      %727 = vrot.lane.b32.xlu0 %v722, 72
      %v728 = vpop.permute.xlu0 %727
      %vm731 = vcmask 622144
      %732 = vst.msk [vmem:[#allocation2] sm:$0xff] %vm731, %v726
      %733 = vst.msk [vmem:[#allocation2 + $0x8] sm:$0xff] %vm731, %v728
      %v734 = vld [vmem:[%s426 + $0x4] sm:$0xff]
      %v735 = vld [vmem:[%s426 + $0xc] sm:$0xff]
      %738 = vrot.lane.b32.xlu0 %v734, 76
      %v739 = vpop.permute.xlu0 %738
      %740 = vrot.lane.b32.xlu0 %v735, 76
      %v741 = vpop.permute.xlu0 %740
      %vm744 = vcmask 654944
      %745 = vst.msk [vmem:[#allocation2] sm:$0xff] %vm744, %v739
      %746 = vst.msk [vmem:[#allocation2 + $0x8] sm:$0xff] %vm744, %v741
      %v747 = vld [vmem:[%s426 + $0x5] sm:$0xff]
      %v748 = vld [vmem:[%s426 + $0xd] sm:$0xff]
      %v749 = vmul.f32 %v747, %v484
      %v750 = vmul.f32 %v748, %v489
      %753 = vrot.lane.b32.xlu0 %v749, 80
      %v754 = vpop.permute.xlu0 %753
      %755 = vrot.lane.b32.xlu0 %v750, 80
      %v756 = vpop.permute.xlu0 %755
      %vm759 = vcmask 687744
      %760 = vst.msk [vmem:[#allocation2] sm:$0xff] %vm759, %v754
      %761 = vst.msk [vmem:[#allocation2 + $0x8] sm:$0xff] %vm759, %v756
      %v762 = vld [vmem:[%s426 + $0x7] sm:$0xff]
      %v763 = vld [vmem:[%s426 + $0xf] sm:$0xff]
      %v764 = vmul.f32 %v762, %v454
      %v765 = vmul.f32 %v763, %v459
      %768 = vrot.lane.b32.xlu0 %v764, 84
      %v769 = vpop.permute.xlu0 %768
      %770 = vrot.lane.b32.xlu0 %v765, 84
      %v771 = vpop.permute.xlu0 %770
      %vm774 = vcmask 720544
      %775 = vst.msk [vmem:[#allocation2] sm:$0xff] %vm774, %v769
      %776 = vst.msk [vmem:[#allocation2 + $0x8] sm:$0xff] %vm774, %v771
      %v777 = vld [vmem:[%s426 + $0x8] sm:$0xff]
      %v778 = vld [vmem:[%s426 + $0x10] sm:$0xff]
      %781 = vrot.lane.b32.xlu0 %v777, 88
      %v782 = vpop.permute.xlu0 %781
      %783 = vrot.lane.b32.xlu0 %v778, 88
      %v784 = vpop.permute.xlu0 %783
      %vm787 = vcmask 753344
      %788 = vst.msk [vmem:[#allocation2] sm:$0xff] %vm787, %v782
      %789 = vst.msk [vmem:[#allocation2 + $0x8] sm:$0xff] %vm787, %v784
      %v790 = vld [vmem:[%s426 + $0x9] sm:$0xff]
      %v791 = vld [vmem:[%s426 + $0x11] sm:$0xff]
      %v792 = vmul.f32 %v790, %v484
      %v793 = vmul.f32 %v791, %v489
      %796 = vrot.lane.b32.xlu0 %v792, 92
      %v797 = vpop.permute.xlu0 %796
      %798 = vrot.lane.b32.xlu0 %v793, 92
      %v799 = vpop.permute.xlu0 %798
      %vm802 = vcmask 786144
      %803 = vst.msk [vmem:[#allocation2] sm:$0xff] %vm802, %v797
      %804 = vst.msk [vmem:[#allocation2 + $0x8] sm:$0xff] %vm802, %v799
      %v805 = vld [vmem:[%s426 + $0xb] sm:$0xff]
      %v806 = vld [vmem:[%s426 + $0x13] sm:$0xff]
      %v807 = vmul.f32 %v805, %v454
      %v808 = vmul.f32 %v806, %v459
      %811 = vrot.lane.b32.xlu0 %v807, 96
      %v812 = vpop.permute.xlu0 %811
      %813 = vrot.lane.b32.xlu0 %v808, 96
      %v814 = vpop.permute.xlu0 %813
      %vm817 = vcmask 818944
      %818 = vst.msk [vmem:[#allocation2] sm:$0xff] %vm817, %v812
      %819 = vst.msk [vmem:[#allocation2 + $0x8] sm:$0xff] %vm817, %v814
      %v820 = vld [vmem:[%s426 + $0xc] sm:$0xff]
      %v821 = vld [vmem:[%s426 + $0x14] sm:$0xff]
      %824 = vrot.lane.b32.xlu0 %v820, 100
      %v825 = vpop.permute.xlu0 %824
      %826 = vrot.lane.b32.xlu0 %v821, 100
      %v827 = vpop.permute.xlu0 %826
      %vm830 = vcmask 851744
      %831 = vst.msk [vmem:[#allocation2] sm:$0xff] %vm830, %v825
      %832 = vst.msk [vmem:[#allocation2 + $0x8] sm:$0xff] %vm830, %v827
      %v833 = vld [vmem:[%s426 + $0xd] sm:$0xff]
      %v834 = vld [vmem:[%s426 + $0x15] sm:$0xff]
      %v835 = vmul.f32 %v833, %v484
      %v836 = vmul.f32 %v834, %v489
      %839 = vrot.lane.b32.xlu0 %v835, 104
      %v840 = vpop.permute.xlu0 %839
      %841 = vrot.lane.b32.xlu0 %v836, 104
      %v842 = vpop.permute.xlu0 %841
      %vm845 = vcmask 884544
      %846 = vst.msk [vmem:[#allocation2] sm:$0xff] %vm845, %v840
      %847 = vst.msk [vmem:[#allocation2 + $0x8] sm:$0xff] %vm845, %v842
      %v848 = vld [vmem:[#allocation2] sm:$0xff]
      %v849 = vld [vmem:[#allocation2 + $0x8] sm:$0xff]
      %v850 = vld [vmem:[%s3] sm:$0xff]
      %v851 = vld [vmem:[%s3 + $0x8] sm:$0xff]
      %v852 = vld [vmem:[%s3 + $0x10] sm:$0xff]
      %v853 = vld [vmem:[%s3 + $0x18] sm:$0xff]
      %v854 = vld [vmem:[%s3 + $0x20] sm:$0xff]
      %v855 = vld [vmem:[%s3 + $0x28] sm:$0xff]
      %v856 = vld [vmem:[%s3 + $0x30] sm:$0xff]
      %v857 = vld [vmem:[%s3 + $0x38] sm:$0xff]
      %v858 = vld [vmem:[%s3 + $0x40] sm:$0xff]
      %v859 = vld [vmem:[%s3 + $0x48] sm:$0xff]
      %v860 = vld [vmem:[%s3 + $0x50] sm:$0xff]
      %v861 = vld [vmem:[%s3 + $0x58] sm:$0xff]
      %v862 = vld [vmem:[%s3 + $0x60] sm:$0xff]
      %v863 = vld [vmem:[%s3 + $0x68] sm:$0xf]
      %v864 = vld [vmem:[%s4] sm:$0x1]
      %v866 = vlaneseq
      %v867 = vshrl.u32 %v866, 7
      %v868 = vsub.s32 0, %v867
      %v869 = vrot.slane %v864, %v868
      %vm871 = vcmask 883712
      %v873 = vsel %vm871, %v848, 0
      %v876 = vsel %vm871, %v849, 0
      %vm878 = vcmask 1043456
      %v880 = vsel %vm878, %v863, 0
      %882 = vmatprep.subr.mxu0 0.0
      %883 = vmatpush1.msra.mxu0 %v850
      %884 = vmatprep.subr.mxu0 0.0
      %885 = vmatpush1.msra.mxu0 %v851
      %886 = vmatprep.subr.mxu0 0.0
      %887 = vmatpush1.msra.mxu0 %v852
      %888 = vmatprep.subr.mxu0 0.0
      %889 = vmatpush1.msra.mxu0 %v853
      %890 = vmatprep.subr.mxu0 0.0
      %891 = vmatpush1.msra.mxu0 %v854
      %892 = vmatprep.subr.mxu0 0.0
      %893 = vmatpush1.msra.mxu0 %v855
      %894 = vmatprep.subr.mxu0 0.0
      %895 = vmatpush1.msra.mxu0 %v856
      %896 = vmatprep.subr.mxu0 0.0
      %897 = vmatpush1.msra.mxu0 %v857
      %898 = vmatprep.subr.mxu0 0.0
      %899 = vmatpush1.msra.mxu0 %v858
      %900 = vmatprep.subr.mxu0 0.0
      %901 = vmatpush1.msra.mxu0 %v859
      %902 = vmatprep.subr.mxu0 0.0
      %903 = vmatpush1.msra.mxu0 %v860
      %904 = vmatprep.subr.mxu0 0.0
      %905 = vmatpush1.msra.mxu0 %v861
      %906 = vmatprep.subr.mxu0 0.0
      %907 = vmatpush1.msra.mxu0 %v862
      %908 = vmatprep.subr.mxu0 0.0
      %909 = vmatpush1.msra.mxu0 %v880
      %910 = vmatprep.subr.mxu0 0.0
      %911 = vmatpush1.msra.mxu0 0.0
      %912 = vmatprep.subr.mxu0 0.0
      %913 = vmatpush1.msra.mxu0 0.0
      %914 = vmatprep.subr.mxu0 0.0
      %915 = vmatpush1.msra.mxu0 0.0
      %916 = vmatprep.subr.mxu0 0.0
      %917 = vmatpush1.msra.mxu0 0.0
      %918 = vmatprep.subr.mxu0 0.0
      %919 = vmatpush1.msra.mxu0 0.0
      %920 = vmatprep.subr.mxu0 0.0
      %921 = vmatpush1.msra.mxu0 0.0
      %922 = vmatprep.subr.mxu0 0.0
      %923 = vmatpush1.msra.mxu0 0.0
      %924 = vmatprep.subr.mxu0 0.0
      %925 = vmatpush1.msra.mxu0 0.0
      %926 = vmatprep.subr.mxu0 0.0
      %927 = vmatpush1.msra.mxu0 0.0
      %928 = vmatprep.subr.mxu0 0.0
      %929 = vmatpush1.msra.mxu0 0.0
      %930 = vmatprep.subr.mxu0 0.0
      %931 = vmatpush1.msra.mxu0 0.0
      %932 = vmatprep.subr.mxu0 0.0
      %933 = vmatpush1.msra.mxu0 0.0
      %934 = vmatprep.subr.mxu0 0.0
      %935 = vmatpush1.msra.mxu0 0.0
      %936 = vmatprep.subr.mxu0 0.0
      %937 = vmatpush1.msra.mxu0 0.0
      %938 = vmatprep.subr.mxu0 0.0
      %939 = vmatpush1.msra.mxu0 0.0
      %940 = vmatprep.subr.mxu0 0.0
      %941 = vmatpush1.msra.mxu0 0.0
      %942 = vmatprep.subr.mxu0 0.0
      %943 = vmatpush1.msra.mxu0 0.0
      %944 = vmatprep.subr.mxu0 0.0
      %945 = vmatpush1.msra.mxu0 0.0
      %946 = vmatprep.mubr.f32.mxu0 0.0
      %947 = vmatmul.mubr.f32.gmra.mrb[0].mxu0 %v873
      %v948 = vpop.f32.mrb[0].mxu0
      %v949 = vadd.f32 %v869, %v948
      %v950 = vpop.f32.mrb[0].mxu0
      %951 = vmatprep.mubr.f32.mxu0 0.0
      %952 = vmatmul.mubr.f32.gmra.mrb[0].mxu0 %v876
      %v953 = vpop.f32.mrb[0].mxu0
      %v954 = vadd.f32 %v869, %v953
      %v955 = vpop.f32.mrb[0].mxu0
      %956 = vdwg.mxu0
      %vm957 = vcmask 64512
      %958 = vst.msk [vmem:[%s436] sm:$0xff] %vm957, %v949
      %959 = vst.msk [vmem:[%s436 + $0x8] sm:$0xff] %vm957, %v954
      %v960 = vsel %vm957, %v949, 0.0
      %v961 = vsel %vm957, %v954, 0.0
      %v962 = vadd.f32 %v960, %v961
      %v963 = vrot.slane %v962, 4
      %v964 = vadd.f32 %v962, %v963
      %v965 = vrot.slane %v964, 2
      %v966 = vadd.f32 %v964, %v965
      %v967 = vrot.slane %v966, 1
      %v968 = vadd.f32 %v966, %v967
      %vm969 = vcmask 57344
      %970 = vst.msk [vmem:[%s444] sm:$0x1] %vm969, %v968
      %v971 = vmul.f32 %v949, %v949
      %v972 = vmul.f32 %v954, %v954
      %v973 = vsel %vm957, %v971, 0.0
      %v974 = vsel %vm957, %v972, 0.0
      %v975 = vadd.f32 %v973, %v974
      %v976 = vrot.slane %v975, 4
      %v977 = vadd.f32 %v975, %v976
      %v978 = vrot.slane %v977, 2
      %v979 = vadd.f32 %v977, %v978
      %v980 = vrot.slane %v979, 1
      %v981 = vadd.f32 %v979, %v980
      %982 = vst.msk [vmem:[%s444 + $0x1] sm:$0x1] %vm969, %v981
      %p983 = scmp.lt.s32.totalorder %s24, 1
      %s984 = scalar_select %p983, %s24, 1
      %p985 = scmp.lt.s32.totalorder %s25, 3
      %s986 = scalar_select %p985, %s25, 3
      %s987 = smul.addr %s986, 2
      %s988 = smul.addr %s984, 8
      %s989 = sadd.s32 %s987, %s988
      %s990 = smul.addr %s989, 8
      %s991 = scalar_lea.vmem %s7, %s990
      %p992 = scmp.lt.s32.totalorder %s24, 1
      %s993 = scalar_select %p992, %s24, 1
      %p994 = scmp.lt.s32.totalorder %s25, 3
      %s995 = scalar_select %p994, %s25, 3
      %s996 = smul.addr %s993, 4
      %s997 = sadd.s32 %s995, %s996
      %s998 = smul.addr %s997, 2
      %s999 = scalar_lea.vmem %s8, %s998
      // Predicated region
      $region49: #{down3d_forward.4} parent=47 // pred_check
        %p1000 = pneg %p224
      $region50: #{down3d_forward.4} parent=47 // pred_check_branch
        %1002 = sbr.rel (%p1000) target = $region52
      $region51: #{down3d_forward.4} parent=47 // pred_region
        _
      $region52: #{down3d_forward.4} parent=47 // pred_fallthru
        _
      // Predicated region
      $region53: #{down3d_forward.4} parent=47 // pred_check
        %p1003 = pneg %p252
      $region54: #{down3d_forward.4} parent=47 // pred_check_branch
        %1005 = sbr.rel (%p1003) target = $region56
      $region55: #{down3d_forward.4} parent=47 // pred_region
        _
      $region56: #{down3d_forward.4} parent=47 // pred_fallthru
        _
    $region48: #{down3d_forward.4} parent=5 // pred_fallthru
      _
    %p1006 = scmp.le.s32.totalorder 2, %s15
    // Predicated region
    $region57: #{down3d_forward.4} parent=5 // pred_check
      %p1007 = pneg %p1006
    $region58: #{down3d_forward.4} parent=5 // pred_check_branch
      %1009 = sbr.rel (%p1007) target = $region60
    $region59: #{down3d_forward.4} parent=5 // pred_region
      %s1010 = ssub.s32 %s15, 2
      // Predicated region
      $region61: #{down3d_forward.4} parent=59 // pred_check
        %p1011 = pneg %p230
      $region62: #{down3d_forward.4} parent=59 // pred_check_branch
        %1013 = sbr.rel (%p1011) target = $region64
      $region63: #{down3d_forward.4} parent=59 // pred_region
        %p1014 = scmp.lt.s32.totalorder %s26, 1
        %s1015 = scalar_select %p1014, %s26, 1
        %p1016 = scmp.lt.s32.totalorder %s27, 3
        %s1017 = scalar_select %p1016, %s27, 3
        %s1018 = smul.addr %s1017, 2
        %s1019 = smul.addr %s1015, 8
        %s1020 = sadd.s32 %s1018, %s1019
        %s1021 = smul.addr %s1020, 8
        %s1022 = scalar_lea.vmem %s7, %s1021
      $region64: #{down3d_forward.4} parent=59 // pred_fallthru
        _
      // Predicated region
      $region65: #{down3d_forward.4} parent=59 // pred_check
        %p1023 = pneg %p258
      $region66: #{down3d_forward.4} parent=59 // pred_check_branch
        %1025 = sbr.rel (%p1023) target = $region68
      $region67: #{down3d_forward.4} parent=59 // pred_region
        %p1026 = scmp.lt.s32.totalorder %s26, 1
        %s1027 = scalar_select %p1026, %s26, 1
        %p1028 = scmp.lt.s32.totalorder %s27, 3
        %s1029 = scalar_select %p1028, %s27, 3
        %s1030 = smul.addr %s1027, 4
        %s1031 = sadd.s32 %s1029, %s1030
        %s1032 = smul.addr %s1031, 2
        %s1033 = scalar_lea.vmem %s8, %s1032
      $region68: #{down3d_forward.4} parent=59 // pred_fallthru
        _
    $region60: #{down3d_forward.4} parent=5 // pred_fallthru
      _
  $region6: #{down3d_forward.4} parent=0 // loop_footer
    %s19 = sadd.s32 1, %s15
  $region7: #{down3d_forward.4} parent=0 // loop_footer_branch
    %14 = sbr.rel target = $region3
  $region8: #{down3d_forward.4} parent=0 // loop_exit
    _

// kernel: down3d_forward.7
$region0: #{down3d_forward.7}
  #allocation0 [shape = 'u32[]', space=smem, size = 0x4, offset = 0x4, fixed_abs, tag = 'smem constant byte address 0x4 - core index']
  #allocation1 [shape = 'u32[144,128]{1,0:T(1,128)}', space=vmem, size = 0x12000, scoped, tag = 'internal scratch']
  %s0 = inlined_call_operand.vmem [shape: f32[2,4,16,8], index: 0, kind: input, shape index: {}]
  %s1 = inlined_call_operand.vmem [shape: f32[1,8], index: 1, kind: input, shape index: {}]
  %s2 = inlined_call_operand.vmem [shape: f32[1,8], index: 2, kind: input, shape index: {}]
  %s3 = inlined_call_operand.hbm [shape: f32[2,4,16,8], index: 3, kind: output, shape index: {}]
  %s4 = sld [smem:[#allocation0]]
  $region45: #{down3d_forward.7} parent=0
    _
  %s6 = ssub.s32 1, %s4
  %s7 = scalar_select 0, %s6, %s4
  $region1: #{down3d_forward.7} parent=0
    #allocation2 [shape = 'u8[16384]{0}', space=vmem, size = 0x4000, scoped, tag = 'output window, operand 0']
    #allocation3 [shape = 's32[2]{0}', space=sflag, size = 0x8, scoped, tag = 'scoped memory for down3d_forward.7']
    %8 = vsyncpa [#allocation3], 0
    %s9 = scalar_lea.sflag [#allocation3], 1
    %10 = vsyncpa %s9, 0
    loop: start=0, step=1, limit=10
    $region2: #{down3d_forward.7} parent=1 // loop_pre_header
      _
    $region3: #{down3d_forward.7} parent=1 // loop_header
      %s12 = sphi 0, %s16
      %p13 = scmp.ge.s32.totalorder %s12, 10
      %s19 = sphi 0, %s31
      %s20 = sphi 0, %s27
      %s21 = sphi 0, %s19
      %s22 = sphi 0, %s20
      %s23 = sphi 0, %s21
      %s24 = sphi 0, %s22
      %s36 = sphi 0, %s38
      %s39 = sphi 0, %s36
      %s40 = sphi 0, %s39
      %s56 = sphi 0, %s40
      %s60 = sphi 0, %s60
      %s62 = sphi 0, %s60
      %s63 = sphi 0, %s62
      %s77 = sphi 0, %s63
      %s81 = sphi 0, %s81
      %s83 = sphi 0, %s81
      %s84 = sphi 0, %s83
      %s98 = sphi 0, %s84
      %s106 = sphi 0, %s108
      %s109 = sphi 0, %s106
      %s110 = sphi 0, %s109
      %s126 = sphi 0, %s110
    $region4: #{down3d_forward.7} parent=1 // loop_header_branch
      %15 = sbr.rel (%p13) target = $region8
    $region5: #{down3d_forward.7} parent=1 // loop_body
      %s17 = ssub.s32 %s12, 1
      %s18 = ssub.s32 %s12, 2
      %s25 = sadd.s32 1, %s20
      %p26 = scmp.ge.s32.totalorder %s25, 4
      %s27 = scalar_select %p26, 0, %s25
      %s28 = sadd.s32 1, %s19
      %s29 = scalar_select %p26, %s28, %s19
      %p30 = scmp.ge.s32.totalorder %s29, 2
      %s31 = scalar_select %p30, 0, %s29
      %s32 = ssub.s32 %s19, %s31
      %s33 = ssub.s32 %s20, %s27
      %s34 = sor.u32 %s32, %s33
      %p35 = scmp.eq.s32.totalorder %s34, 0
      %s37 = sadd.s32 %s36, 1
      %s38 = scalar_select %p35, %s36, %s37
      %p41 = pneg %p35
      %p42 = scmp.eq.s32.totalorder %s12, 7
      %p43 = por %p41, %p42
      %p44 = scmp.ne.s32.totalorder %s36, %s39
      %p45 = scmp.eq.s32.totalorder %s12, 0
      %p46 = por %p44, %p45
      %p47 = scmp.ne.s32.totalorder %s36, %s39
      %p48 = scmp.eq.s32.totalorder %s17, 7
      %p49 = por %p47, %p48
      %p50 = scmp.ne.s32.totalorder %s39, %s40
      %p51 = scmp.eq.s32.totalorder %s17, 0
      %p52 = por %p50, %p51
      %p53 = scmp.ne.s32.totalorder %s39, %s40
      %p54 = scmp.eq.s32.totalorder %s18, 7
      %p55 = por %p53, %p54
      %p57 = scmp.ne.s32.totalorder %s40, %s56
      %p58 = scmp.eq.s32.totalorder %s18, 0
      %p59 = por %p57, %p58
      %s61 = sadd.s32 %s60, 1
      %p64 = scmp.eq.s32.totalorder %s12, 7
      %p65 = scmp.ne.s32.totalorder %s60, %s62
      %p66 = scmp.eq.s32.totalorder %s12, 0
      %p67 = por %p65, %p66
      %p68 = scmp.ne.s32.totalorder %s60, %s62
      %p69 = scmp.eq.s32.totalorder %s17, 7
      %p70 = por %p68, %p69
      %p71 = scmp.ne.s32.totalorder %s62, %s63
      %p72 = scmp.eq.s32.totalorder %s17, 0
      %p73 = por %p71, %p72
      %p74 = scmp.ne.s32.totalorder %s62, %s63
      %p75 = scmp.eq.s32.totalorder %s18, 7
      %p76 = por %p74, %p75
      %p78 = scmp.ne.s32.totalorder %s63, %s77
      %p79 = scmp.eq.s32.totalorder %s18, 0
      %p80 = por %p78, %p79
      %s82 = sadd.s32 %s81, 1
      %p85 = scmp.eq.s32.totalorder %s12, 7
      %p86 = scmp.ne.s32.totalorder %s81, %s83
      %p87 = scmp.eq.s32.totalorder %s12, 0
      %p88 = por %p86, %p87
      %p89 = scmp.ne.s32.totalorder %s81, %s83
      %p90 = scmp.eq.s32.totalorder %s17, 7
      %p91 = por %p89, %p90
      %p92 = scmp.ne.s32.totalorder %s83, %s84
      %p93 = scmp.eq.s32.totalorder %s17, 0
      %p94 = por %p92, %p93
      %p95 = scmp.ne.s32.totalorder %s83, %s84
      %p96 = scmp.eq.s32.totalorder %s18, 7
      %p97 = por %p95, %p96
      %p99 = scmp.ne.s32.totalorder %s84, %s98
      %p100 = scmp.eq.s32.totalorder %s18, 0
      %p101 = por %p99, %p100
      %s102 = ssub.s32 %s19, %s31
      %s103 = ssub.s32 %s20, %s27
      %s104 = sor.u32 %s102, %s103
      %p105 = scmp.eq.s32.totalorder %s104, 0
      %s107 = sadd.s32 %s106, 1
      %s108 = scalar_select %p105, %s106, %s107
      %p111 = pneg %p105
      %p112 = scmp.eq.s32.totalorder %s12, 7
      %p113 = por %p111, %p112
      %p114 = scmp.ne.s32.totalorder %s106, %s109
      %p115 = scmp.eq.s32.totalorder %s12, 0
      %p116 = por %p114, %p115
      %p117 = scmp.ne.s32.totalorder %s106, %s109
      %p118 = scmp.eq.s32.totalorder %s17, 7
      %p119 = por %p117, %p118
      %p120 = scmp.ne.s32.totalorder %s109, %s110
      %p121 = scmp.eq.s32.totalorder %s17, 0
      %p122 = por %p120, %p121
      %p123 = scmp.ne.s32.totalorder %s109, %s110
      %p124 = scmp.eq.s32.totalorder %s18, 7
      %p125 = por %p123, %p124
      %p127 = scmp.ne.s32.totalorder %s110, %s126
      %p128 = scmp.eq.s32.totalorder %s18, 0
      %p129 = por %p127, %p128
      %p130 = scmp.le.s32.totalorder 1, %s12
      %p131 = scmp.lt.s32.totalorder %s12, 9
      %p132 = pnand %p130, %p131
      %p133 = pneg %p132
      // Predicated region
      $region9: #{down3d_forward.7} parent=5 // pred_check
        _
      $region10: #{down3d_forward.7} parent=5 // pred_check_branch
        %135 = sbr.rel (%p132) target = $region12
      $region11: #{down3d_forward.7} parent=5 // pred_region
        %s136 = ssub.s32 %s12, 1
        // Predicated region
        $region13: #{down3d_forward.7} parent=11 // pred_check
          %p137 = pneg %p73
        $region14: #{down3d_forward.7} parent=11 // pred_check_branch
          %139 = sbr.rel (%p137) target = $region16
        $region15: #{down3d_forward.7} parent=11 // pred_region
          _
        $region16: #{down3d_forward.7} parent=11 // pred_fallthru
          _
        // Predicated region
        $region17: #{down3d_forward.7} parent=11 // pred_check
          %p140 = pneg %p94
        $region18: #{down3d_forward.7} parent=11 // pred_check_branch
          %142 = sbr.rel (%p140) target = $region20
        $region19: #{down3d_forward.7} parent=11 // pred_region
          _
        $region20: #{down3d_forward.7} parent=11 // pred_fallthru
          _
      $region12: #{down3d_forward.7} parent=5 // pred_fallthru
        _
      %p143 = scmp.lt.s32.totalorder %s12, 8
      // Predicated region
      $region21: #{down3d_forward.7} parent=5 // pred_check
        %p144 = pneg %p143
      $region22: #{down3d_forward.7} parent=5 // pred_check_branch
        %146 = sbr.rel (%p144) target = $region24
      $region23: #{down3d_forward.7} parent=5 // pred_region
        // Predicated region
        $region25: #{down3d_forward.7} parent=23 // pred_check
          %p147 = pneg %p46
        $region26: #{down3d_forward.7} parent=23 // pred_check_branch
          %149 = sbr.rel (%p147) target = $region28
        $region27: #{down3d_forward.7} parent=23 // pred_region
          %p150 = scmp.lt.s32.totalorder %s19, 1
          %s151 = scalar_select %p150, %s19, 1
          %p152 = scmp.lt.s32.totalorder %s20, 3
          %s153 = scalar_select %p152, %s20, 3
          %s154 = smul.addr %s153, 2
          %s155 = smul.addr %s151, 8
          %s156 = sadd.s32 %s154, %s155
          %s157 = smul.addr %s156, 8
          %s158 = scalar_lea.vmem %s0, %s157
        $region28: #{down3d_forward.7} parent=23 // pred_fallthru
          _
      $region24: #{down3d_forward.7} parent=5 // pred_fallthru
        _
      %p159 = scmp.le.s32.totalorder 1, %s12
      %p160 = scmp.lt.s32.totalorder %s12, 9
      %p161 = pnand %p159, %p160
      %p162 = pneg %p161
      // Predicated region
      $region29: #{down3d_forward.7} parent=5 // pred_check
        _
      $region30: #{down3d_forward.7} parent=5 // pred_check_branch
        %164 = sbr.rel (%p161) target = $region32
      $region31: #{down3d_forward.7} parent=5 // pred_region
        %s165 = ssub.s32 %s12, 1
        %p166 = scmp.lt.s32.totalorder %s21, 1
        %s167 = scalar_select %p166, %s21, 1
        %p168 = scmp.lt.s32.totalorder %s22, 3
        %s169 = scalar_select %p168, %s22, 3
        %s170 = smul.addr %s169, 2
        %s171 = smul.addr %s167, 8
        %s172 = sadd.s32 %s170, %s171
        %s173 = smul.addr %s172, 8
        %s174 = scalar_lea.vmem %s0, %s173
        %p175 = pneg %p52
        %p176 = pneg %p49
        %p177 = pneg %p73
        %p178 = pneg %p70
        %p179 = pneg %p94
        %p180 = pneg %p91
        %p181 = pneg %p122
        %p182 = pneg %p119
        %s183 = sand.u32 %s109, 1
        %s184 = scalar_lea.sflag [#allocation3], %s183
        %s185 = sand.u32 %s109, 1
        %s186 = smul.addr %s185, 16
        %s187 = scalar_lea.vmem [#allocation2], %s186
        %p188 = scmp.lt.s32.totalorder %s21, 1
        %s189 = scalar_select %p188, %s21, 1
        %p190 = scmp.lt.s32.totalorder %s22, 3
        %s191 = scalar_select %p190, %s22, 3
        %s192 = smul.addr %s191, 2
        %s193 = smul.addr %s189, 8
        %s194 = sadd.s32 %s192, %s193
        %s195 = smul.addr %s194, 8
        %s196 = scalar_lea.vmem %s0, %s195
        %v197 = vld [vmem:[%s196] sm:$0xff]
        %v198 = vld [vmem:[%s196 + $0x8] sm:$0xff]
        %v199 = vld [vmem:[%s1] sm:$0x1]
        %v201 = vlaneseq
        %v202 = vshrl.u32 %v201, 7
        %v203 = vsub.s32 0, %v202
        %v204 = vrot.slane %v199, %v203
        %v206 = vmul.f32 %v197, %v204
        %v207 = vmul.f32 %v198, %v204
        %v208 = vld [vmem:[%s2] sm:$0x1]
        %v210 = vlaneseq
        %v211 = vshrl.u32 %v210, 7
        %v212 = vsub.s32 0, %v211
        %v213 = vrot.slane %v208, %v212
        %v215 = vadd.f32 %v206, %v213
        %v216 = vadd.f32 %v207, %v213
        %v217 = vmax.f32 %v215, 0.0
        %v218 = vmax.f32 %v216, 0.0
        %vm219 = vcmask 64512
        %220 = vst.msk [vmem:[%s187] sm:$0xff] %vm219, %v217
        %221 = vst.msk [vmem:[%s187 + $0x8] sm:$0xff] %vm219, %v218
        %s222 = sand.u32 %s109, 1
        %s223 = scalar_lea.sflag [#allocation3], %s222
        %s224 = sand.u32 %s109, 1
        %s225 = smul.addr %s224, 16
        %s226 = scalar_lea.vmem [#allocation2], %s225
        // Predicated region
        $region33: #{down3d_forward.7} parent=31 // pred_check
          %p227 = pneg %p119
        $region34: #{down3d_forward.7} parent=31 // pred_check_branch
          %229 = sbr.rel (%p227) target = $region36
        $region35: #{down3d_forward.7} parent=31 // pred_region
          %s231 = ssub.s32 256, 256
          %232 = vsyncadd %s223, %s231
          %s233 = smul.addr %s22, 2
          %s234 = smul.addr %s21, 8
          %s235 = sadd.s32 %s233, %s234
          %s236 = smul.addr %s235, 128
          %s237 = scalar_lea.hbm %s3, %s236
          %s238 = sshll.u32 %s226, 4
          %s239 = int_to_ptr.vmem [resolvable:$true] %s238
          %244 = dma.vmem_to_hbm [thread:$0]  %s239, 256, %s237, %s223, 128, 128, 8
        $region36: #{down3d_forward.7} parent=31 // pred_fallthru
          _
      $region32: #{down3d_forward.7} parent=5 // pred_fallthru
        _
      %p245 = scmp.le.s32.totalorder 2, %s12
      // Predicated region
      $region37: #{down3d_forward.7} parent=5 // pred_check
        %p246 = pneg %p245
      $region38: #{down3d_forward.7} parent=5 // pred_check_branch
        %248 = sbr.rel (%p246) target = $region40
      $region39: #{down3d_forward.7} parent=5 // pred_region
        %s249 = ssub.s32 %s12, 2
        // Predicated region
        $region41: #{down3d_forward.7} parent=39 // pred_check
          %p250 = pneg %p125
        $region42: #{down3d_forward.7} parent=39 // pred_check_branch
          %252 = sbr.rel (%p250) target = $region44
        $region43: #{down3d_forward.7} parent=39 // pred_region
          %s253 = sand.u32 %s110, 1
          %s254 = scalar_lea.sflag [#allocation3], %s253
          %s255 = sand.u32 %s110, 1
          %s256 = smul.addr %s255, 16
          %s257 = scalar_lea.vmem [#allocation2], %s256
          %258 = dma.done %s254, 256
        $region44: #{down3d_forward.7} parent=39 // pred_fallthru
          _
      $region40: #{down3d_forward.7} parent=5 // pred_fallthru
        _
    $region6: #{down3d_forward.7} parent=1 // loop_footer
      %s16 = sadd.s32 1, %s12
    $region7: #{down3d_forward.7} parent=1 // loop_footer_branch
      %11 = sbr.rel target = $region3
    $region8: #{down3d_forward.7} parent=1 // loop_exit
      _
    %259 = vsyncpa [#allocation3], 1
    %s260 = scalar_lea.sflag [#allocation3], 1
    %261 = vsyncpa %s260, 1

// kernel: down3d_forward.6
$region0: #{down3d_forward.6}
  #allocation0 [shape = 'u32[]', space=smem, size = 0x4, offset = 0x4, fixed_abs, tag = 'smem constant byte address 0x4 - core index']
  #allocation1 [shape = 'u32[144,128]{1,0:T(1,128)}', space=vmem, size = 0x12000, scoped, tag = 'internal scratch']
  #allocation2 [shape = 'f32[16,216]{1,0:T(8,128)}', space=vmem, size = 0x4000, scoped, tag = 'scratch operand']
  %s0 = inlined_call_operand.vmem [shape: f32[2,6,32,8], index: 0, kind: input, shape index: {}, may-alias: {0,1,2}]
  %s1 = inlined_call_operand.vmem [shape: f32[2,6,32,8], index: 1, kind: input, shape index: {}, may-alias: {0,1,2}]
  %s2 = inlined_call_operand.vmem [shape: f32[2,6,32,8], index: 2, kind: input, shape index: {}, may-alias: {0,1,2}]
  %s3 = inlined_call_operand.vmem [shape: f32[216,8], index: 3, kind: input, shape index: {}]
  %s4 = inlined_call_operand.vmem [shape: f32[1,8], index: 4, kind: input, shape index: {}]
  %s5 = inlined_call_operand.vmem [shape: f32[16,1], index: 5, kind: input, shape index: {}]
  %s6 = inlined_call_operand.vmem [shape: f32[16,1], index: 6, kind: input, shape index: {}]
  %s7 = inlined_call_operand.vmem [shape: f32[2,4,16,8], index: 7, kind: output, shape index: {0}]
  %s8 = inlined_call_operand.vmem [shape: f32[2,4,2,8], index: 8, kind: output, shape index: {1}]
  %9 = xla_tuple %s7, %s8
  %s10 = sld [smem:[#allocation0]]
  $region69: #{down3d_forward.6} parent=0
    _
  %s12 = ssub.s32 1, %s10
  %s13 = scalar_select 0, %s12, %s10
  loop: start=0, step=1, limit=10
  $region2: #{down3d_forward.6} parent=0 // loop_pre_header
    _
  $region3: #{down3d_forward.6} parent=0 // loop_header
    %s15 = sphi 0, %s19
    %p16 = scmp.ge.s32.totalorder %s15, 10
    %s22 = sphi 0, %s34
    %s23 = sphi 0, %s30
    %s24 = sphi 0, %s22
    %s25 = sphi 0, %s23
    %s26 = sphi 0, %s24
    %s27 = sphi 0, %s25
    %s39 = sphi 0, %s41
    %s42 = sphi 0, %s39
    %s43 = sphi 0, %s42
    %s59 = sphi 0, %s43
    %s69 = sphi 0, %s71
    %s72 = sphi 0, %s69
    %s73 = sphi 0, %s72
    %s89 = sphi 0, %s73
    %s99 = sphi 0, %s101
    %s102 = sphi 0, %s99
    %s103 = sphi 0, %s102
    %s119 = sphi 0, %s103
    %s123 = sphi 0, %s123
    %s125 = sphi 0, %s123
    %s126 = sphi 0, %s125
    %s140 = sphi 0, %s126
    %s144 = sphi 0, %s144
    %s146 = sphi 0, %s144
    %s147 = sphi 0, %s146
    %s161 = sphi 0, %s147
    %s165 = sphi 0, %s165
    %s167 = sphi 0, %s165
    %s168 = sphi 0, %s167
    %s182 = sphi 0, %s168
    %s186 = sphi 0, %s186
    %s188 = sphi 0, %s186
    %s189 = sphi 0, %s188
    %s203 = sphi 0, %s189
    %s211 = sphi 0, %s213
    %s214 = sphi 0, %s211
    %s215 = sphi 0, %s214
    %s231 = sphi 0, %s215
    %s239 = sphi 0, %s241
    %s242 = sphi 0, %s239
    %s243 = sphi 0, %s242
    %s259 = sphi 0, %s243
  $region4: #{down3d_forward.6} parent=0 // loop_header_branch
    %18 = sbr.rel (%p16) target = $region8
  $region5: #{down3d_forward.6} parent=0 // loop_body
    %s20 = ssub.s32 %s15, 1
    %s21 = ssub.s32 %s15, 2
    %s28 = sadd.s32 1, %s23
    %p29 = scmp.ge.s32.totalorder %s28, 4
    %s30 = scalar_select %p29, 0, %s28
    %s31 = sadd.s32 1, %s22
    %s32 = scalar_select %p29, %s31, %s22
    %p33 = scmp.ge.s32.totalorder %s32, 2
    %s34 = scalar_select %p33, 0, %s32
    %s35 = ssub.s32 %s22, %s34
    %s36 = ssub.s32 %s23, %s30
    %s37 = sor.u32 %s35, %s36
    %p38 = scmp.eq.s32.totalorder %s37, 0
    %s40 = sadd.s32 %s39, 1
    %s41 = scalar_select %p38, %s39, %s40
    %p44 = pneg %p38
    %p45 = scmp.eq.s32.totalorder %s15, 7
    %p46 = por %p44, %p45
    %p47 = scmp.ne.s32.totalorder %s39, %s42
    %p48 = scmp.eq.s32.totalorder %s15, 0
    %p49 = por %p47, %p48
    %p50 = scmp.ne.s32.totalorder %s39, %s42
    %p51 = scmp.eq.s32.totalorder %s20, 7
    %p52 = por %p50, %p51
    %p53 = scmp.ne.s32.totalorder %s42, %s43
    %p54 = scmp.eq.s32.totalorder %s20, 0
    %p55 = por %p53, %p54
    %p56 = scmp.ne.s32.totalorder %s42, %s43
    %p57 = scmp.eq.s32.totalorder %s21, 7
    %p58 = por %p56, %p57
    %p60 = scmp.ne.s32.totalorder %s43, %s59
    %p61 = scmp.eq.s32.totalorder %s21, 0
    %p62 = por %p60, %p61
    %s63 = sadd.s32 %s23, 1
    %s64 = sadd.s32 %s30, 1
    %s65 = ssub.s32 %s22, %s34
    %s66 = ssub.s32 %s63, %s64
    %s67 = sor.u32 %s65, %s66
    %p68 = scmp.eq.s32.totalorder %s67, 0
    %s70 = sadd.s32 %s69, 1
    %s71 = scalar_select %p68, %s69, %s70
    %p74 = pneg %p68
    %p75 = scmp.eq.s32.totalorder %s15, 7
    %p76 = por %p74, %p75
    %p77 = scmp.ne.s32.totalorder %s69, %s72
    %p78 = scmp.eq.s32.totalorder %s15, 0
    %p79 = por %p77, %p78
    %p80 = scmp.ne.s32.totalorder %s69, %s72
    %p81 = scmp.eq.s32.totalorder %s20, 7
    %p82 = por %p80, %p81
    %p83 = scmp.ne.s32.totalorder %s72, %s73
    %p84 = scmp.eq.s32.totalorder %s20, 0
    %p85 = por %p83, %p84
    %p86 = scmp.ne.s32.totalorder %s72, %s73
    %p87 = scmp.eq.s32.totalorder %s21, 7
    %p88 = por %p86, %p87
    %p90 = scmp.ne.s32.totalorder %s73, %s89
    %p91 = scmp.eq.s32.totalorder %s21, 0
    %p92 = por %p90, %p91
    %s93 = sadd.s32 %s23, 2
    %s94 = sadd.s32 %s30, 2
    %s95 = ssub.s32 %s22, %s34
    %s96 = ssub.s32 %s93, %s94
    %s97 = sor.u32 %s95, %s96
    %p98 = scmp.eq.s32.totalorder %s97, 0
    %s100 = sadd.s32 %s99, 1
    %s101 = scalar_select %p98, %s99, %s100
    %p104 = pneg %p98
    %p105 = scmp.eq.s32.totalorder %s15, 7
    %p106 = por %p104, %p105
    %p107 = scmp.ne.s32.totalorder %s99, %s102
    %p108 = scmp.eq.s32.totalorder %s15, 0
    %p109 = por %p107, %p108
    %p110 = scmp.ne.s32.totalorder %s99, %s102
    %p111 = scmp.eq.s32.totalorder %s20, 7
    %p112 = por %p110, %p111
    %p113 = scmp.ne.s32.totalorder %s102, %s103
    %p114 = scmp.eq.s32.totalorder %s20, 0
    %p115 = por %p113, %p114
    %p116 = scmp.ne.s32.totalorder %s102, %s103
    %p117 = scmp.eq.s32.totalorder %s21, 7
    %p118 = por %p116, %p117
    %p120 = scmp.ne.s32.totalorder %s103, %s119
    %p121 = scmp.eq.s32.totalorder %s21, 0
    %p122 = por %p120, %p121
    %s124 = sadd.s32 %s123, 1
    %p127 = scmp.eq.s32.totalorder %s15, 7
    %p128 = scmp.ne.s32.totalorder %s123, %s125
    %p129 = scmp.eq.s32.totalorder %s15, 0
    %p130 = por %p128, %p129
    %p131 = scmp.ne.s32.totalorder %s123, %s125
    %p132 = scmp.eq.s32.totalorder %s20, 7
    %p133 = por %p131, %p132
    %p134 = scmp.ne.s32.totalorder %s125, %s126
    %p135 = scmp.eq.s32.totalorder %s20, 0
    %p136 = por %p134, %p135
    %p137 = scmp.ne.s32.totalorder %s125, %s126
    %p138 = scmp.eq.s32.totalorder %s21, 7
    %p139 = por %p137, %p138
    %p141 = scmp.ne.s32.totalorder %s126, %s140
    %p142 = scmp.eq.s32.totalorder %s21, 0
    %p143 = por %p141, %p142
    %s145 = sadd.s32 %s144, 1
    %p148 = scmp.eq.s32.totalorder %s15, 7
    %p149 = scmp.ne.s32.totalorder %s144, %s146
    %p150 = scmp.eq.s32.totalorder %s15, 0
    %p151 = por %p149, %p150
    %p152 = scmp.ne.s32.totalorder %s144, %s146
    %p153 = scmp.eq.s32.totalorder %s20, 7
    %p154 = por %p152, %p153
    %p155 = scmp.ne.s32.totalorder %s146, %s147
    %p156 = scmp.eq.s32.totalorder %s20, 0
    %p157 = por %p155, %p156
    %p158 = scmp.ne.s32.totalorder %s146, %s147
    %p159 = scmp.eq.s32.totalorder %s21, 7
    %p160 = por %p158, %p159
    %p162 = scmp.ne.s32.totalorder %s147, %s161
    %p163 = scmp.eq.s32.totalorder %s21, 0
    %p164 = por %p162, %p163
    %s166 = sadd.s32 %s165, 1
    %p169 = scmp.eq.s32.totalorder %s15, 7
    %p170 = scmp.ne.s32.totalorder %s165, %s167
    %p171 = scmp.eq.s32.totalorder %s15, 0
    %p172 = por %p170, %p171
    %p173 = scmp.ne.s32.totalorder %s165, %s167
    %p174 = scmp.eq.s32.totalorder %s20, 7
    %p175 = por %p173, %p174
    %p176 = scmp.ne.s32.totalorder %s167, %s168
    %p177 = scmp.eq.s32.totalorder %s20, 0
    %p178 = por %p176, %p177
    %p179 = scmp.ne.s32.totalorder %s167, %s168
    %p180 = scmp.eq.s32.totalorder %s21, 7
    %p181 = por %p179, %p180
    %p183 = scmp.ne.s32.totalorder %s168, %s182
    %p184 = scmp.eq.s32.totalorder %s21, 0
    %p185 = por %p183, %p184
    %s187 = sadd.s32 %s186, 1
    %p190 = scmp.eq.s32.totalorder %s15, 7
    %p191 = scmp.ne.s32.totalorder %s186, %s188
    %p192 = scmp.eq.s32.totalorder %s15, 0
    %p193 = por %p191, %p192
    %p194 = scmp.ne.s32.totalorder %s186, %s188
    %p195 = scmp.eq.s32.totalorder %s20, 7
    %p196 = por %p194, %p195
    %p197 = scmp.ne.s32.totalorder %s188, %s189
    %p198 = scmp.eq.s32.totalorder %s20, 0
    %p199 = por %p197, %p198
    %p200 = scmp.ne.s32.totalorder %s188, %s189
    %p201 = scmp.eq.s32.totalorder %s21, 7
    %p202 = por %p200, %p201
    %p204 = scmp.ne.s32.totalorder %s189, %s203
    %p205 = scmp.eq.s32.totalorder %s21, 0
    %p206 = por %p204, %p205
    %s207 = ssub.s32 %s22, %s34
    %s208 = ssub.s32 %s23, %s30
    %s209 = sor.u32 %s207, %s208
    %p210 = scmp.eq.s32.totalorder %s209, 0
    %s212 = sadd.s32 %s211, 1
    %s213 = scalar_select %p210, %s211, %s212
    %p216 = pneg %p210
    %p217 = scmp.eq.s32.totalorder %s15, 7
    %p218 = por %p216, %p217
    %p219 = scmp.ne.s32.totalorder %s211, %s214
    %p220 = scmp.eq.s32.totalorder %s15, 0
    %p221 = por %p219, %p220
    %p222 = scmp.ne.s32.totalorder %s211, %s214
    %p223 = scmp.eq.s32.totalorder %s20, 7
    %p224 = por %p222, %p223
    %p225 = scmp.ne.s32.totalorder %s214, %s215
    %p226 = scmp.eq.s32.totalorder %s20, 0
    %p227 = por %p225, %p226
    %p228 = scmp.ne.s32.totalorder %s214, %s215
    %p229 = scmp.eq.s32.totalorder %s21, 7
    %p230 = por %p228, %p229
    %p232 = scmp.ne.s32.totalorder %s215, %s231
    %p233 = scmp.eq.s32.totalorder %s21, 0
    %p234 = por %p232, %p233
    %s235 = ssub.s32 %s22, %s34
    %s236 = ssub.s32 %s23, %s30
    %s237 = sor.u32 %s235, %s236
    %p238 = scmp.eq.s32.totalorder %s237, 0
    %s240 = sadd.s32 %s239, 1
    %s241 = scalar_select %p238, %s239, %s240
    %p244 = pneg %p238
    %p245 = scmp.eq.s32.totalorder %s15, 7
    %p246 = por %p244, %p245
    %p247 = scmp.ne.s32.totalorder %s239, %s242
    %p248 = scmp.eq.s32.totalorder %s15, 0
    %p249 = por %p247, %p248
    %p250 = scmp.ne.s32.totalorder %s239, %s242
    %p251 = scmp.eq.s32.totalorder %s20, 7
    %p252 = por %p250, %p251
    %p253 = scmp.ne.s32.totalorder %s242, %s243
    %p254 = scmp.eq.s32.totalorder %s20, 0
    %p255 = por %p253, %p254
    %p256 = scmp.ne.s32.totalorder %s242, %s243
    %p257 = scmp.eq.s32.totalorder %s21, 7
    %p258 = por %p256, %p257
    %p260 = scmp.ne.s32.totalorder %s243, %s259
    %p261 = scmp.eq.s32.totalorder %s21, 0
    %p262 = por %p260, %p261
    %p263 = scmp.le.s32.totalorder 1, %s15
    %p264 = scmp.lt.s32.totalorder %s15, 9
    %p265 = pnand %p263, %p264
    %p266 = pneg %p265
    // Predicated region
    $region9: #{down3d_forward.6} parent=5 // pred_check
      _
    $region10: #{down3d_forward.6} parent=5 // pred_check_branch
      %268 = sbr.rel (%p265) target = $region12
    $region11: #{down3d_forward.6} parent=5 // pred_region
      %s269 = ssub.s32 %s15, 1
      // Predicated region
      $region13: #{down3d_forward.6} parent=11 // pred_check
        %p270 = pneg %p136
      $region14: #{down3d_forward.6} parent=11 // pred_check_branch
        %272 = sbr.rel (%p270) target = $region16
      $region15: #{down3d_forward.6} parent=11 // pred_region
        _
      $region16: #{down3d_forward.6} parent=11 // pred_fallthru
        _
      // Predicated region
      $region17: #{down3d_forward.6} parent=11 // pred_check
        %p273 = pneg %p157
      $region18: #{down3d_forward.6} parent=11 // pred_check_branch
        %275 = sbr.rel (%p273) target = $region20
      $region19: #{down3d_forward.6} parent=11 // pred_region
        _
      $region20: #{down3d_forward.6} parent=11 // pred_fallthru
        _
      // Predicated region
      $region21: #{down3d_forward.6} parent=11 // pred_check
        %p276 = pneg %p178
      $region22: #{down3d_forward.6} parent=11 // pred_check_branch
        %278 = sbr.rel (%p276) target = $region24
      $region23: #{down3d_forward.6} parent=11 // pred_region
        _
      $region24: #{down3d_forward.6} parent=11 // pred_fallthru
        _
      // Predicated region
      $region25: #{down3d_forward.6} parent=11 // pred_check
        %p279 = pneg %p199
      $region26: #{down3d_forward.6} parent=11 // pred_check_branch
        %281 = sbr.rel (%p279) target = $region28
      $region27: #{down3d_forward.6} parent=11 // pred_region
        _
      $region28: #{down3d_forward.6} parent=11 // pred_fallthru
        _
    $region12: #{down3d_forward.6} parent=5 // pred_fallthru
      _
    %p282 = scmp.lt.s32.totalorder %s15, 8
    // Predicated region
    $region29: #{down3d_forward.6} parent=5 // pred_check
      %p283 = pneg %p282
    $region30: #{down3d_forward.6} parent=5 // pred_check_branch
      %285 = sbr.rel (%p283) target = $region32
    $region31: #{down3d_forward.6} parent=5 // pred_region
      // Predicated region
      $region33: #{down3d_forward.6} parent=31 // pred_check
        %p286 = pneg %p49
      $region34: #{down3d_forward.6} parent=31 // pred_check_branch
        %288 = sbr.rel (%p286) target = $region36
      $region35: #{down3d_forward.6} parent=31 // pred_region
        %p289 = scmp.lt.s32.totalorder %s22, 1
        %s290 = scalar_select %p289, %s22, 1
        %p291 = scmp.lt.s32.totalorder %s23, 5
        %s292 = scalar_select %p291, %s23, 5
        %s293 = smul.addr %s292, 4
        %s294 = smul.addr %s290, 24
        %s295 = sadd.s32 %s293, %s294
        %s296 = smul.addr %s295, 8
        %s297 = scalar_lea.vmem %s0, %s296
      $region36: #{down3d_forward.6} parent=31 // pred_fallthru
        _
      // Predicated region
      $region37: #{down3d_forward.6} parent=31 // pred_check
        %p298 = pneg %p79
      $region38: #{down3d_forward.6} parent=31 // pred_check_branch
        %300 = sbr.rel (%p298) target = $region40
      $region39: #{down3d_forward.6} parent=31 // pred_region
        %s301 = sadd.s32 %s23, 1
        %p302 = scmp.lt.s32.totalorder %s22, 1
        %s303 = scalar_select %p302, %s22, 1
        %p304 = scmp.lt.s32.totalorder %s301, 5
        %s305 = scalar_select %p304, %s301, 5
        %s306 = smul.addr %s305, 4
        %s307 = smul.addr %s303, 24
        %s308 = sadd.s32 %s306, %s307
        %s309 = smul.addr %s308, 8
        %s310 = scalar_lea.vmem %s1, %s309
        %s311 = sadd.s32 %s23, 1
      $region40: #{down3d_forward.6} parent=31 // pred_fallthru
        _
      // Predicated region
      $region41: #{down3d_forward.6} parent=31 // pred_check
        %p312 = pneg %p109
      $region42: #{down3d_forward.6} parent=31 // pred_check_branch
        %314 = sbr.rel (%p312) target = $region44
      $region43: #{down3d_forward.6} parent=31 // pred_region
        %s315 = sadd.s32 %s23, 2
        %p316 = scmp.lt.s32.totalorder %s22, 1
        %s317 = scalar_select %p316, %s22, 1
        %p318 = scmp.lt.s32.totalorder %s315, 5
        %s319 = scalar_select %p318, %s315, 5
        %s320 = smul.addr %s319, 4
        %s321 = smul.addr %s317, 24
        %s322 = sadd.s32 %s320, %s321
        %s323 = smul.addr %s322, 8
        %s324 = scalar_lea.vmem %s2, %s323
        %s325 = sadd.s32 %s23, 2
      $region44: #{down3d_forward.6} parent=31 // pred_fallthru
        _
    $region32: #{down3d_forward.6} parent=5 // pred_fallthru
      _
    %p326 = scmp.le.s32.totalorder 1, %s15
    %p327 = scmp.lt.s32.totalorder %s15, 9
    %p328 = pnand %p326, %p327
    %p329 = pneg %p328
    // Predicated region
    $region45: #{down3d_forward.6} parent=5 // pred_check
      _
    $region46: #{down3d_forward.6} parent=5 // pred_check_branch
      %331 = sbr.rel (%p328) target = $region48
    $region47: #{down3d_forward.6} parent=5 // pred_region
      %s332 = ssub.s32 %s15, 1
      %p333 = scmp.lt.s32.totalorder %s24, 1
      %s334 = scalar_select %p333, %s24, 1
      %p335 = scmp.lt.s32.totalorder %s25, 5
      %s336 = scalar_select %p335, %s25, 5
      %s337 = smul.addr %s336, 4
      %s338 = smul.addr %s334, 24
      %s339 = sadd.s32 %s337, %s338
      %s340 = smul.addr %s339, 8
      %s341 = scalar_lea.vmem %s0, %s340
      %p342 = pneg %p55
      %p343 = pneg %p52
      %s344 = sadd.s32 %s25, 1
      %p345 = scmp.lt.s32.totalorder %s24, 1
      %s346 = scalar_select %p345, %s24, 1
      %p347 = scmp.lt.s32.totalorder %s344, 5
      %s348 = scalar_select %p347, %s344, 5
      %s349 = smul.addr %s348, 4
      %s350 = smul.addr %s346, 24
      %s351 = sadd.s32 %s349, %s350
      %s352 = smul.addr %s351, 8
      %s353 = scalar_lea.vmem %s1, %s352
      %p354 = pneg %p85
      %p355 = pneg %p82
      %s356 = sadd.s32 %s25, 2
      %p357 = scmp.lt.s32.totalorder %s24, 1
      %s358 = scalar_select %p357, %s24, 1
      %p359 = scmp.lt.s32.totalorder %s356, 5
      %s360 = scalar_select %p359, %s356, 5
      %s361 = smul.addr %s360, 4
      %s362 = smul.addr %s358, 24
      %s363 = sadd.s32 %s361, %s362
      %s364 = smul.addr %s363, 8
      %s365 = scalar_lea.vmem %s2, %s364
      %p366 = pneg %p115
      %p367 = pneg %p112
      %p368 = pneg %p136
      %p369 = pneg %p133
      %p370 = pneg %p157
      %p371 = pneg %p154
      %p372 = pneg %p178
      %p373 = pneg %p175
      %p374 = pneg %p199
      %p375 = pneg %p196
      %p376 = pneg %p227
      %p377 = pneg %p224
      %p378 = scmp.lt.s32.totalorder %s24, 1
      %s379 = scalar_select %p378, %s24, 1
      %p380 = scmp.lt.s32.totalorder %s25, 3
      %s381 = scalar_select %p380, %s25, 3
      %s382 = smul.addr %s381, 2
      %s383 = smul.addr %s379, 8
      %s384 = sadd.s32 %s382, %s383
      %s385 = smul.addr %s384, 8
      %s386 = scalar_lea.vmem %s7, %s385
      %p387 = pneg %p255
      %p388 = pneg %p252
      %p389 = scmp.lt.s32.totalorder %s24, 1
      %s390 = scalar_select %p389, %s24, 1
      %p391 = scmp.lt.s32.totalorder %s25, 3
      %s392 = scalar_select %p391, %s25, 3
      %s393 = smul.addr %s390, 4
      %s394 = sadd.s32 %s392, %s393
      %s395 = smul.addr %s394, 2
      %s396 = scalar_lea.vmem %s8, %s395
      %p397 = scmp.lt.s32.totalorder %s24, 1
      %s398 = scalar_select %p397, %s24, 1
      %p399 = scmp.lt.s32.totalorder %s25, 5
      %s400 = scalar_select %p399, %s25, 5
      %s401 = smul.addr %s400, 4
      %s402 = smul.addr %s398, 24
      %s403 = sadd.s32 %s401, %s402
      %s404 = smul.addr %s403, 8
      %s405 = scalar_lea.vmem %s0, %s404
      %s406 = sadd.s32 %s25, 1
      %p407 = scmp.lt.s32.totalorder %s24, 1
      %s408 = scalar_select %p407, %s24, 1
      %p409 = scmp.lt.s32.totalorder %s406, 5
      %s410 = scalar_select %p409, %s406, 5
      %s411 = smul.addr %s410, 4
      %s412 = smul.addr %s408, 24
      %s413 = sadd.s32 %s411, %s412
      %s414 = smul.addr %s413, 8
      %s415 = scalar_lea.vmem %s1, %s414
      %s416 = sadd.s32 %s25, 1
      %s417 = sadd.s32 %s25, 2
      %p418 = scmp.lt.s32.totalorder %s24, 1
      %s419 = scalar_select %p418, %s24, 1
      %p420 = scmp.lt.s32.totalorder %s417, 5
      %s421 = scalar_select %p420, %s417, 5
      %s422 = smul.addr %s421, 4
      %s423 = smul.addr %s419, 24
      %s424 = sadd.s32 %s422, %s423
      %s425 = smul.addr %s424, 8
      %s426 = scalar_lea.vmem %s2, %s425
      %s427 = sadd.s32 %s25, 2
      %p428 = scmp.lt.s32.totalorder %s24, 1
      %s429 = scalar_select %p428, %s24, 1
      %p430 = scmp.lt.s32.totalorder %s25, 3
      %s431 = scalar_select %p430, %s25, 3
      %s432 = smul.addr %s431, 2
      %s433 = smul.addr %s429, 8
      %s434 = sadd.s32 %s432, %s433
      %s435 = smul.addr %s434, 8
      %s436 = scalar_lea.vmem %s7, %s435
      %p437 = scmp.lt.s32.totalorder %s24, 1
      %s438 = scalar_select %p437, %s24, 1
      %p439 = scmp.lt.s32.totalorder %s25, 3
      %s440 = scalar_select %p439, %s25, 3
      %s441 = smul.addr %s438, 4
      %s442 = sadd.s32 %s440, %s441
      %s443 = smul.addr %s442, 2
      %s444 = scalar_lea.vmem %s8, %s443
      %v445 = vld [vmem:[%s5] sm:$0xff]
      %v446 = vld [vmem:[%s5 + $0x8] sm:$0xff]
      %v447 = vld [vmem:[%s6] sm:$0xff]
      %v448 = vld [vmem:[%s6 + $0x8] sm:$0xff]
      %v449 = vld [vmem:[%s405 + $0x3] sm:$0xff]
      %v450 = vld [vmem:[%s405 + $0xb] sm:$0xff]
      %452 = vset.pattern.permute.xlu0 0
      %453 = vperm.xlu0 %452, %v445
      %v454 = vpop.permute.xlu0 %453
      %457 = vset.pattern.permute.xlu0 0
      %458 = vperm.xlu0 %457, %v446
      %v459 = vpop.permute.xlu0 %458
      %v461 = vmul.f32 %v449, %v454
      %v462 = vmul.f32 %v450, %v459
      %vm463 = vcmask 64512
      %464 = vst.msk [vmem:[#allocation2] sm:$0xff] %vm463, %v461
      %465 = vst.msk [vmem:[#allocation2 + $0x10] sm:$0xff] %vm463, %v462
      %v466 = vld [vmem:[%s405 + $0x4] sm:$0xff]
      %v467 = vld [vmem:[%s405 + $0xc] sm:$0xff]
      %470 = vrot.lane.b32.xlu0 %v466, 8
      %v471 = vpop.permute.xlu0 %470
      %472 = vrot.lane.b32.xlu0 %v467, 8
      %v473 = vpop.permute.xlu0 %472
      %vm476 = vcmask 130112
      %477 = vst.msk [vmem:[#allocation2] sm:$0xff] %vm476, %v471
      %478 = vst.msk [vmem:[#allocation2 + $0x10] sm:$0xff] %vm476, %v473
      %v479 = vld [vmem:[%s405 + $0x5] sm:$0xff]
      %v480 = vld [vmem:[%s405 + $0xd] sm:$0xff]
      %482 = vset.pattern.permute.xlu0 0
      %483 = vperm.xlu0 %482, %v447
      %v484 = vpop.permute.xlu0 %483
      %487 = vset.pattern.permute.xlu0 0
      %488 = vperm.xlu0 %487, %v448
      %v489 = vpop.permute.xlu0 %488
      %v491 = vmul.f32 %v479, %v484
      %v492 = vmul.f32 %v480, %v489
      %495 = vrot.lane.b32.xlu0 %v491, 16
      %v496 = vpop.permute.xlu0 %495
      %497 = vrot.lane.b32.xlu0 %v492, 16
      %v498 = vpop.permute.xlu0 %497
      %vm501 = vcmask 195712
      %502 = vst.msk [vmem:[#allocation2] sm:$0xff] %vm501, %v496
      %503 = vst.msk [vmem:[#allocation2 + $0x10] sm:$0xff] %vm501, %v498
      %v504 = vld [vmem:[%s405 + $0x7] sm:$0xff]
      %v505 = vld [vmem:[%s405 + $0xf] sm:$0xff]
      %v506 = vmul.f32 %v504, %v454
      %v507 = vmul.f32 %v505, %v459
      %510 = vrot.lane.b32.xlu0 %v506, 24
      %v511 = vpop.permute.xlu0 %510
      %512 = vrot.lane.b32.xlu0 %v507, 24
      %v513 = vpop.permute.xlu0 %512
      %vm516 = vcmask 261312
      %517 = vst.msk [vmem:[#allocation2] sm:$0xff] %vm516, %v511
      %518 = vst.msk [vmem:[#allocation2 + $0x10] sm:$0xff] %vm516, %v513
      %v519 = vld [vmem:[%s405 + $0x8] sm:$0xff]
      %v520 = vld [vmem:[%s405 + $0x10] sm:$0xff]
      %523 = vrot.lane.b32.xlu0 %v519, 32
      %v524 = vpop.permute.xlu0 %523
      %525 = vrot.lane.b32.xlu0 %v520, 32
      %v526 = vpop.permute.xlu0 %525
      %vm529 = vcmask 326912
      %530 = vst.msk [vmem:[#allocation2] sm:$0xff] %vm529, %v524
      %531 = vst.msk [vmem:[#allocation2 + $0x10] sm:$0xff] %vm529, %v526
      %v532 = vld [vmem:[%s405 + $0x9] sm:$0xff]
      %v533 = vld [vmem:[%s405 + $0x11] sm:$0xff]
      %v534 = vmul.f32 %v532, %v484
      %v535 = vmul.f32 %v533, %v489
      %538 = vrot.lane.b32.xlu0 %v534, 40
      %v539 = vpop.permute.xlu0 %538
      %540 = vrot.lane.b32.xlu0 %v535, 40
      %v541 = vpop.permute.xlu0 %540
      %vm544 = vcmask 392512
      %545 = vst.msk [vmem:[#allocation2] sm:$0xff] %vm544, %v539
      %546 = vst.msk [vmem:[#allocation2 + $0x10] sm:$0xff] %vm544, %v541
      %v547 = vld [vmem:[%s405 + $0xb] sm:$0xff]
      %v548 = vld [vmem:[%s405 + $0x13] sm:$0xff]
      %v549 = vmul.f32 %v547, %v454
      %v550 = vmul.f32 %v548, %v459
      %553 = vrot.lane.b32.xlu0 %v549, 48
      %v554 = vpop.permute.xlu0 %553
      %555 = vrot.lane.b32.xlu0 %v550, 48
      %v556 = vpop.permute.xlu0 %555
      %vm559 = vcmask 458112
      %560 = vst.msk [vmem:[#allocation2] sm:$0xff] %vm559, %v554
      %561 = vst.msk [vmem:[#allocation2 + $0x10] sm:$0xff] %vm559, %v556
      %v562 = vld [vmem:[%s405 + $0xc] sm:$0xff]
      %v563 = vld [vmem:[%s405 + $0x14] sm:$0xff]
      %566 = vrot.lane.b32.xlu0 %v562, 56
      %v567 = vpop.permute.xlu0 %566
      %568 = vrot.lane.b32.xlu0 %v563, 56
      %v569 = vpop.permute.xlu0 %568
      %vm572 = vcmask 523712
      %573 = vst.msk [vmem:[#allocation2] sm:$0xff] %vm572, %v567
      %574 = vst.msk [vmem:[#allocation2 + $0x10] sm:$0xff] %vm572, %v569
      %v575 = vld [vmem:[%s405 + $0xd] sm:$0xff]
      %v576 = vld [vmem:[%s405 + $0x15] sm:$0xff]
      %v577 = vmul.f32 %v575, %v484
      %v578 = vmul.f32 %v576, %v489
      %581 = vrot.lane.b32.xlu0 %v577, 64
      %v582 = vpop.permute.xlu0 %581
      %583 = vrot.lane.b32.xlu0 %v578, 64
      %v584 = vpop.permute.xlu0 %583
      %vm587 = vcmask 589312
      %588 = vst.msk [vmem:[#allocation2] sm:$0xff] %vm587, %v582
      %589 = vst.msk [vmem:[#allocation2 + $0x10] sm:$0xff] %vm587, %v584
      %v590 = vld [vmem:[%s415 + $0x3] sm:$0xff]
      %v591 = vld [vmem:[%s415 + $0xb] sm:$0xff]
      %v592 = vmul.f32 %v590, %v454
      %v593 = vmul.f32 %v591, %v459
      %596 = vrot.lane.b32.xlu0 %v592, 72
      %v597 = vpop.permute.xlu0 %596
      %598 = vrot.lane.b32.xlu0 %v593, 72
      %v599 = vpop.permute.xlu0 %598
      %vm602 = vcmask 654912
      %603 = vst.msk [vmem:[#allocation2] sm:$0xff] %vm602, %v597
      %604 = vst.msk [vmem:[#allocation2 + $0x10] sm:$0xff] %vm602, %v599
      %v605 = vld [vmem:[%s415 + $0x4] sm:$0xff]
      %v606 = vld [vmem:[%s415 + $0xc] sm:$0xff]
      %609 = vrot.lane.b32.xlu0 %v605, 80
      %v610 = vpop.permute.xlu0 %609
      %611 = vrot.lane.b32.xlu0 %v606, 80
      %v612 = vpop.permute.xlu0 %611
      %vm615 = vcmask 720512
      %616 = vst.msk [vmem:[#allocation2] sm:$0xff] %vm615, %v610
      %617 = vst.msk [vmem:[#allocation2 + $0x10] sm:$0xff] %vm615, %v612
      %v618 = vld [vmem:[%s415 + $0x5] sm:$0xff]
      %v619 = vld [vmem:[%s415 + $0xd] sm:$0xff]
      %v620 = vmul.f32 %v618, %v484
      %v621 = vmul.f32 %v619, %v489
      %624 = vrot.lane.b32.xlu0 %v620, 88
      %v625 = vpop.permute.xlu0 %624
      %626 = vrot.lane.b32.xlu0 %v621, 88
      %v627 = vpop.permute.xlu0 %626
      %vm630 = vcmask 786112
      %631 = vst.msk [vmem:[#allocation2] sm:$0xff] %vm630, %v625
      %632 = vst.msk [vmem:[#allocation2 + $0x10] sm:$0xff] %vm630, %v627
      %v633 = vld [vmem:[%s415 + $0x7] sm:$0xff]
      %v634 = vld [vmem:[%s415 + $0xf] sm:$0xff]
      %v635 = vmul.f32 %v633, %v454
      %v636 = vmul.f32 %v634, %v459
      %639 = vrot.lane.b32.xlu0 %v635, 96
      %v640 = vpop.permute.xlu0 %639
      %641 = vrot.lane.b32.xlu0 %v636, 96
      %v642 = vpop.permute.xlu0 %641
      %vm645 = vcmask 851712
      %646 = vst.msk [vmem:[#allocation2] sm:$0xff] %vm645, %v640
      %647 = vst.msk [vmem:[#allocation2 + $0x10] sm:$0xff] %vm645, %v642
      %v648 = vld [vmem:[%s415 + $0x8] sm:$0xff]
      %v649 = vld [vmem:[%s415 + $0x10] sm:$0xff]
      %652 = vrot.lane.b32.xlu0 %v648, 104
      %v653 = vpop.permute.xlu0 %652
      %654 = vrot.lane.b32.xlu0 %v649, 104
      %v655 = vpop.permute.xlu0 %654
      %vm658 = vcmask 917312
      %659 = vst.msk [vmem:[#allocation2] sm:$0xff] %vm658, %v653
      %660 = vst.msk [vmem:[#allocation2 + $0x10] sm:$0xff] %vm658, %v655
      %v661 = vld [vmem:[%s415 + $0x9] sm:$0xff]
      %v662 = vld [vmem:[%s415 + $0x11] sm:$0xff]
      %v663 = vmul.f32 %v661, %v484
      %v664 = vmul.f32 %v662, %v489
      %667 = vrot.lane.b32.xlu0 %v663, 112
      %v668 = vpop.permute.xlu0 %667
      %669 = vrot.lane.b32.xlu0 %v664, 112
      %v670 = vpop.permute.xlu0 %669
      %vm673 = vcmask 982912
      %674 = vst.msk [vmem:[#allocation2] sm:$0xff] %vm673, %v668
      %675 = vst.msk [vmem:[#allocation2 + $0x10] sm:$0xff] %vm673, %v670
      %v676 = vld [vmem:[%s415 + $0xb] sm:$0xff]
      %v677 = vld [vmem:[%s415 + $0x13] sm:$0xff]
      %v678 = vmul.f32 %v676, %v454
      %v679 = vmul.f32 %v677, %v459
      %682 = vrot.lane.b32.xlu0 %v678, 120
      %v683 = vpop.permute.xlu0 %682
      %684 = vrot.lane.b32.xlu0 %v679, 120
      %v685 = vpop.permute.xlu0 %684
      %vm688 = vcmask 1048512
      %689 = vst.msk [vmem:[#allocation2] sm:$0xff] %vm688, %v683
      %690 = vst.msk [vmem:[#allocation2 + $0x10] sm:$0xff] %vm688, %v685
      %v691 = vld [vmem:[%s415 + $0xc] sm:$0xff]
      %v692 = vld [vmem:[%s415 + $0x14] sm:$0xff]
      %693 = vst.msk [vmem:[#allocation2 + $0x8] sm:$0xff] %vm463, %v691
      %694 = vst.msk [vmem:[#allocation2 + $0x18] sm:$0xff] %vm463, %v692
      %v695 = vld [vmem:[%s415 + $0xd] sm:$0xff]
      %v696 = vld [vmem:[%s415 + $0x15] sm:$0xff]
      %v697 = vmul.f32 %v695, %v484
      %v698 = vmul.f32 %v696, %v489
      %701 = vrot.lane.b32.xlu0 %v697, 8
      %v702 = vpop.permute.xlu0 %701
      %703 = vrot.lane.b32.xlu0 %v698, 8
      %v704 = vpop.permute.xlu0 %703
      %707 = vst.msk [vmem:[#allocation2 + $0x8] sm:$0xff] %vm476, %v702
      %708 = vst.msk [vmem:[#allocation2 + $0x18] sm:$0xff] %vm476, %v704
      %v709 = vld [vmem:[%s426 + $0x3] sm:$0xff]
      %v710 = vld [vmem:[%s426 + $0xb] sm:$0xff]
      %v711 = vmul.f32 %v709, %v454
      %v712 = vmul.f32 %v710, %v459
      %715 = vrot.lane.b32.xlu0 %v711, 16
      %v716 = vpop.permute.xlu0 %715
      %717 = vrot.lane.b32.xlu0 %v712, 16
      %v718 = vpop.permute.xlu0 %717
      %721 = vst.msk [vmem:[#allocation2 + $0x8] sm:$0xff] %vm501, %v716
      %722 = vst.msk [vmem:[#allocation2 + $0x18] sm:$0xff] %vm501, %v718
      %v723 = vld [vmem:[%s426 + $0x4] sm:$0xff]
      %v724 = vld [vmem:[%s426 + $0xc] sm:$0xff]
      %727 = vrot.lane.b32.xlu0 %v723, 24
      %v728 = vpop.permute.xlu0 %727
      %729 = vrot.lane.b32.xlu0 %v724, 24
      %v730 = vpop.permute.xlu0 %729
      %733 = vst.msk [vmem:[#allocation2 + $0x8] sm:$0xff] %vm516, %v728
      %734 = vst.msk [vmem:[#allocation2 + $0x18] sm:$0xff] %vm516, %v730
      %v735 = vld [vmem:[%s426 + $0x5] sm:$0xff]
      %v736 = vld [vmem:[%s426 + $0xd] sm:$0xff]
      %v737 = vmul.f32 %v735, %v484
      %v738 = vmul.f32 %v736, %v489
      %741 = vrot.lane.b32.xlu0 %v737, 32
      %v742 = vpop.permute.xlu0 %741
      %743 = vrot.lane.b32.xlu0 %v738, 32
      %v744 = vpop.permute.xlu0 %743
      %747 = vst.msk [vmem:[#allocation2 + $0x8] sm:$0xff] %vm529, %v742
      %748 = vst.msk [vmem:[#allocation2 + $0x18] sm:$0xff] %vm529, %v744
      %v749 = vld [vmem:[%s426 + $0x7] sm:$0xff]
      %v750 = vld [vmem:[%s426 + $0xf] sm:$0xff]
      %v751 = vmul.f32 %v749, %v454
      %v752 = vmul.f32 %v750, %v459
      %755 = vrot.lane.b32.xlu0 %v751, 40
      %v756 = vpop.permute.xlu0 %755
      %757 = vrot.lane.b32.xlu0 %v752, 40
      %v758 = vpop.permute.xlu0 %757
      %761 = vst.msk [vmem:[#allocation2 + $0x8] sm:$0xff] %vm544, %v756
      %762 = vst.msk [vmem:[#allocation2 + $0x18] sm:$0xff] %vm544, %v758
      %v763 = vld [vmem:[%s426 + $0x8] sm:$0xff]
      %v764 = vld [vmem:[%s426 + $0x10] sm:$0xff]
      %767 = vrot.lane.b32.xlu0 %v763, 48
      %v768 = vpop.permute.xlu0 %767
      %769 = vrot.lane.b32.xlu0 %v764, 48
      %v770 = vpop.permute.xlu0 %769
      %773 = vst.msk [vmem:[#allocation2 + $0x8] sm:$0xff] %vm559, %v768
      %774 = vst.msk [vmem:[#allocation2 + $0x18] sm:$0xff] %vm559, %v770
      %v775 = vld [vmem:[%s426 + $0x9] sm:$0xff]
      %v776 = vld [vmem:[%s426 + $0x11] sm:$0xff]
      %v777 = vmul.f32 %v775, %v484
      %v778 = vmul.f32 %v776, %v489
      %781 = vrot.lane.b32.xlu0 %v777, 56
      %v782 = vpop.permute.xlu0 %781
      %783 = vrot.lane.b32.xlu0 %v778, 56
      %v784 = vpop.permute.xlu0 %783
      %787 = vst.msk [vmem:[#allocation2 + $0x8] sm:$0xff] %vm572, %v782
      %788 = vst.msk [vmem:[#allocation2 + $0x18] sm:$0xff] %vm572, %v784
      %v789 = vld [vmem:[%s426 + $0xb] sm:$0xff]
      %v790 = vld [vmem:[%s426 + $0x13] sm:$0xff]
      %v791 = vmul.f32 %v789, %v454
      %v792 = vmul.f32 %v790, %v459
      %795 = vrot.lane.b32.xlu0 %v791, 64
      %v796 = vpop.permute.xlu0 %795
      %797 = vrot.lane.b32.xlu0 %v792, 64
      %v798 = vpop.permute.xlu0 %797
      %801 = vst.msk [vmem:[#allocation2 + $0x8] sm:$0xff] %vm587, %v796
      %802 = vst.msk [vmem:[#allocation2 + $0x18] sm:$0xff] %vm587, %v798
      %v803 = vld [vmem:[%s426 + $0xc] sm:$0xff]
      %v804 = vld [vmem:[%s426 + $0x14] sm:$0xff]
      %807 = vrot.lane.b32.xlu0 %v803, 72
      %v808 = vpop.permute.xlu0 %807
      %809 = vrot.lane.b32.xlu0 %v804, 72
      %v810 = vpop.permute.xlu0 %809
      %813 = vst.msk [vmem:[#allocation2 + $0x8] sm:$0xff] %vm602, %v808
      %814 = vst.msk [vmem:[#allocation2 + $0x18] sm:$0xff] %vm602, %v810
      %v815 = vld [vmem:[%s426 + $0xd] sm:$0xff]
      %v816 = vld [vmem:[%s426 + $0x15] sm:$0xff]
      %v817 = vmul.f32 %v815, %v484
      %v818 = vmul.f32 %v816, %v489
      %821 = vrot.lane.b32.xlu0 %v817, 80
      %v822 = vpop.permute.xlu0 %821
      %823 = vrot.lane.b32.xlu0 %v818, 80
      %v824 = vpop.permute.xlu0 %823
      %827 = vst.msk [vmem:[#allocation2 + $0x8] sm:$0xff] %vm615, %v822
      %828 = vst.msk [vmem:[#allocation2 + $0x18] sm:$0xff] %vm615, %v824
      %v829 = vld [vmem:[#allocation2] sm:$0xff]
      %v830 = vld [vmem:[#allocation2 + $0x8] sm:$0xff]
      %v831 = vld [vmem:[#allocation2 + $0x10] sm:$0xff]
      %v832 = vld [vmem:[#allocation2 + $0x18] sm:$0xff]
      %v833 = vld [vmem:[%s3] sm:$0xff]
      %v834 = vld [vmem:[%s3 + $0x8] sm:$0xff]
      %v835 = vld [vmem:[%s3 + $0x10] sm:$0xff]
      %v836 = vld [vmem:[%s3 + $0x18] sm:$0xff]
      %v837 = vld [vmem:[%s3 + $0x20] sm:$0xff]
      %v838 = vld [vmem:[%s3 + $0x28] sm:$0xff]
      %v839 = vld [vmem:[%s3 + $0x30] sm:$0xff]
      %v840 = vld [vmem:[%s3 + $0x38] sm:$0xff]
      %v841 = vld [vmem:[%s3 + $0x40] sm:$0xff]
      %v842 = vld [vmem:[%s3 + $0x48] sm:$0xff]
      %v843 = vld [vmem:[%s3 + $0x50] sm:$0xff]
      %v844 = vld [vmem:[%s3 + $0x58] sm:$0xff]
      %v845 = vld [vmem:[%s3 + $0x60] sm:$0xff]
      %v846 = vld [vmem:[%s3 + $0x68] sm:$0xff]
      %v847 = vld [vmem:[%s3 + $0x70] sm:$0xff]
      %v848 = vld [vmem:[%s3 + $0x78] sm:$0xff]
      %v849 = vld [vmem:[%s3 + $0x80] sm:$0xff]
      %v850 = vld [vmem:[%s3 + $0x88] sm:$0xff]
      %v851 = vld [vmem:[%s3 + $0x90] sm:$0xff]
      %v852 = vld [vmem:[%s3 + $0x98] sm:$0xff]
      %v853 = vld [vmem:[%s3 + $0xa0] sm:$0xff]
      %v854 = vld [vmem:[%s3 + $0xa8] sm:$0xff]
      %v855 = vld [vmem:[%s3 + $0xb0] sm:$0xff]
      %v856 = vld [vmem:[%s3 + $0xb8] sm:$0xff]
      %v857 = vld [vmem:[%s3 + $0xc0] sm:$0xff]
      %v858 = vld [vmem:[%s3 + $0xc8] sm:$0xff]
      %v859 = vld [vmem:[%s3 + $0xd0] sm:$0xff]
      %v860 = vld [vmem:[%s4] sm:$0x1]
      %v862 = vlaneseq
      %v863 = vshrl.u32 %v862, 7
      %v864 = vsub.s32 0, %v863
      %v865 = vrot.slane %v860, %v864
      %vm867 = vcmask 719872
      %v869 = vsel %vm867, %v830, 0
      %v872 = vsel %vm867, %v832, 0
      %874 = vmatprep.subr.mxu0 0.0
      %875 = vmatpush1.msra.mxu0 %v833
      %876 = vmatprep.subr.mxu0 0.0
      %877 = vmatpush1.msra.mxu0 %v834
      %878 = vmatprep.subr.mxu0 0.0
      %879 = vmatpush1.msra.mxu0 %v835
      %880 = vmatprep.subr.mxu0 0.0
      %881 = vmatpush1.msra.mxu0 %v836
      %882 = vmatprep.subr.mxu0 0.0
      %883 = vmatpush1.msra.mxu0 %v837
      %884 = vmatprep.subr.mxu0 0.0
      %885 = vmatpush1.msra.mxu0 %v838
      %886 = vmatprep.subr.mxu0 0.0
      %887 = vmatpush1.msra.mxu0 %v839
      %888 = vmatprep.subr.mxu0 0.0
      %889 = vmatpush1.msra.mxu0 %v840
      %890 = vmatprep.subr.mxu0 0.0
      %891 = vmatpush1.msra.mxu0 %v841
      %892 = vmatprep.subr.mxu0 0.0
      %893 = vmatpush1.msra.mxu0 %v842
      %894 = vmatprep.subr.mxu0 0.0
      %895 = vmatpush1.msra.mxu0 %v843
      %896 = vmatprep.subr.mxu0 0.0
      %897 = vmatpush1.msra.mxu0 %v844
      %898 = vmatprep.subr.mxu0 0.0
      %899 = vmatpush1.msra.mxu0 %v845
      %900 = vmatprep.subr.mxu0 0.0
      %901 = vmatpush1.msra.mxu0 %v846
      %902 = vmatprep.subr.mxu0 0.0
      %903 = vmatpush1.msra.mxu0 %v847
      %904 = vmatprep.subr.mxu0 0.0
      %905 = vmatpush1.msra.mxu0 %v848
      %906 = vmatprep.subr.mxu0 0.0
      %907 = vmatpush1.msra.mxu0 %v849
      %908 = vmatprep.subr.mxu0 0.0
      %909 = vmatpush1.msra.mxu0 %v850
      %910 = vmatprep.subr.mxu0 0.0
      %911 = vmatpush1.msra.mxu0 %v851
      %912 = vmatprep.subr.mxu0 0.0
      %913 = vmatpush1.msra.mxu0 %v852
      %914 = vmatprep.subr.mxu0 0.0
      %915 = vmatpush1.msra.mxu0 %v853
      %916 = vmatprep.subr.mxu0 0.0
      %917 = vmatpush1.msra.mxu0 %v854
      %918 = vmatprep.subr.mxu0 0.0
      %919 = vmatpush1.msra.mxu0 %v855
      %920 = vmatprep.subr.mxu0 0.0
      %921 = vmatpush1.msra.mxu0 %v856
      %922 = vmatprep.subr.mxu0 0.0
      %923 = vmatpush1.msra.mxu0 %v857
      %924 = vmatprep.subr.mxu0 0.0
      %925 = vmatpush1.msra.mxu0 %v858
      %926 = vmatprep.subr.mxu0 0.0
      %927 = vmatpush1.msra.mxu0 %v859
      %928 = vmatprep.subr.mxu0 0.0
      %929 = vmatpush1.msra.mxu0 0.0
      %930 = vmatprep.subr.mxu0 0.0
      %931 = vmatpush1.msra.mxu0 0.0
      %932 = vmatprep.subr.mxu0 0.0
      %933 = vmatpush1.msra.mxu0 0.0
      %934 = vmatprep.subr.mxu0 0.0
      %935 = vmatpush1.msra.mxu0 0.0
      %936 = vmatprep.subr.mxu0 0.0
      %937 = vmatpush1.msra.mxu0 0.0
      %938 = vmatprep.mubr.f32.mxu0 %v869
      %939 = vmatmul.mubr.f32.gmra.mrb[0].mxu0 %v829
      %v940 = vpop.f32.mrb[0].mxu0
      %v941 = vadd.f32 %v865, %v940
      %v942 = vpop.f32.mrb[0].mxu0
      %943 = vmatprep.mubr.f32.mxu0 %v872
      %944 = vmatmul.mubr.f32.gmra.mrb[0].mxu0 %v831
      %v945 = vpop.f32.mrb[0].mxu0
      %v946 = vadd.f32 %v865, %v945
      %v947 = vpop.f32.mrb[0].mxu0
      %948 = vdwg.mxu0
      %949 = vst.msk [vmem:[%s436] sm:$0xff] %vm463, %v941
      %950 = vst.msk [vmem:[%s436 + $0x8] sm:$0xff] %vm463, %v946
      %v951 = vsel %vm463, %v941, 0.0
      %v952 = vsel %vm463, %v946, 0.0
      %v953 = vadd.f32 %v951, %v952
      %v954 = vrot.slane %v953, 4
      %v955 = vadd.f32 %v953, %v954
      %v956 = vrot.slane %v955, 2
      %v957 = vadd.f32 %v955, %v956
      %v958 = vrot.slane %v957, 1
      %v959 = vadd.f32 %v957, %v958
      %vm960 = vcmask 57344
      %961 = vst.msk [vmem:[%s444] sm:$0x1] %vm960, %v959
      %v962 = vmul.f32 %v941, %v941
      %v963 = vmul.f32 %v946, %v946
      %v964 = vsel %vm463, %v962, 0.0
      %v965 = vsel %vm463, %v963, 0.0
      %v966 = vadd.f32 %v964, %v965
      %v967 = vrot.slane %v966, 4
      %v968 = vadd.f32 %v966, %v967
      %v969 = vrot.slane %v968, 2
      %v970 = vadd.f32 %v968, %v969
      %v971 = vrot.slane %v970, 1
      %v972 = vadd.f32 %v970, %v971
      %973 = vst.msk [vmem:[%s444 + $0x1] sm:$0x1] %vm960, %v972
      %p974 = scmp.lt.s32.totalorder %s24, 1
      %s975 = scalar_select %p974, %s24, 1
      %p976 = scmp.lt.s32.totalorder %s25, 3
      %s977 = scalar_select %p976, %s25, 3
      %s978 = smul.addr %s977, 2
      %s979 = smul.addr %s975, 8
      %s980 = sadd.s32 %s978, %s979
      %s981 = smul.addr %s980, 8
      %s982 = scalar_lea.vmem %s7, %s981
      %p983 = scmp.lt.s32.totalorder %s24, 1
      %s984 = scalar_select %p983, %s24, 1
      %p985 = scmp.lt.s32.totalorder %s25, 3
      %s986 = scalar_select %p985, %s25, 3
      %s987 = smul.addr %s984, 4
      %s988 = sadd.s32 %s986, %s987
      %s989 = smul.addr %s988, 2
      %s990 = scalar_lea.vmem %s8, %s989
      // Predicated region
      $region49: #{down3d_forward.6} parent=47 // pred_check
        %p991 = pneg %p224
      $region50: #{down3d_forward.6} parent=47 // pred_check_branch
        %993 = sbr.rel (%p991) target = $region52
      $region51: #{down3d_forward.6} parent=47 // pred_region
        _
      $region52: #{down3d_forward.6} parent=47 // pred_fallthru
        _
      // Predicated region
      $region53: #{down3d_forward.6} parent=47 // pred_check
        %p994 = pneg %p252
      $region54: #{down3d_forward.6} parent=47 // pred_check_branch
        %996 = sbr.rel (%p994) target = $region56
      $region55: #{down3d_forward.6} parent=47 // pred_region
        _
      $region56: #{down3d_forward.6} parent=47 // pred_fallthru
        _
    $region48: #{down3d_forward.6} parent=5 // pred_fallthru
      _
    %p997 = scmp.le.s32.totalorder 2, %s15
    // Predicated region
    $region57: #{down3d_forward.6} parent=5 // pred_check
      %p998 = pneg %p997
    $region58: #{down3d_forward.6} parent=5 // pred_check_branch
      %1000 = sbr.rel (%p998) target = $region60
    $region59: #{down3d_forward.6} parent=5 // pred_region
      %s1001 = ssub.s32 %s15, 2
      // Predicated region
      $region61: #{down3d_forward.6} parent=59 // pred_check
        %p1002 = pneg %p230
      $region62: #{down3d_forward.6} parent=59 // pred_check_branch
        %1004 = sbr.rel (%p1002) target = $region64
      $region63: #{down3d_forward.6} parent=59 // pred_region
        %p1005 = scmp.lt.s32.totalorder %s26, 1
        %s1006 = scalar_select %p1005, %s26, 1
        %p1007 = scmp.lt.s32.totalorder %s27, 3
        %s1008 = scalar_select %p1007, %s27, 3
        %s1009 = smul.addr %s1008, 2
        %s1010 = smul.addr %s1006, 8
        %s1011 = sadd.s32 %s1009, %s1010
        %s1012 = smul.addr %s1011, 8
        %s1013 = scalar_lea.vmem %s7, %s1012
      $region64: #{down3d_forward.6} parent=59 // pred_fallthru
        _
      // Predicated region
      $region65: #{down3d_forward.6} parent=59 // pred_check
        %p1014 = pneg %p258
      $region66: #{down3d_forward.6} parent=59 // pred_check_branch
        %1016 = sbr.rel (%p1014) target = $region68
      $region67: #{down3d_forward.6} parent=59 // pred_region
        %p1017 = scmp.lt.s32.totalorder %s26, 1
        %s1018 = scalar_select %p1017, %s26, 1
        %p1019 = scmp.lt.s32.totalorder %s27, 3
        %s1020 = scalar_select %p1019, %s27, 3
        %s1021 = smul.addr %s1018, 4
        %s1022 = sadd.s32 %s1020, %s1021
        %s1023 = smul.addr %s1022, 2
        %s1024 = scalar_lea.vmem %s8, %s1023
      $region68: #{down3d_forward.6} parent=59 // pred_fallthru
        _
    $region60: #{down3d_forward.6} parent=5 // pred_fallthru
      _
  $region6: #{down3d_forward.6} parent=0 // loop_footer
    %s19 = sadd.s32 1, %s15
  $region7: #{down3d_forward.6} parent=0 // loop_footer_branch
    %14 = sbr.rel target = $region3
  $region8: #{down3d_forward.6} parent=0 // loop_exit
    _

</llo_original>
